<compile_context>
chip_gen: v6e
topology: v6e:2x2x1
jax: 0.10.0
libtpu: 0.0.40
codegen_flags: <defaults>
</compile_context>

<pallas_src>
import functools

import jax
import jax.numpy as jnp
from jax import lax
from jax.experimental import pallas as pl
from jax.experimental.pallas import tpu as pltpu

_LANES = 128  # lane-dense output slab width


def memstream_forward_kernel(data_ref, mean_ref, inv_std_ref, w_ref, b_ref,
                             mem_t_ref, out_ref, *, k, gamma):
    # Normalize; std==0 features arrive with inv_std==0 -> x == 0 there
    # (matches `data[:, std == 0] = 0`).
    x = (data_ref[...] - mean_ref[...]) * inv_std_ref[...]          # (TB, in_dim)

    # Encoder: tanh(x @ W + b) on the MXU -> (TB, out_dim).
    enc = jnp.tanh(
        jnp.dot(x, w_ref[...], preferred_element_type=jnp.float32) + b_ref[...]
    )

    mem_t = mem_t_ref[...]                                           # (out_dim, memory_len)
    out_dim, mem_len = mem_t.shape
    tb = enc.shape[0]

    # L1 distances, lane-major over memory_len:
    #   dist[b, j] = sum_d |enc[b, d] - memory[j, d]|
    # Accumulate over out_dim so live intermediates stay (TB, memory_len).
    dist = jnp.abs(enc[:, 0:1] - mem_t[0:1, :])                      # (TB, memory_len)
    for d in range(1, out_dim):
        dist = dist + jnp.abs(enc[:, d:d + 1] - mem_t[d:d + 1, :])

    # K smallest per row via iterative lane-reduce min (K static & small).
    # First-occurrence masking matches torch.topk tie behaviour exactly.
    idx = lax.broadcasted_iota(jnp.int32, (tb, mem_len), 1)
    weights = [float(gamma) ** i for i in range(k)]
    acc = jnp.zeros((tb, 1), jnp.float32)
    d_work = dist
    for i in range(k):
        m_val = jnp.min(d_work, axis=1, keepdims=True)               # (TB, 1) lane reduce
        acc = acc + m_val * jnp.float32(weights[i])
        if i + 1 < k:                                                # skip mask on last iter
            first = jnp.min(jnp.where(d_work == m_val, idx, mem_len),
                            axis=1, keepdims=True)
            d_work = jnp.where(idx == first, jnp.float32(jnp.inf), d_work)

    loss = acc * jnp.float32(1.0 / sum(weights))                     # (TB, 1)
    # Lane-dense, unmasked stores; wrapper slices column 0.
    out_ref[...] = jnp.broadcast_to(loss, out_ref.shape)


def memstream_forward(data, mean, std, w, b, memory, *, k, gamma, tile_b=128):
    batch, in_dim = data.shape
    out_dim = w.shape[1]
    memory_len = memory.shape[0]
    assert batch % tile_b == 0, "batch must be a multiple of tile_b"

    inv_std = jnp.where(std == 0.0, 0.0, 1.0 / std)    # constant per stream
    mem_t = memory.T                                   # (out_dim, memory_len)

    kern = functools.partial(memstream_forward_kernel, k=k, gamma=gamma)
    out = pl.pallas_call(
        kern,
        out_shape=jax.ShapeDtypeStruct((batch, _LANES), jnp.float32),
        grid_spec=pltpu.PrefetchScalarGridSpec(
            num_scalar_prefetch=0,
            grid=(batch // tile_b,),
            in_specs=[
                pl.BlockSpec((tile_b, in_dim), lambda i: (i, 0)),       # data (tiled)
                pl.BlockSpec((1, in_dim), lambda i: (0, 0)),            # mean (resident)
                pl.BlockSpec((1, in_dim), lambda i: (0, 0)),            # inv_std (resident)
                pl.BlockSpec((in_dim, out_dim), lambda i: (0, 0)),      # W (resident)
                pl.BlockSpec((1, out_dim), lambda i: (0, 0)),           # b (resident)
                pl.BlockSpec((out_dim, memory_len), lambda i: (0, 0)),  # memory^T (resident)
            ],
            out_specs=pl.BlockSpec((tile_b, _LANES), lambda i: (i, 0)),
        ),
        compiler_params=pltpu.CompilerParams(
            dimension_semantics=("parallel",),   # v7x: batch tiles split across TCs
        ),
    )(data, mean, inv_std, w, b, mem_t)
    return out[:, 0]


def memstream_forward_ref(data, mean, std, w, b, memory, *, k, gamma):
    """Pure-JAX reference for correctness checking (per-record losses)."""
    x = (data - mean) / std
    x = jnp.where(std == 0.0, 0.0, x)
    enc = jnp.tanh(x @ w + b)                                           # (B, out_dim)
    dist = jnp.sum(jnp.abs(memory[None, :, :] - enc[:, None, :]), axis=-1)  # (B, M)
    vals = -lax.top_k(-dist, k)[0]                                      # K smallest, ascending
    exp = jnp.array([gamma ** i for i in range(k)], jnp.float32)
    return jnp.sum(vals * exp[None, :], axis=-1) / jnp.sum(exp)


if __name__ == "__main__":
    in_dim, out_dim, memory_len = 32, 16, 64
    K, gamma = 4, 0.5
    batch = 256   # batched records (2 grid steps of 128) amortize launch/DMA cost

    key = jax.random.PRNGKey(0)
    k1, k2, k3, k4 = jax.random.split(key, 4)

    # Deterministic synthetic parameters (shapes from MemStream.__init__).
    w = jax.random.normal(k1, (in_dim, out_dim), jnp.float32) / jnp.sqrt(
        jnp.float32(in_dim))
    b = 0.01 * jax.random.normal(k2, (1, out_dim), jnp.float32)

    # mem_data ~ randn(memory_len, in_dim); mean/std/memory mimic initialize_memory().
    mem_data = jax.random.normal(k3, (memory_len, in_dim), jnp.float32)
    mean = jnp.mean(mem_data, axis=0, keepdims=True)
    std = jnp.std(mem_data, axis=0, ddof=1, keepdims=True)   # torch uses Bessel
    norm = jnp.where(std == 0.0, 0.0, (mem_data - mean) / std)
    memory = jnp.tanh(norm @ w + b)                          # encoder(normalized data)

    data = jax.random.normal(k4, (batch, in_dim), jnp.float32)   # incoming records

    fwd = jax.jit(functools.partial(memstream_forward, k=K, gamma=gamma))
    out = jax.block_until_ready(fwd(data, mean, std, w, b, memory))

    ref = memstream_forward_ref(data, mean, std, w, b, memory, k=K, gamma=gamma)
    assert out.shape == (batch,)
    assert jnp.allclose(out, ref, rtol=1e-4, atol=1e-4), (
        float(jnp.max(jnp.abs(out - ref))))

    print("KERNEL_OK")
</pallas_src>

<mosaic_0001>
module attributes {stable_mosaic.version = 11 : i64} {
  func.func @memstream_forward_kernel(%arg0: i32, %arg1: memref<128x32xf32, #tpu.memory_space<vmem>>, %arg2: memref<1x32xf32, #tpu.memory_space<vmem>>, %arg3: memref<1x32xf32, #tpu.memory_space<vmem>>, %arg4: memref<32x16xf32, #tpu.memory_space<vmem>>, %arg5: memref<1x16xf32, #tpu.memory_space<vmem>>, %arg6: memref<16x64xf32, #tpu.memory_space<vmem>>, %arg7: memref<128x128xf32, #tpu.memory_space<vmem>>) attributes {dimension_semantics = [#tpu.dimension_semantics<parallel>], iteration_bounds = array<i64: 2>, scalar_prefetch = 0 : i64, scratch_operands = 0 : i64, tpu.core_type = #tpu.core_type<tc>, window_params = [{transform_indices = @transform_0, window_bounds = array<i64: 128, 32>}, {pipeline_mode = #tpu.pipeline_mode<synchronous>, transform_indices = @transform_1, window_bounds = array<i64: 1, 32>}, {pipeline_mode = #tpu.pipeline_mode<synchronous>, transform_indices = @transform_2, window_bounds = array<i64: 1, 32>}, {pipeline_mode = #tpu.pipeline_mode<synchronous>, transform_indices = @transform_3, window_bounds = array<i64: 32, 16>}, {pipeline_mode = #tpu.pipeline_mode<synchronous>, transform_indices = @transform_4, window_bounds = array<i64: 1, 16>}, {pipeline_mode = #tpu.pipeline_mode<synchronous>, transform_indices = @transform_5, window_bounds = array<i64: 16, 64>}, {transform_indices = @transform_6, window_bounds = array<i64: 128, 128>}]} {
    %c0 = arith.constant 0 : index
    %c0_0 = arith.constant 0 : index
    %0 = vector.load %arg1[%c0, %c0_0] : memref<128x32xf32, #tpu.memory_space<vmem>>, vector<128x32xf32>
    %c0_1 = arith.constant 0 : index
    %c0_2 = arith.constant 0 : index
    %1 = vector.load %arg2[%c0_1, %c0_2] : memref<1x32xf32, #tpu.memory_space<vmem>>, vector<1x32xf32>
    %2 = vector.broadcast %1 : vector<1x32xf32> to vector<128x32xf32>
    %3 = arith.subf %0, %2 : vector<128x32xf32>
    %c0_3 = arith.constant 0 : index
    %c0_4 = arith.constant 0 : index
    %4 = vector.load %arg3[%c0_3, %c0_4] : memref<1x32xf32, #tpu.memory_space<vmem>>, vector<1x32xf32>
    %5 = vector.broadcast %4 : vector<1x32xf32> to vector<128x32xf32>
    %6 = arith.mulf %3, %5 : vector<128x32xf32>
    %c0_5 = arith.constant 0 : index
    %c0_6 = arith.constant 0 : index
    %7 = vector.load %arg4[%c0_5, %c0_6] : memref<32x16xf32, #tpu.memory_space<vmem>>, vector<32x16xf32>
    %cst = arith.constant dense<0.000000e+00> : vector<128x16xf32>
    %8 = tpu.matmul %6, %7, %cst {dimension_numbers = #tpu.dot_dimension_numbers<[1], [0], [0], [1], [0, 0, 1, 1], [], []>} : vector<128x32xf32>, vector<32x16xf32>, vector<128x16xf32> -> vector<128x16xf32>
    %c0_7 = arith.constant 0 : index
    %c0_8 = arith.constant 0 : index
    %9 = vector.load %arg5[%c0_7, %c0_8] : memref<1x16xf32, #tpu.memory_space<vmem>>, vector<1x16xf32>
    %10 = vector.broadcast %9 : vector<1x16xf32> to vector<128x16xf32>
    %11 = arith.addf %8, %10 : vector<128x16xf32>
    %12 = math.tanh %11 : vector<128x16xf32>
    %c0_9 = arith.constant 0 : index
    %c0_10 = arith.constant 0 : index
    %13 = vector.load %arg6[%c0_9, %c0_10] : memref<16x64xf32, #tpu.memory_space<vmem>>, vector<16x64xf32>
    %14 = vector.extract_strided_slice %12 {offsets = [0, 0], sizes = [128, 1], strides = [1, 1]} : vector<128x16xf32> to vector<128x1xf32>
    %15 = vector.extract_strided_slice %13 {offsets = [0, 0], sizes = [1, 64], strides = [1, 1]} : vector<16x64xf32> to vector<1x64xf32>
    %16 = vector.broadcast %14 : vector<128x1xf32> to vector<128x64xf32>
    %17 = vector.broadcast %15 : vector<1x64xf32> to vector<128x64xf32>
    %18 = arith.subf %16, %17 : vector<128x64xf32>
    %19 = math.absf %18 : vector<128x64xf32>
    %20 = vector.extract_strided_slice %12 {offsets = [0, 1], sizes = [128, 1], strides = [1, 1]} : vector<128x16xf32> to vector<128x1xf32>
    %21 = vector.extract_strided_slice %13 {offsets = [1, 0], sizes = [1, 64], strides = [1, 1]} : vector<16x64xf32> to vector<1x64xf32>
    %22 = vector.broadcast %20 : vector<128x1xf32> to vector<128x64xf32>
    %23 = vector.broadcast %21 : vector<1x64xf32> to vector<128x64xf32>
    %24 = arith.subf %22, %23 : vector<128x64xf32>
    %25 = math.absf %24 : vector<128x64xf32>
    %26 = arith.addf %19, %25 : vector<128x64xf32>
    %27 = vector.extract_strided_slice %12 {offsets = [0, 2], sizes = [128, 1], strides = [1, 1]} : vector<128x16xf32> to vector<128x1xf32>
    %28 = vector.extract_strided_slice %13 {offsets = [2, 0], sizes = [1, 64], strides = [1, 1]} : vector<16x64xf32> to vector<1x64xf32>
    %29 = vector.broadcast %27 : vector<128x1xf32> to vector<128x64xf32>
    %30 = vector.broadcast %28 : vector<1x64xf32> to vector<128x64xf32>
    %31 = arith.subf %29, %30 : vector<128x64xf32>
    %32 = math.absf %31 : vector<128x64xf32>
    %33 = arith.addf %26, %32 : vector<128x64xf32>
    %34 = vector.extract_strided_slice %12 {offsets = [0, 3], sizes = [128, 1], strides = [1, 1]} : vector<128x16xf32> to vector<128x1xf32>
    %35 = vector.extract_strided_slice %13 {offsets = [3, 0], sizes = [1, 64], strides = [1, 1]} : vector<16x64xf32> to vector<1x64xf32>
    %36 = vector.broadcast %34 : vector<128x1xf32> to vector<128x64xf32>
    %37 = vector.broadcast %35 : vector<1x64xf32> to vector<128x64xf32>
    %38 = arith.subf %36, %37 : vector<128x64xf32>
    %39 = math.absf %38 : vector<128x64xf32>
    %40 = arith.addf %33, %39 : vector<128x64xf32>
    %41 = vector.extract_strided_slice %12 {offsets = [0, 4], sizes = [128, 1], strides = [1, 1]} : vector<128x16xf32> to vector<128x1xf32>
    %42 = vector.extract_strided_slice %13 {offsets = [4, 0], sizes = [1, 64], strides = [1, 1]} : vector<16x64xf32> to vector<1x64xf32>
    %43 = vector.broadcast %41 : vector<128x1xf32> to vector<128x64xf32>
    %44 = vector.broadcast %42 : vector<1x64xf32> to vector<128x64xf32>
    %45 = arith.subf %43, %44 : vector<128x64xf32>
    %46 = math.absf %45 : vector<128x64xf32>
    %47 = arith.addf %40, %46 : vector<128x64xf32>
    %48 = vector.extract_strided_slice %12 {offsets = [0, 5], sizes = [128, 1], strides = [1, 1]} : vector<128x16xf32> to vector<128x1xf32>
    %49 = vector.extract_strided_slice %13 {offsets = [5, 0], sizes = [1, 64], strides = [1, 1]} : vector<16x64xf32> to vector<1x64xf32>
    %50 = vector.broadcast %48 : vector<128x1xf32> to vector<128x64xf32>
    %51 = vector.broadcast %49 : vector<1x64xf32> to vector<128x64xf32>
    %52 = arith.subf %50, %51 : vector<128x64xf32>
    %53 = math.absf %52 : vector<128x64xf32>
    %54 = arith.addf %47, %53 : vector<128x64xf32>
    %55 = vector.extract_strided_slice %12 {offsets = [0, 6], sizes = [128, 1], strides = [1, 1]} : vector<128x16xf32> to vector<128x1xf32>
    %56 = vector.extract_strided_slice %13 {offsets = [6, 0], sizes = [1, 64], strides = [1, 1]} : vector<16x64xf32> to vector<1x64xf32>
    %57 = vector.broadcast %55 : vector<128x1xf32> to vector<128x64xf32>
    %58 = vector.broadcast %56 : vector<1x64xf32> to vector<128x64xf32>
    %59 = arith.subf %57, %58 : vector<128x64xf32>
    %60 = math.absf %59 : vector<128x64xf32>
    %61 = arith.addf %54, %60 : vector<128x64xf32>
    %62 = vector.extract_strided_slice %12 {offsets = [0, 7], sizes = [128, 1], strides = [1, 1]} : vector<128x16xf32> to vector<128x1xf32>
    %63 = vector.extract_strided_slice %13 {offsets = [7, 0], sizes = [1, 64], strides = [1, 1]} : vector<16x64xf32> to vector<1x64xf32>
    %64 = vector.broadcast %62 : vector<128x1xf32> to vector<128x64xf32>
    %65 = vector.broadcast %63 : vector<1x64xf32> to vector<128x64xf32>
    %66 = arith.subf %64, %65 : vector<128x64xf32>
    %67 = math.absf %66 : vector<128x64xf32>
    %68 = arith.addf %61, %67 : vector<128x64xf32>
    %69 = vector.extract_strided_slice %12 {offsets = [0, 8], sizes = [128, 1], strides = [1, 1]} : vector<128x16xf32> to vector<128x1xf32>
    %70 = vector.extract_strided_slice %13 {offsets = [8, 0], sizes = [1, 64], strides = [1, 1]} : vector<16x64xf32> to vector<1x64xf32>
    %71 = vector.broadcast %69 : vector<128x1xf32> to vector<128x64xf32>
    %72 = vector.broadcast %70 : vector<1x64xf32> to vector<128x64xf32>
    %73 = arith.subf %71, %72 : vector<128x64xf32>
    %74 = math.absf %73 : vector<128x64xf32>
    %75 = arith.addf %68, %74 : vector<128x64xf32>
    %76 = vector.extract_strided_slice %12 {offsets = [0, 9], sizes = [128, 1], strides = [1, 1]} : vector<128x16xf32> to vector<128x1xf32>
    %77 = vector.extract_strided_slice %13 {offsets = [9, 0], sizes = [1, 64], strides = [1, 1]} : vector<16x64xf32> to vector<1x64xf32>
    %78 = vector.broadcast %76 : vector<128x1xf32> to vector<128x64xf32>
    %79 = vector.broadcast %77 : vector<1x64xf32> to vector<128x64xf32>
    %80 = arith.subf %78, %79 : vector<128x64xf32>
    %81 = math.absf %80 : vector<128x64xf32>
    %82 = arith.addf %75, %81 : vector<128x64xf32>
    %83 = vector.extract_strided_slice %12 {offsets = [0, 10], sizes = [128, 1], strides = [1, 1]} : vector<128x16xf32> to vector<128x1xf32>
    %84 = vector.extract_strided_slice %13 {offsets = [10, 0], sizes = [1, 64], strides = [1, 1]} : vector<16x64xf32> to vector<1x64xf32>
    %85 = vector.broadcast %83 : vector<128x1xf32> to vector<128x64xf32>
    %86 = vector.broadcast %84 : vector<1x64xf32> to vector<128x64xf32>
    %87 = arith.subf %85, %86 : vector<128x64xf32>
    %88 = math.absf %87 : vector<128x64xf32>
    %89 = arith.addf %82, %88 : vector<128x64xf32>
    %90 = vector.extract_strided_slice %12 {offsets = [0, 11], sizes = [128, 1], strides = [1, 1]} : vector<128x16xf32> to vector<128x1xf32>
    %91 = vector.extract_strided_slice %13 {offsets = [11, 0], sizes = [1, 64], strides = [1, 1]} : vector<16x64xf32> to vector<1x64xf32>
    %92 = vector.broadcast %90 : vector<128x1xf32> to vector<128x64xf32>
    %93 = vector.broadcast %91 : vector<1x64xf32> to vector<128x64xf32>
    %94 = arith.subf %92, %93 : vector<128x64xf32>
    %95 = math.absf %94 : vector<128x64xf32>
    %96 = arith.addf %89, %95 : vector<128x64xf32>
    %97 = vector.extract_strided_slice %12 {offsets = [0, 12], sizes = [128, 1], strides = [1, 1]} : vector<128x16xf32> to vector<128x1xf32>
    %98 = vector.extract_strided_slice %13 {offsets = [12, 0], sizes = [1, 64], strides = [1, 1]} : vector<16x64xf32> to vector<1x64xf32>
    %99 = vector.broadcast %97 : vector<128x1xf32> to vector<128x64xf32>
    %100 = vector.broadcast %98 : vector<1x64xf32> to vector<128x64xf32>
    %101 = arith.subf %99, %100 : vector<128x64xf32>
    %102 = math.absf %101 : vector<128x64xf32>
    %103 = arith.addf %96, %102 : vector<128x64xf32>
    %104 = vector.extract_strided_slice %12 {offsets = [0, 13], sizes = [128, 1], strides = [1, 1]} : vector<128x16xf32> to vector<128x1xf32>
    %105 = vector.extract_strided_slice %13 {offsets = [13, 0], sizes = [1, 64], strides = [1, 1]} : vector<16x64xf32> to vector<1x64xf32>
    %106 = vector.broadcast %104 : vector<128x1xf32> to vector<128x64xf32>
    %107 = vector.broadcast %105 : vector<1x64xf32> to vector<128x64xf32>
    %108 = arith.subf %106, %107 : vector<128x64xf32>
    %109 = math.absf %108 : vector<128x64xf32>
    %110 = arith.addf %103, %109 : vector<128x64xf32>
    %111 = vector.extract_strided_slice %12 {offsets = [0, 14], sizes = [128, 1], strides = [1, 1]} : vector<128x16xf32> to vector<128x1xf32>
    %112 = vector.extract_strided_slice %13 {offsets = [14, 0], sizes = [1, 64], strides = [1, 1]} : vector<16x64xf32> to vector<1x64xf32>
    %113 = vector.broadcast %111 : vector<128x1xf32> to vector<128x64xf32>
    %114 = vector.broadcast %112 : vector<1x64xf32> to vector<128x64xf32>
    %115 = arith.subf %113, %114 : vector<128x64xf32>
    %116 = math.absf %115 : vector<128x64xf32>
    %117 = arith.addf %110, %116 : vector<128x64xf32>
    %118 = vector.extract_strided_slice %12 {offsets = [0, 15], sizes = [128, 1], strides = [1, 1]} : vector<128x16xf32> to vector<128x1xf32>
    %119 = vector.extract_strided_slice %13 {offsets = [15, 0], sizes = [1, 64], strides = [1, 1]} : vector<16x64xf32> to vector<1x64xf32>
    %120 = vector.broadcast %118 : vector<128x1xf32> to vector<128x64xf32>
    %121 = vector.broadcast %119 : vector<1x64xf32> to vector<128x64xf32>
    %122 = arith.subf %120, %121 : vector<128x64xf32>
    %123 = math.absf %122 : vector<128x64xf32>
    %124 = arith.addf %117, %123 : vector<128x64xf32>
    %125 = tpu.iota {dimensions = array<i32: 1>} : vector<128x64xi32>
    %cst_11 = arith.constant 0.000000e+00 : f32
    %126 = vector.broadcast %cst_11 : f32 to vector<128x1xf32>
    %cst_12 = arith.constant dense<0x7F800000> : vector<128xf32>
    %127 = vector.multi_reduction <minimumf>, %124, %cst_12 [1] : vector<128x64xf32> to vector<128xf32>
    %128 = vector.shape_cast %127 : vector<128xf32> to vector<128x1xf32>
    %cst_13 = arith.constant 1.000000e+00 : f32
    %129 = vector.broadcast %cst_13 : f32 to vector<128x1xf32>
    %130 = arith.mulf %128, %129 : vector<128x1xf32>
    %131 = arith.addf %126, %130 : vector<128x1xf32>
    %132 = vector.broadcast %128 : vector<128x1xf32> to vector<128x64xf32>
    %133 = arith.cmpf oeq, %124, %132 : vector<128x64xf32>
    %c64_i32 = arith.constant 64 : i32
    %134 = vector.broadcast %c64_i32 : i32 to vector<128x64xi32>
    %135 = arith.select %133, %125, %134 : vector<128x64xi1>, vector<128x64xi32>
    %cst_14 = arith.constant dense<2147483647> : vector<128xi32>
    %136 = vector.multi_reduction <minsi>, %135, %cst_14 [1] : vector<128x64xi32> to vector<128xi32>
    %137 = vector.shape_cast %136 : vector<128xi32> to vector<128x1xi32>
    %138 = vector.broadcast %137 : vector<128x1xi32> to vector<128x64xi32>
    %139 = arith.cmpi eq, %125, %138 : vector<128x64xi32>
    %cst_15 = arith.constant 0x7F800000 : f32
    %140 = vector.broadcast %cst_15 : f32 to vector<128x64xf32>
    %141 = arith.select %139, %140, %124 : vector<128x64xi1>, vector<128x64xf32>
    %cst_16 = arith.constant dense<0x7F800000> : vector<128xf32>
    %142 = vector.multi_reduction <minimumf>, %141, %cst_16 [1] : vector<128x64xf32> to vector<128xf32>
    %143 = vector.shape_cast %142 : vector<128xf32> to vector<128x1xf32>
    %cst_17 = arith.constant 5.000000e-01 : f32
    %144 = vector.broadcast %cst_17 : f32 to vector<128x1xf32>
    %145 = arith.mulf %143, %144 : vector<128x1xf32>
    %146 = arith.addf %131, %145 : vector<128x1xf32>
    %147 = vector.broadcast %143 : vector<128x1xf32> to vector<128x64xf32>
    %148 = arith.cmpf oeq, %141, %147 : vector<128x64xf32>
    %c64_i32_18 = arith.constant 64 : i32
    %149 = vector.broadcast %c64_i32_18 : i32 to vector<128x64xi32>
    %150 = arith.select %148, %125, %149 : vector<128x64xi1>, vector<128x64xi32>
    %cst_19 = arith.constant dense<2147483647> : vector<128xi32>
    %151 = vector.multi_reduction <minsi>, %150, %cst_19 [1] : vector<128x64xi32> to vector<128xi32>
    %152 = vector.shape_cast %151 : vector<128xi32> to vector<128x1xi32>
    %153 = vector.broadcast %152 : vector<128x1xi32> to vector<128x64xi32>
    %154 = arith.cmpi eq, %125, %153 : vector<128x64xi32>
    %cst_20 = arith.constant 0x7F800000 : f32
    %155 = vector.broadcast %cst_20 : f32 to vector<128x64xf32>
    %156 = arith.select %154, %155, %141 : vector<128x64xi1>, vector<128x64xf32>
    %cst_21 = arith.constant dense<0x7F800000> : vector<128xf32>
    %157 = vector.multi_reduction <minimumf>, %156, %cst_21 [1] : vector<128x64xf32> to vector<128xf32>
    %158 = vector.shape_cast %157 : vector<128xf32> to vector<128x1xf32>
    %cst_22 = arith.constant 2.500000e-01 : f32
    %159 = vector.broadcast %cst_22 : f32 to vector<128x1xf32>
    %160 = arith.mulf %158, %159 : vector<128x1xf32>
    %161 = arith.addf %146, %160 : vector<128x1xf32>
    %162 = vector.broadcast %158 : vector<128x1xf32> to vector<128x64xf32>
    %163 = arith.cmpf oeq, %156, %162 : vector<128x64xf32>
    %c64_i32_23 = arith.constant 64 : i32
    %164 = vector.broadcast %c64_i32_23 : i32 to vector<128x64xi32>
    %165 = arith.select %163, %125, %164 : vector<128x64xi1>, vector<128x64xi32>
    %cst_24 = arith.constant dense<2147483647> : vector<128xi32>
    %166 = vector.multi_reduction <minsi>, %165, %cst_24 [1] : vector<128x64xi32> to vector<128xi32>
    %167 = vector.shape_cast %166 : vector<128xi32> to vector<128x1xi32>
    %168 = vector.broadcast %167 : vector<128x1xi32> to vector<128x64xi32>
    %169 = arith.cmpi eq, %125, %168 : vector<128x64xi32>
    %cst_25 = arith.constant 0x7F800000 : f32
    %170 = vector.broadcast %cst_25 : f32 to vector<128x64xf32>
    %171 = arith.select %169, %170, %156 : vector<128x64xi1>, vector<128x64xf32>
    %cst_26 = arith.constant dense<0x7F800000> : vector<128xf32>
    %172 = vector.multi_reduction <minimumf>, %171, %cst_26 [1] : vector<128x64xf32> to vector<128xf32>
    %173 = vector.shape_cast %172 : vector<128xf32> to vector<128x1xf32>
    %cst_27 = arith.constant 1.250000e-01 : f32
    %174 = vector.broadcast %cst_27 : f32 to vector<128x1xf32>
    %175 = arith.mulf %173, %174 : vector<128x1xf32>
    %176 = arith.addf %161, %175 : vector<128x1xf32>
    %cst_28 = arith.constant 0.533333361 : f32
    %177 = vector.broadcast %cst_28 : f32 to vector<128x1xf32>
    %178 = arith.mulf %176, %177 : vector<128x1xf32>
    %179 = vector.shape_cast %178 : vector<128x1xf32> to vector<128x1xf32>
    %180 = vector.broadcast %179 : vector<128x1xf32> to vector<128x128xf32>
    %c0_29 = arith.constant 0 : index
    %c0_30 = arith.constant 0 : index
    %181 = vector.load %arg7[%c0_29, %c0_30] : memref<128x128xf32, #tpu.memory_space<vmem>>, vector<128x128xf32>
    tpu.vector_store %arg7[%c0_29, %c0_30], %180 {strides = array<i32>} : memref<128x128xf32, #tpu.memory_space<vmem>>, vector<128x128xf32>,
    return
  }
  func.func @transform_0(%arg0: i32) -> (i32, i32) {
    %c0_i32 = arith.constant 0 : i32
    %c0_i32_0 = arith.constant 0 : i32
    return %arg0, %c0_i32 : i32, i32
  }
  func.func @transform_1(%arg0: i32) -> (i32, i32) {
    %c0_i32 = arith.constant 0 : i32
    %c0_i32_0 = arith.constant 0 : i32
    %c0_i32_1 = arith.constant 0 : i32
    return %c0_i32, %c0_i32_0 : i32, i32
  }
  func.func @transform_2(%arg0: i32) -> (i32, i32) {
    %c0_i32 = arith.constant 0 : i32
    %c0_i32_0 = arith.constant 0 : i32
    %c0_i32_1 = arith.constant 0 : i32
    return %c0_i32, %c0_i32_0 : i32, i32
  }
  func.func @transform_3(%arg0: i32) -> (i32, i32) {
    %c0_i32 = arith.constant 0 : i32
    %c0_i32_0 = arith.constant 0 : i32
    %c0_i32_1 = arith.constant 0 : i32
    return %c0_i32, %c0_i32_0 : i32, i32
  }
  func.func @transform_4(%arg0: i32) -> (i32, i32) {
    %c0_i32 = arith.constant 0 : i32
    %c0_i32_0 = arith.constant 0 : i32
    %c0_i32_1 = arith.constant 0 : i32
    return %c0_i32, %c0_i32_0 : i32, i32
  }
  func.func @transform_5(%arg0: i32) -> (i32, i32) {
    %c0_i32 = arith.constant 0 : i32
    %c0_i32_0 = arith.constant 0 : i32
    %c0_i32_1 = arith.constant 0 : i32
    return %c0_i32, %c0_i32_0 : i32, i32
  }
  func.func @transform_6(%arg0: i32) -> (i32, i32) {
    %c0_i32 = arith.constant 0 : i32
    %c0_i32_0 = arith.constant 0 : i32
    return %arg0, %c0_i32 : i32, i32
  }
}

</mosaic_0001>

<llo_original>
// kernel: memstream_forward.1
$region0: #{memstream_forward.1}
  #allocation0 [shape = 'u32[]', space=smem, size = 0x4, offset = 0x4, fixed_abs, tag = 'smem constant byte address 0x4 - core index']
  #allocation1 [shape = 'u32[144,128]{1,0:T(1,128)}', space=vmem, size = 0x12000, scoped, tag = 'internal scratch']
  %s0 = inlined_call_operand.vmem [shape: f32[256,32], index: 0, kind: input, shape index: {}]
  %s1 = inlined_call_operand.vmem [shape: f32[1,32], index: 1, kind: input, shape index: {}]
  %s2 = inlined_call_operand.vmem [shape: f32[1,32], index: 2, kind: input, shape index: {}]
  %s3 = inlined_call_operand.vmem [shape: f32[32,16], index: 3, kind: input, shape index: {}]
  %s4 = inlined_call_operand.vmem [shape: f32[1,16], index: 4, kind: input, shape index: {}]
  %s5 = inlined_call_operand.vmem [shape: f32[16,64], index: 5, kind: input, shape index: {}]
  %s6 = inlined_call_operand.vmem [shape: f32[256,128], index: 6, kind: output, shape index: {}]
  %s7 = sld [smem:[#allocation0]]
  $region57: #{memstream_forward.1} parent=0
    _
  %s9 = ssub.s32 1, %s7
  %s10 = scalar_select 0, %s9, %s7
  loop: start=0, step=1, limit=4
  $region2: #{memstream_forward.1} parent=0 // loop_pre_header
    _
  $region3: #{memstream_forward.1} parent=0 // loop_header
    %s12 = sphi 0, %s16
    %p13 = scmp.ge.s32.totalorder %s12, 4
    %s22 = sphi 0, %s24
    %s25 = sphi 0, %s22
    %s26 = sphi 0, %s25
    %s42 = sphi 0, %s26
    %s46 = sphi 0, %s46
    %s48 = sphi 0, %s46
    %s49 = sphi 0, %s48
    %s63 = sphi 0, %s49
    %s67 = sphi 0, %s67
    %s69 = sphi 0, %s67
    %s70 = sphi 0, %s69
    %s84 = sphi 0, %s70
    %s88 = sphi 0, %s88
    %s90 = sphi 0, %s88
    %s91 = sphi 0, %s90
    %s105 = sphi 0, %s91
    %s109 = sphi 0, %s109
    %s111 = sphi 0, %s109
    %s112 = sphi 0, %s111
    %s126 = sphi 0, %s112
    %s130 = sphi 0, %s130
    %s132 = sphi 0, %s130
    %s133 = sphi 0, %s132
    %s147 = sphi 0, %s133
    %s153 = sphi 0, %s155
    %s156 = sphi 0, %s153
    %s157 = sphi 0, %s156
    %s173 = sphi 0, %s157
  $region4: #{memstream_forward.1} parent=0 // loop_header_branch
    %15 = sbr.rel (%p13) target = $region8
  $region5: #{memstream_forward.1} parent=0 // loop_body
    %s17 = ssub.s32 %s12, 1
    %s18 = ssub.s32 %s12, 2
    %s19 = sadd.s32 %s12, 1
    %s20 = ssub.s32 %s12, %s19
    %p21 = scmp.eq.s32.totalorder %s20, 0
    %s23 = sadd.s32 %s22, 1
    %s24 = scalar_select %p21, %s22, %s23
    %p27 = pneg %p21
    %p28 = scmp.eq.s32.totalorder %s12, 1
    %p29 = por %p27, %p28
    %p30 = scmp.ne.s32.totalorder %s22, %s25
    %p31 = scmp.eq.s32.totalorder %s12, 0
    %p32 = por %p30, %p31
    %p33 = scmp.ne.s32.totalorder %s22, %s25
    %p34 = scmp.eq.s32.totalorder %s17, 1
    %p35 = por %p33, %p34
    %p36 = scmp.ne.s32.totalorder %s25, %s26
    %p37 = scmp.eq.s32.totalorder %s17, 0
    %p38 = por %p36, %p37
    %p39 = scmp.ne.s32.totalorder %s25, %s26
    %p40 = scmp.eq.s32.totalorder %s18, 1
    %p41 = por %p39, %p40
    %p43 = scmp.ne.s32.totalorder %s26, %s42
    %p44 = scmp.eq.s32.totalorder %s18, 0
    %p45 = por %p43, %p44
    %s47 = sadd.s32 %s46, 1
    %p50 = scmp.eq.s32.totalorder %s12, 1
    %p51 = scmp.ne.s32.totalorder %s46, %s48
    %p52 = scmp.eq.s32.totalorder %s12, 0
    %p53 = por %p51, %p52
    %p54 = scmp.ne.s32.totalorder %s46, %s48
    %p55 = scmp.eq.s32.totalorder %s17, 1
    %p56 = por %p54, %p55
    %p57 = scmp.ne.s32.totalorder %s48, %s49
    %p58 = scmp.eq.s32.totalorder %s17, 0
    %p59 = por %p57, %p58
    %p60 = scmp.ne.s32.totalorder %s48, %s49
    %p61 = scmp.eq.s32.totalorder %s18, 1
    %p62 = por %p60, %p61
    %p64 = scmp.ne.s32.totalorder %s49, %s63
    %p65 = scmp.eq.s32.totalorder %s18, 0
    %p66 = por %p64, %p65
    %s68 = sadd.s32 %s67, 1
    %p71 = scmp.eq.s32.totalorder %s12, 1
    %p72 = scmp.ne.s32.totalorder %s67, %s69
    %p73 = scmp.eq.s32.totalorder %s12, 0
    %p74 = por %p72, %p73
    %p75 = scmp.ne.s32.totalorder %s67, %s69
    %p76 = scmp.eq.s32.totalorder %s17, 1
    %p77 = por %p75, %p76
    %p78 = scmp.ne.s32.totalorder %s69, %s70
    %p79 = scmp.eq.s32.totalorder %s17, 0
    %p80 = por %p78, %p79
    %p81 = scmp.ne.s32.totalorder %s69, %s70
    %p82 = scmp.eq.s32.totalorder %s18, 1
    %p83 = por %p81, %p82
    %p85 = scmp.ne.s32.totalorder %s70, %s84
    %p86 = scmp.eq.s32.totalorder %s18, 0
    %p87 = por %p85, %p86
    %s89 = sadd.s32 %s88, 1
    %p92 = scmp.eq.s32.totalorder %s12, 1
    %p93 = scmp.ne.s32.totalorder %s88, %s90
    %p94 = scmp.eq.s32.totalorder %s12, 0
    %p95 = por %p93, %p94
    %p96 = scmp.ne.s32.totalorder %s88, %s90
    %p97 = scmp.eq.s32.totalorder %s17, 1
    %p98 = por %p96, %p97
    %p99 = scmp.ne.s32.totalorder %s90, %s91
    %p100 = scmp.eq.s32.totalorder %s17, 0
    %p101 = por %p99, %p100
    %p102 = scmp.ne.s32.totalorder %s90, %s91
    %p103 = scmp.eq.s32.totalorder %s18, 1
    %p104 = por %p102, %p103
    %p106 = scmp.ne.s32.totalorder %s91, %s105
    %p107 = scmp.eq.s32.totalorder %s18, 0
    %p108 = por %p106, %p107
    %s110 = sadd.s32 %s109, 1
    %p113 = scmp.eq.s32.totalorder %s12, 1
    %p114 = scmp.ne.s32.totalorder %s109, %s111
    %p115 = scmp.eq.s32.totalorder %s12, 0
    %p116 = por %p114, %p115
    %p117 = scmp.ne.s32.totalorder %s109, %s111
    %p118 = scmp.eq.s32.totalorder %s17, 1
    %p119 = por %p117, %p118
    %p120 = scmp.ne.s32.totalorder %s111, %s112
    %p121 = scmp.eq.s32.totalorder %s17, 0
    %p122 = por %p120, %p121
    %p123 = scmp.ne.s32.totalorder %s111, %s112
    %p124 = scmp.eq.s32.totalorder %s18, 1
    %p125 = por %p123, %p124
    %p127 = scmp.ne.s32.totalorder %s112, %s126
    %p128 = scmp.eq.s32.totalorder %s18, 0
    %p129 = por %p127, %p128
    %s131 = sadd.s32 %s130, 1
    %p134 = scmp.eq.s32.totalorder %s12, 1
    %p135 = scmp.ne.s32.totalorder %s130, %s132
    %p136 = scmp.eq.s32.totalorder %s12, 0
    %p137 = por %p135, %p136
    %p138 = scmp.ne.s32.totalorder %s130, %s132
    %p139 = scmp.eq.s32.totalorder %s17, 1
    %p140 = por %p138, %p139
    %p141 = scmp.ne.s32.totalorder %s132, %s133
    %p142 = scmp.eq.s32.totalorder %s17, 0
    %p143 = por %p141, %p142
    %p144 = scmp.ne.s32.totalorder %s132, %s133
    %p145 = scmp.eq.s32.totalorder %s18, 1
    %p146 = por %p144, %p145
    %p148 = scmp.ne.s32.totalorder %s133, %s147
    %p149 = scmp.eq.s32.totalorder %s18, 0
    %p150 = por %p148, %p149
    %s151 = ssub.s32 %s12, %s19
    %p152 = scmp.eq.s32.totalorder %s151, 0
    %s154 = sadd.s32 %s153, 1
    %s155 = scalar_select %p152, %s153, %s154
    %p158 = pneg %p152
    %p159 = scmp.eq.s32.totalorder %s12, 1
    %p160 = por %p158, %p159
    %p161 = scmp.ne.s32.totalorder %s153, %s156
    %p162 = scmp.eq.s32.totalorder %s12, 0
    %p163 = por %p161, %p162
    %p164 = scmp.ne.s32.totalorder %s153, %s156
    %p165 = scmp.eq.s32.totalorder %s17, 1
    %p166 = por %p164, %p165
    %p167 = scmp.ne.s32.totalorder %s156, %s157
    %p168 = scmp.eq.s32.totalorder %s17, 0
    %p169 = por %p167, %p168
    %p170 = scmp.ne.s32.totalorder %s156, %s157
    %p171 = scmp.eq.s32.totalorder %s18, 1
    %p172 = por %p170, %p171
    %p174 = scmp.ne.s32.totalorder %s157, %s173
    %p175 = scmp.eq.s32.totalorder %s18, 0
    %p176 = por %p174, %p175
    %p177 = scmp.le.s32.totalorder 1, %s12
    %p178 = scmp.lt.s32.totalorder %s12, 3
    %p179 = pnand %p177, %p178
    %p180 = pneg %p179
    // Predicated region
    $region9: #{memstream_forward.1} parent=5 // pred_check
      _
    $region10: #{memstream_forward.1} parent=5 // pred_check_branch
      %182 = sbr.rel (%p179) target = $region12
    $region11: #{memstream_forward.1} parent=5 // pred_region
      %s183 = ssub.s32 %s12, 1
      // Predicated region
      $region13: #{memstream_forward.1} parent=11 // pred_check
        %p184 = pneg %p59
      $region14: #{memstream_forward.1} parent=11 // pred_check_branch
        %186 = sbr.rel (%p184) target = $region16
      $region15: #{memstream_forward.1} parent=11 // pred_region
        _
      $region16: #{memstream_forward.1} parent=11 // pred_fallthru
        _
      // Predicated region
      $region17: #{memstream_forward.1} parent=11 // pred_check
        %p187 = pneg %p80
      $region18: #{memstream_forward.1} parent=11 // pred_check_branch
        %189 = sbr.rel (%p187) target = $region20
      $region19: #{memstream_forward.1} parent=11 // pred_region
        _
      $region20: #{memstream_forward.1} parent=11 // pred_fallthru
        _
      // Predicated region
      $region21: #{memstream_forward.1} parent=11 // pred_check
        %p190 = pneg %p101
      $region22: #{memstream_forward.1} parent=11 // pred_check_branch
        %192 = sbr.rel (%p190) target = $region24
      $region23: #{memstream_forward.1} parent=11 // pred_region
        _
      $region24: #{memstream_forward.1} parent=11 // pred_fallthru
        _
      // Predicated region
      $region25: #{memstream_forward.1} parent=11 // pred_check
        %p193 = pneg %p122
      $region26: #{memstream_forward.1} parent=11 // pred_check_branch
        %195 = sbr.rel (%p193) target = $region28
      $region27: #{memstream_forward.1} parent=11 // pred_region
        _
      $region28: #{memstream_forward.1} parent=11 // pred_fallthru
        _
      // Predicated region
      $region29: #{memstream_forward.1} parent=11 // pred_check
        %p196 = pneg %p143
      $region30: #{memstream_forward.1} parent=11 // pred_check_branch
        %198 = sbr.rel (%p196) target = $region32
      $region31: #{memstream_forward.1} parent=11 // pred_region
        _
      $region32: #{memstream_forward.1} parent=11 // pred_fallthru
        _
    $region12: #{memstream_forward.1} parent=5 // pred_fallthru
      _
    %p199 = scmp.lt.s32.totalorder %s12, 2
    // Predicated region
    $region33: #{memstream_forward.1} parent=5 // pred_check
      %p200 = pneg %p199
    $region34: #{memstream_forward.1} parent=5 // pred_check_branch
      %202 = sbr.rel (%p200) target = $region36
    $region35: #{memstream_forward.1} parent=5 // pred_region
      // Predicated region
      $region37: #{memstream_forward.1} parent=35 // pred_check
        %p203 = pneg %p32
      $region38: #{memstream_forward.1} parent=35 // pred_check_branch
        %205 = sbr.rel (%p203) target = $region40
      $region39: #{memstream_forward.1} parent=35 // pred_region
        %s206 = smul.u32 16, %s12
        %p207 = scmp.lt.s32.totalorder %s206, 31
        %s208 = scalar_select %p207, %s206, 31
        %s209 = smul.addr %s208, 8
        %s210 = scalar_lea.vmem %s0, %s209
        %s211 = smul.u32 16, %s12
      $region40: #{memstream_forward.1} parent=35 // pred_fallthru
        _
    $region36: #{memstream_forward.1} parent=5 // pred_fallthru
      _
    %p212 = scmp.le.s32.totalorder 1, %s12
    %p213 = scmp.lt.s32.totalorder %s12, 3
    %p214 = pnand %p212, %p213
    %p215 = pneg %p214
    // Predicated region
    $region41: #{memstream_forward.1} parent=5 // pred_check
      _
    $region42: #{memstream_forward.1} parent=5 // pred_check_branch
      %217 = sbr.rel (%p214) target = $region44
    $region43: #{memstream_forward.1} parent=5 // pred_region
      %s218 = ssub.s32 %s12, 1
      %s219 = smul.u32 16, %s17
      %p220 = scmp.lt.s32.totalorder %s219, 31
      %s221 = scalar_select %p220, %s219, 31
      %s222 = smul.addr %s221, 8
      %s223 = scalar_lea.vmem %s0, %s222
      %p224 = pneg %p38
      %p225 = pneg %p35
      %p226 = pneg %p59
      %p227 = pneg %p56
      %p228 = pneg %p80
      %p229 = pneg %p77
      %p230 = pneg %p101
      %p231 = pneg %p98
      %p232 = pneg %p122
      %p233 = pneg %p119
      %p234 = pneg %p143
      %p235 = pneg %p140
      %p236 = pneg %p169
      %p237 = pneg %p166
      %s238 = smul.u32 16, %s17
      %p239 = scmp.lt.s32.totalorder %s238, 31
      %s240 = scalar_select %p239, %s238, 31
      %s241 = smul.addr %s240, 8
      %s242 = scalar_lea.vmem %s6, %s241
      %s243 = smul.u32 16, %s17
      %p244 = scmp.lt.s32.totalorder %s243, 31
      %s245 = scalar_select %p244, %s243, 31
      %s246 = smul.addr %s245, 8
      %s247 = scalar_lea.vmem %s0, %s246
      %s248 = smul.u32 16, %s17
      %s249 = smul.u32 16, %s17
      %p250 = scmp.lt.s32.totalorder %s249, 31
      %s251 = scalar_select %p250, %s249, 31
      %s252 = smul.addr %s251, 8
      %s253 = scalar_lea.vmem %s6, %s252
      %s254 = smul.u32 16, %s17
      %v255 = vld [vmem:[%s247] sm:$0xff]
      %v256 = vld [vmem:[%s247 + $0x8] sm:$0xff]
      %v257 = vld [vmem:[%s247 + $0x10] sm:$0xff]
      %v258 = vld [vmem:[%s247 + $0x18] sm:$0xff]
      %v259 = vld [vmem:[%s247 + $0x20] sm:$0xff]
      %v260 = vld [vmem:[%s247 + $0x28] sm:$0xff]
      %v261 = vld [vmem:[%s247 + $0x30] sm:$0xff]
      %v262 = vld [vmem:[%s247 + $0x38] sm:$0xff]
      %v263 = vld [vmem:[%s247 + $0x40] sm:$0xff]
      %v264 = vld [vmem:[%s247 + $0x48] sm:$0xff]
      %v265 = vld [vmem:[%s247 + $0x50] sm:$0xff]
      %v266 = vld [vmem:[%s247 + $0x58] sm:$0xff]
      %v267 = vld [vmem:[%s247 + $0x60] sm:$0xff]
      %v268 = vld [vmem:[%s247 + $0x68] sm:$0xff]
      %v269 = vld [vmem:[%s247 + $0x70] sm:$0xff]
      %v270 = vld [vmem:[%s247 + $0x78] sm:$0xff]
      %v271 = vld [vmem:[%s1] sm:$0x1]
      %v273 = vlaneseq
      %v274 = vshrl.u32 %v273, 7
      %v275 = vsub.s32 0, %v274
      %v276 = vrot.slane %v271, %v275
      %v278 = vsub.f32 %v255, %v276
      %v279 = vsub.f32 %v256, %v276
      %v280 = vsub.f32 %v257, %v276
      %v281 = vsub.f32 %v258, %v276
      %v282 = vsub.f32 %v259, %v276
      %v283 = vsub.f32 %v260, %v276
      %v284 = vsub.f32 %v261, %v276
      %v285 = vsub.f32 %v262, %v276
      %v286 = vsub.f32 %v263, %v276
      %v287 = vsub.f32 %v264, %v276
      %v288 = vsub.f32 %v265, %v276
      %v289 = vsub.f32 %v266, %v276
      %v290 = vsub.f32 %v267, %v276
      %v291 = vsub.f32 %v268, %v276
      %v292 = vsub.f32 %v269, %v276
      %v293 = vsub.f32 %v270, %v276
      %v294 = vld [vmem:[%s2] sm:$0x1]
      %v296 = vlaneseq
      %v297 = vshrl.u32 %v296, 7
      %v298 = vsub.s32 0, %v297
      %v299 = vrot.slane %v294, %v298
      %v301 = vmul.f32 %v278, %v299
      %v302 = vmul.f32 %v279, %v299
      %v303 = vmul.f32 %v280, %v299
      %v304 = vmul.f32 %v281, %v299
      %v305 = vmul.f32 %v282, %v299
      %v306 = vmul.f32 %v283, %v299
      %v307 = vmul.f32 %v284, %v299
      %v308 = vmul.f32 %v285, %v299
      %v309 = vmul.f32 %v286, %v299
      %v310 = vmul.f32 %v287, %v299
      %v311 = vmul.f32 %v288, %v299
      %v312 = vmul.f32 %v289, %v299
      %v313 = vmul.f32 %v290, %v299
      %v314 = vmul.f32 %v291, %v299
      %v315 = vmul.f32 %v292, %v299
      %v316 = vmul.f32 %v293, %v299
      %v317 = vld [vmem:[%s3] sm:$0xff]
      %v318 = vld [vmem:[%s3 + $0x8] sm:$0xff]
      %v319 = vld [vmem:[%s3 + $0x10] sm:$0xff]
      %v320 = vld [vmem:[%s3 + $0x18] sm:$0xff]
      %v321 = vld [vmem:[%s4] sm:$0x1]
      %v323 = vlaneseq
      %v324 = vshrl.u32 %v323, 7
      %v325 = vsub.s32 0, %v324
      %v326 = vrot.slane %v321, %v325
      %vm328 = vcmask 261120
      %v330 = vsel %vm328, %v301, 0
      %v333 = vsel %vm328, %v302, 0
      %v336 = vsel %vm328, %v303, 0
      %v339 = vsel %vm328, %v304, 0
      %v342 = vsel %vm328, %v305, 0
      %v345 = vsel %vm328, %v306, 0
      %v348 = vsel %vm328, %v307, 0
      %v351 = vsel %vm328, %v308, 0
      %v354 = vsel %vm328, %v309, 0
      %v357 = vsel %vm328, %v310, 0
      %v360 = vsel %vm328, %v311, 0
      %v363 = vsel %vm328, %v312, 0
      %v366 = vsel %vm328, %v313, 0
      %v369 = vsel %vm328, %v314, 0
      %v372 = vsel %vm328, %v315, 0
      %v375 = vsel %vm328, %v316, 0
      %377 = vmatprep.subr.mxu0 0.0
      %378 = vmatpush1.msra.mxu0 0.0
      %379 = vmatprep.subr.mxu0 0.0
      %380 = vmatpush1.msra.mxu0 0.0
      %381 = vmatprep.subr.mxu0 0.0
      %382 = vmatpush1.msra.mxu0 0.0
      %383 = vmatprep.subr.mxu0 0.0
      %384 = vmatpush1.msra.mxu0 0.0
      %385 = vmatprep.subr.mxu0 0.0
      %386 = vmatpush1.msra.mxu0 0.0
      %387 = vmatprep.subr.mxu0 0.0
      %388 = vmatpush1.msra.mxu0 0.0
      %389 = vmatprep.subr.mxu0 0.0
      %390 = vmatpush1.msra.mxu0 0.0
      %391 = vmatprep.subr.mxu0 0.0
      %392 = vmatpush1.msra.mxu0 0.0
      %393 = vmatprep.subr.mxu0 0.0
      %394 = vmatpush1.msra.mxu0 0.0
      %395 = vmatprep.subr.mxu0 0.0
      %396 = vmatpush1.msra.mxu0 0.0
      %397 = vmatprep.subr.mxu0 0.0
      %398 = vmatpush1.msra.mxu0 0.0
      %399 = vmatprep.subr.mxu0 0.0
      %400 = vmatpush1.msra.mxu0 0.0
      %401 = vmatprep.subr.mxu0 0.0
      %402 = vmatpush1.msra.mxu0 %v320
      %403 = vmatprep.subr.mxu0 0.0
      %404 = vmatpush1.msra.mxu0 %v319
      %405 = vmatprep.subr.mxu0 0.0
      %406 = vmatpush1.msra.mxu0 %v318
      %407 = vmatprep.subr.mxu0 0.0
      %408 = vmatpush1.msra.mxu0 %v317
      %409 = vmatprep.subr.mxu0 0.0
      %410 = vmatpush2.msra.mxu0 0.0
      %411 = vmatprep.subr.mxu0 0.0
      %412 = vmatpush2.msra.mxu0 0.0
      %413 = vmatprep.subr.mxu0 0.0
      %414 = vmatpush2.msra.mxu0 0.0
      %415 = vmatprep.subr.mxu0 0.0
      %416 = vmatpush2.msra.mxu0 0.0
      %417 = vmatprep.subr.mxu0 0.0
      %418 = vmatpush2.msra.mxu0 0.0
      %419 = vmatprep.subr.mxu0 0.0
      %420 = vmatpush2.msra.mxu0 0.0
      %421 = vmatprep.subr.mxu0 0.0
      %422 = vmatpush2.msra.mxu0 0.0
      %423 = vmatprep.subr.mxu0 0.0
      %424 = vmatpush2.msra.mxu0 0.0
      %425 = vmatprep.subr.mxu0 0.0
      %426 = vmatpush2.msra.mxu0 0.0
      %427 = vmatprep.subr.mxu0 0.0
      %428 = vmatpush2.msra.mxu0 0.0
      %429 = vmatprep.subr.mxu0 0.0
      %430 = vmatpush2.msra.mxu0 0.0
      %431 = vmatprep.subr.mxu0 0.0
      %432 = vmatpush2.msra.mxu0 0.0
      %433 = vmatprep.subr.mxu0 0.0
      %434 = vmatpush2.msra.mxu0 0.0
      %435 = vmatprep.subr.mxu0 0.0
      %436 = vmatpush2.msra.mxu0 0.0
      %437 = vmatprep.subr.mxu0 0.0
      %438 = vmatpush2.msra.mxu0 0.0
      %439 = vmatprep.subr.mxu0 0.0
      %440 = vmatpush2.msra.mxu0 0.0
      %441 = vmatprep.mubr.f32.mxu0 0.0
      %442 = vmatmul.mubr.f32.gmra.mxu0 %v330
      %v443 = vpop.f32.mrf.mxu0
      %v444 = vadd.f32 %v326, %v443
      %v445 = vpop.f32.mrf.mxu0
      %446 = vmatprep.mubr.f32.mxu0 0.0
      %447 = vmatmul.mubr.f32.gmra.mxu0 %v333
      %v448 = vpop.f32.mrf.mxu0
      %v449 = vadd.f32 %v326, %v448
      %v450 = vpop.f32.mrf.mxu0
      %451 = vmatprep.mubr.f32.mxu0 0.0
      %452 = vmatmul.mubr.f32.gmra.mxu0 %v336
      %v453 = vpop.f32.mrf.mxu0
      %v454 = vadd.f32 %v326, %v453
      %v455 = vpop.f32.mrf.mxu0
      %456 = vmatprep.mubr.f32.mxu0 0.0
      %457 = vmatmul.mubr.f32.gmra.mxu0 %v339
      %v458 = vpop.f32.mrf.mxu0
      %v459 = vadd.f32 %v326, %v458
      %v460 = vpop.f32.mrf.mxu0
      %461 = vmatprep.mubr.f32.mxu0 0.0
      %462 = vmatmul.mubr.f32.gmra.mxu0 %v342
      %v463 = vpop.f32.mrf.mxu0
      %v464 = vadd.f32 %v326, %v463
      %v465 = vpop.f32.mrf.mxu0
      %466 = vmatprep.mubr.f32.mxu0 0.0
      %467 = vmatmul.mubr.f32.gmra.mxu0 %v345
      %v468 = vpop.f32.mrf.mxu0
      %v469 = vadd.f32 %v326, %v468
      %v470 = vpop.f32.mrf.mxu0
      %471 = vmatprep.mubr.f32.mxu0 0.0
      %472 = vmatmul.mubr.f32.gmra.mxu0 %v348
      %v473 = vpop.f32.mrf.mxu0
      %v474 = vadd.f32 %v326, %v473
      %v475 = vpop.f32.mrf.mxu0
      %476 = vmatprep.mubr.f32.mxu0 0.0
      %477 = vmatmul.mubr.f32.gmra.mxu0 %v351
      %v478 = vpop.f32.mrf.mxu0
      %v479 = vadd.f32 %v326, %v478
      %v480 = vpop.f32.mrf.mxu0
      %481 = vmatprep.mubr.f32.mxu0 0.0
      %482 = vmatmul.mubr.f32.gmra.mxu0 %v354
      %v483 = vpop.f32.mrf.mxu0
      %v484 = vadd.f32 %v326, %v483
      %v485 = vpop.f32.mrf.mxu0
      %486 = vmatprep.mubr.f32.mxu0 0.0
      %487 = vmatmul.mubr.f32.gmra.mxu0 %v357
      %v488 = vpop.f32.mrf.mxu0
      %v489 = vadd.f32 %v326, %v488
      %v490 = vpop.f32.mrf.mxu0
      %491 = vmatprep.mubr.f32.mxu0 0.0
      %492 = vmatmul.mubr.f32.gmra.mxu0 %v360
      %v493 = vpop.f32.mrf.mxu0
      %v494 = vadd.f32 %v326, %v493
      %v495 = vpop.f32.mrf.mxu0
      %496 = vmatprep.mubr.f32.mxu0 0.0
      %497 = vmatmul.mubr.f32.gmra.mxu0 %v363
      %v498 = vpop.f32.mrf.mxu0
      %v499 = vadd.f32 %v326, %v498
      %v500 = vpop.f32.mrf.mxu0
      %501 = vmatprep.mubr.f32.mxu0 0.0
      %502 = vmatmul.mubr.f32.gmra.mxu0 %v366
      %v503 = vpop.f32.mrf.mxu0
      %v504 = vadd.f32 %v326, %v503
      %v505 = vpop.f32.mrf.mxu0
      %506 = vmatprep.mubr.f32.mxu0 0.0
      %507 = vmatmul.mubr.f32.gmra.mxu0 %v369
      %v508 = vpop.f32.mrf.mxu0
      %v509 = vadd.f32 %v326, %v508
      %v510 = vpop.f32.mrf.mxu0
      %511 = vmatprep.mubr.f32.mxu0 0.0
      %512 = vmatmul.mubr.f32.gmra.mxu0 %v372
      %v513 = vpop.f32.mrf.mxu0
      %v514 = vadd.f32 %v326, %v513
      %v515 = vpop.f32.mrf.mxu0
      %516 = vmatprep.mubr.f32.mxu0 0.0
      %517 = vmatmul.mubr.f32.gmra.mxu0 %v375
      %v518 = vpop.f32.mrf.mxu0
      %v519 = vadd.f32 %v326, %v518
      %v520 = vpop.f32.mrf.mxu0
      %521 = vdwg.mxu0
      %v522 = vtanh.pop %v444
      %v523 = vtanh.pop %v449
      %v524 = vtanh.pop %v454
      %v525 = vtanh.pop %v459
      %v526 = vtanh.pop %v464
      %v527 = vtanh.pop %v469
      %v528 = vtanh.pop %v474
      %v529 = vtanh.pop %v479
      %v530 = vtanh.pop %v484
      %v531 = vtanh.pop %v489
      %v532 = vtanh.pop %v494
      %v533 = vtanh.pop %v499
      %v534 = vtanh.pop %v504
      %v535 = vtanh.pop %v509
      %v536 = vtanh.pop %v514
      %v537 = vtanh.pop %v519
      %v538 = vld [vmem:[%s5] sm:$0xff]
      %v539 = vld [vmem:[%s5 + $0x8] sm:$0xff]
      %541 = vset.pattern.permute.xlu0 0
      %542 = vperm.xlu0 %541, %v522
      %v543 = vpop.permute.xlu0 %542
      %546 = vset.pattern.permute.xlu0 0
      %547 = vperm.xlu0 %546, %v523
      %v548 = vpop.permute.xlu0 %547
      %551 = vset.pattern.permute.xlu0 0
      %552 = vperm.xlu0 %551, %v524
      %v553 = vpop.permute.xlu0 %552
      %556 = vset.pattern.permute.xlu0 0
      %557 = vperm.xlu0 %556, %v525
      %v558 = vpop.permute.xlu0 %557
      %561 = vset.pattern.permute.xlu0 0
      %562 = vperm.xlu0 %561, %v526
      %v563 = vpop.permute.xlu0 %562
      %566 = vset.pattern.permute.xlu0 0
      %567 = vperm.xlu0 %566, %v527
      %v568 = vpop.permute.xlu0 %567
      %571 = vset.pattern.permute.xlu0 0
      %572 = vperm.xlu0 %571, %v528
      %v573 = vpop.permute.xlu0 %572
      %576 = vset.pattern.permute.xlu0 0
      %577 = vperm.xlu0 %576, %v529
      %v578 = vpop.permute.xlu0 %577
      %581 = vset.pattern.permute.xlu0 0
      %582 = vperm.xlu0 %581, %v530
      %v583 = vpop.permute.xlu0 %582
      %586 = vset.pattern.permute.xlu0 0
      %587 = vperm.xlu0 %586, %v531
      %v588 = vpop.permute.xlu0 %587
      %591 = vset.pattern.permute.xlu0 0
      %592 = vperm.xlu0 %591, %v532
      %v593 = vpop.permute.xlu0 %592
      %596 = vset.pattern.permute.xlu0 0
      %597 = vperm.xlu0 %596, %v533
      %v598 = vpop.permute.xlu0 %597
      %601 = vset.pattern.permute.xlu0 0
      %602 = vperm.xlu0 %601, %v534
      %v603 = vpop.permute.xlu0 %602
      %606 = vset.pattern.permute.xlu0 0
      %607 = vperm.xlu0 %606, %v535
      %v608 = vpop.permute.xlu0 %607
      %611 = vset.pattern.permute.xlu0 0
      %612 = vperm.xlu0 %611, %v536
      %v613 = vpop.permute.xlu0 %612
      %616 = vset.pattern.permute.xlu0 0
      %617 = vperm.xlu0 %616, %v537
      %v618 = vpop.permute.xlu0 %617
      %v620 = vlaneseq
      %v621 = vshrl.u32 %v620, 7
      %v622 = vsub.s32 0, %v621
      %v623 = vrot.slane %v538, %v622
      %v624 = vsub.f32 %v543, %v623
      %v625 = vsub.f32 %v548, %v623
      %v626 = vsub.f32 %v553, %v623
      %v627 = vsub.f32 %v558, %v623
      %v628 = vsub.f32 %v563, %v623
      %v629 = vsub.f32 %v568, %v623
      %v630 = vsub.f32 %v573, %v623
      %v631 = vsub.f32 %v578, %v623
      %v632 = vsub.f32 %v583, %v623
      %v633 = vsub.f32 %v588, %v623
      %v634 = vsub.f32 %v593, %v623
      %v635 = vsub.f32 %v598, %v623
      %v636 = vsub.f32 %v603, %v623
      %v637 = vsub.f32 %v608, %v623
      %v638 = vsub.f32 %v613, %v623
      %v639 = vsub.f32 %v618, %v623
      %v640 = vand.u32 2147483647, %v624
      %v641 = vand.u32 2147483647, %v625
      %v642 = vand.u32 2147483647, %v626
      %v643 = vand.u32 2147483647, %v627
      %v644 = vand.u32 2147483647, %v628
      %v645 = vand.u32 2147483647, %v629
      %v646 = vand.u32 2147483647, %v630
      %v647 = vand.u32 2147483647, %v631
      %v648 = vand.u32 2147483647, %v632
      %v649 = vand.u32 2147483647, %v633
      %v650 = vand.u32 2147483647, %v634
      %v651 = vand.u32 2147483647, %v635
      %v652 = vand.u32 2147483647, %v636
      %v653 = vand.u32 2147483647, %v637
      %v654 = vand.u32 2147483647, %v638
      %v655 = vand.u32 2147483647, %v639
      %656 = vset.pattern.permute.xlu0 1
      %657 = vperm.xlu0 %656, %v522
      %v658 = vpop.permute.xlu0 %657
      %660 = vset.pattern.permute.xlu0 1
      %661 = vperm.xlu0 %660, %v523
      %v662 = vpop.permute.xlu0 %661
      %664 = vset.pattern.permute.xlu0 1
      %665 = vperm.xlu0 %664, %v524
      %v666 = vpop.permute.xlu0 %665
      %668 = vset.pattern.permute.xlu0 1
      %669 = vperm.xlu0 %668, %v525
      %v670 = vpop.permute.xlu0 %669
      %672 = vset.pattern.permute.xlu0 1
      %673 = vperm.xlu0 %672, %v526
      %v674 = vpop.permute.xlu0 %673
      %676 = vset.pattern.permute.xlu0 1
      %677 = vperm.xlu0 %676, %v527
      %v678 = vpop.permute.xlu0 %677
      %680 = vset.pattern.permute.xlu0 1
      %681 = vperm.xlu0 %680, %v528
      %v682 = vpop.permute.xlu0 %681
      %684 = vset.pattern.permute.xlu0 1
      %685 = vperm.xlu0 %684, %v529
      %v686 = vpop.permute.xlu0 %685
      %688 = vset.pattern.permute.xlu0 1
      %689 = vperm.xlu0 %688, %v530
      %v690 = vpop.permute.xlu0 %689
      %692 = vset.pattern.permute.xlu0 1
      %693 = vperm.xlu0 %692, %v531
      %v694 = vpop.permute.xlu0 %693
      %696 = vset.pattern.permute.xlu0 1
      %697 = vperm.xlu0 %696, %v532
      %v698 = vpop.permute.xlu0 %697
      %700 = vset.pattern.permute.xlu0 1
      %701 = vperm.xlu0 %700, %v533
      %v702 = vpop.permute.xlu0 %701
      %704 = vset.pattern.permute.xlu0 1
      %705 = vperm.xlu0 %704, %v534
      %v706 = vpop.permute.xlu0 %705
      %708 = vset.pattern.permute.xlu0 1
      %709 = vperm.xlu0 %708, %v535
      %v710 = vpop.permute.xlu0 %709
      %712 = vset.pattern.permute.xlu0 1
      %713 = vperm.xlu0 %712, %v536
      %v714 = vpop.permute.xlu0 %713
      %716 = vset.pattern.permute.xlu0 1
      %717 = vperm.xlu0 %716, %v537
      %v718 = vpop.permute.xlu0 %717
      %v720 = vlaneseq
      %v721 = vshrl.u32 %v720, 7
      %v722 = vsub.s32 1, %v721
      %v723 = vrot.slane %v538, %v722
      %v724 = vsub.f32 %v658, %v723
      %v725 = vsub.f32 %v662, %v723
      %v726 = vsub.f32 %v666, %v723
      %v727 = vsub.f32 %v670, %v723
      %v728 = vsub.f32 %v674, %v723
      %v729 = vsub.f32 %v678, %v723
      %v730 = vsub.f32 %v682, %v723
      %v731 = vsub.f32 %v686, %v723
      %v732 = vsub.f32 %v690, %v723
      %v733 = vsub.f32 %v694, %v723
      %v734 = vsub.f32 %v698, %v723
      %v735 = vsub.f32 %v702, %v723
      %v736 = vsub.f32 %v706, %v723
      %v737 = vsub.f32 %v710, %v723
      %v738 = vsub.f32 %v714, %v723
      %v739 = vsub.f32 %v718, %v723
      %v740 = vand.u32 2147483647, %v724
      %v741 = vand.u32 2147483647, %v725
      %v742 = vand.u32 2147483647, %v726
      %v743 = vand.u32 2147483647, %v727
      %v744 = vand.u32 2147483647, %v728
      %v745 = vand.u32 2147483647, %v729
      %v746 = vand.u32 2147483647, %v730
      %v747 = vand.u32 2147483647, %v731
      %v748 = vand.u32 2147483647, %v732
      %v749 = vand.u32 2147483647, %v733
      %v750 = vand.u32 2147483647, %v734
      %v751 = vand.u32 2147483647, %v735
      %v752 = vand.u32 2147483647, %v736
      %v753 = vand.u32 2147483647, %v737
      %v754 = vand.u32 2147483647, %v738
      %v755 = vand.u32 2147483647, %v739
      %v756 = vadd.f32 %v640, %v740
      %v757 = vadd.f32 %v641, %v741
      %v758 = vadd.f32 %v642, %v742
      %v759 = vadd.f32 %v643, %v743
      %v760 = vadd.f32 %v644, %v744
      %v761 = vadd.f32 %v645, %v745
      %v762 = vadd.f32 %v646, %v746
      %v763 = vadd.f32 %v647, %v747
      %v764 = vadd.f32 %v648, %v748
      %v765 = vadd.f32 %v649, %v749
      %v766 = vadd.f32 %v650, %v750
      %v767 = vadd.f32 %v651, %v751
      %v768 = vadd.f32 %v652, %v752
      %v769 = vadd.f32 %v653, %v753
      %v770 = vadd.f32 %v654, %v754
      %v771 = vadd.f32 %v655, %v755
      %772 = vset.pattern.permute.xlu0 2
      %773 = vperm.xlu0 %772, %v522
      %v774 = vpop.permute.xlu0 %773
      %776 = vset.pattern.permute.xlu0 2
      %777 = vperm.xlu0 %776, %v523
      %v778 = vpop.permute.xlu0 %777
      %780 = vset.pattern.permute.xlu0 2
      %781 = vperm.xlu0 %780, %v524
      %v782 = vpop.permute.xlu0 %781
      %784 = vset.pattern.permute.xlu0 2
      %785 = vperm.xlu0 %784, %v525
      %v786 = vpop.permute.xlu0 %785
      %788 = vset.pattern.permute.xlu0 2
      %789 = vperm.xlu0 %788, %v526
      %v790 = vpop.permute.xlu0 %789
      %792 = vset.pattern.permute.xlu0 2
      %793 = vperm.xlu0 %792, %v527
      %v794 = vpop.permute.xlu0 %793
      %796 = vset.pattern.permute.xlu0 2
      %797 = vperm.xlu0 %796, %v528
      %v798 = vpop.permute.xlu0 %797
      %800 = vset.pattern.permute.xlu0 2
      %801 = vperm.xlu0 %800, %v529
      %v802 = vpop.permute.xlu0 %801
      %804 = vset.pattern.permute.xlu0 2
      %805 = vperm.xlu0 %804, %v530
      %v806 = vpop.permute.xlu0 %805
      %808 = vset.pattern.permute.xlu0 2
      %809 = vperm.xlu0 %808, %v531
      %v810 = vpop.permute.xlu0 %809
      %812 = vset.pattern.permute.xlu0 2
      %813 = vperm.xlu0 %812, %v532
      %v814 = vpop.permute.xlu0 %813
      %816 = vset.pattern.permute.xlu0 2
      %817 = vperm.xlu0 %816, %v533
      %v818 = vpop.permute.xlu0 %817
      %820 = vset.pattern.permute.xlu0 2
      %821 = vperm.xlu0 %820, %v534
      %v822 = vpop.permute.xlu0 %821
      %824 = vset.pattern.permute.xlu0 2
      %825 = vperm.xlu0 %824, %v535
      %v826 = vpop.permute.xlu0 %825
      %828 = vset.pattern.permute.xlu0 2
      %829 = vperm.xlu0 %828, %v536
      %v830 = vpop.permute.xlu0 %829
      %832 = vset.pattern.permute.xlu0 2
      %833 = vperm.xlu0 %832, %v537
      %v834 = vpop.permute.xlu0 %833
      %v836 = vlaneseq
      %v837 = vshrl.u32 %v836, 7
      %v838 = vsub.s32 2, %v837
      %v839 = vrot.slane %v538, %v838
      %v840 = vsub.f32 %v774, %v839
      %v841 = vsub.f32 %v778, %v839
      %v842 = vsub.f32 %v782, %v839
      %v843 = vsub.f32 %v786, %v839
      %v844 = vsub.f32 %v790, %v839
      %v845 = vsub.f32 %v794, %v839
      %v846 = vsub.f32 %v798, %v839
      %v847 = vsub.f32 %v802, %v839
      %v848 = vsub.f32 %v806, %v839
      %v849 = vsub.f32 %v810, %v839
      %v850 = vsub.f32 %v814, %v839
      %v851 = vsub.f32 %v818, %v839
      %v852 = vsub.f32 %v822, %v839
      %v853 = vsub.f32 %v826, %v839
      %v854 = vsub.f32 %v830, %v839
      %v855 = vsub.f32 %v834, %v839
      %v856 = vand.u32 2147483647, %v840
      %v857 = vand.u32 2147483647, %v841
      %v858 = vand.u32 2147483647, %v842
      %v859 = vand.u32 2147483647, %v843
      %v860 = vand.u32 2147483647, %v844
      %v861 = vand.u32 2147483647, %v845
      %v862 = vand.u32 2147483647, %v846
      %v863 = vand.u32 2147483647, %v847
      %v864 = vand.u32 2147483647, %v848
      %v865 = vand.u32 2147483647, %v849
      %v866 = vand.u32 2147483647, %v850
      %v867 = vand.u32 2147483647, %v851
      %v868 = vand.u32 2147483647, %v852
      %v869 = vand.u32 2147483647, %v853
      %v870 = vand.u32 2147483647, %v854
      %v871 = vand.u32 2147483647, %v855
      %v872 = vadd.f32 %v756, %v856
      %v873 = vadd.f32 %v757, %v857
      %v874 = vadd.f32 %v758, %v858
      %v875 = vadd.f32 %v759, %v859
      %v876 = vadd.f32 %v760, %v860
      %v877 = vadd.f32 %v761, %v861
      %v878 = vadd.f32 %v762, %v862
      %v879 = vadd.f32 %v763, %v863
      %v880 = vadd.f32 %v764, %v864
      %v881 = vadd.f32 %v765, %v865
      %v882 = vadd.f32 %v766, %v866
      %v883 = vadd.f32 %v767, %v867
      %v884 = vadd.f32 %v768, %v868
      %v885 = vadd.f32 %v769, %v869
      %v886 = vadd.f32 %v770, %v870
      %v887 = vadd.f32 %v771, %v871
      %888 = vset.pattern.permute.xlu0 3
      %889 = vperm.xlu0 %888, %v522
      %v890 = vpop.permute.xlu0 %889
      %892 = vset.pattern.permute.xlu0 3
      %893 = vperm.xlu0 %892, %v523
      %v894 = vpop.permute.xlu0 %893
      %896 = vset.pattern.permute.xlu0 3
      %897 = vperm.xlu0 %896, %v524
      %v898 = vpop.permute.xlu0 %897
      %900 = vset.pattern.permute.xlu0 3
      %901 = vperm.xlu0 %900, %v525
      %v902 = vpop.permute.xlu0 %901
      %904 = vset.pattern.permute.xlu0 3
      %905 = vperm.xlu0 %904, %v526
      %v906 = vpop.permute.xlu0 %905
      %908 = vset.pattern.permute.xlu0 3
      %909 = vperm.xlu0 %908, %v527
      %v910 = vpop.permute.xlu0 %909
      %912 = vset.pattern.permute.xlu0 3
      %913 = vperm.xlu0 %912, %v528
      %v914 = vpop.permute.xlu0 %913
      %916 = vset.pattern.permute.xlu0 3
      %917 = vperm.xlu0 %916, %v529
      %v918 = vpop.permute.xlu0 %917
      %920 = vset.pattern.permute.xlu0 3
      %921 = vperm.xlu0 %920, %v530
      %v922 = vpop.permute.xlu0 %921
      %924 = vset.pattern.permute.xlu0 3
      %925 = vperm.xlu0 %924, %v531
      %v926 = vpop.permute.xlu0 %925
      %928 = vset.pattern.permute.xlu0 3
      %929 = vperm.xlu0 %928, %v532
      %v930 = vpop.permute.xlu0 %929
      %932 = vset.pattern.permute.xlu0 3
      %933 = vperm.xlu0 %932, %v533
      %v934 = vpop.permute.xlu0 %933
      %936 = vset.pattern.permute.xlu0 3
      %937 = vperm.xlu0 %936, %v534
      %v938 = vpop.permute.xlu0 %937
      %940 = vset.pattern.permute.xlu0 3
      %941 = vperm.xlu0 %940, %v535
      %v942 = vpop.permute.xlu0 %941
      %944 = vset.pattern.permute.xlu0 3
      %945 = vperm.xlu0 %944, %v536
      %v946 = vpop.permute.xlu0 %945
      %948 = vset.pattern.permute.xlu0 3
      %949 = vperm.xlu0 %948, %v537
      %v950 = vpop.permute.xlu0 %949
      %v952 = vlaneseq
      %v953 = vshrl.u32 %v952, 7
      %v954 = vsub.s32 3, %v953
      %v955 = vrot.slane %v538, %v954
      %v956 = vsub.f32 %v890, %v955
      %v957 = vsub.f32 %v894, %v955
      %v958 = vsub.f32 %v898, %v955
      %v959 = vsub.f32 %v902, %v955
      %v960 = vsub.f32 %v906, %v955
      %v961 = vsub.f32 %v910, %v955
      %v962 = vsub.f32 %v914, %v955
      %v963 = vsub.f32 %v918, %v955
      %v964 = vsub.f32 %v922, %v955
      %v965 = vsub.f32 %v926, %v955
      %v966 = vsub.f32 %v930, %v955
      %v967 = vsub.f32 %v934, %v955
      %v968 = vsub.f32 %v938, %v955
      %v969 = vsub.f32 %v942, %v955
      %v970 = vsub.f32 %v946, %v955
      %v971 = vsub.f32 %v950, %v955
      %v972 = vand.u32 2147483647, %v956
      %v973 = vand.u32 2147483647, %v957
      %v974 = vand.u32 2147483647, %v958
      %v975 = vand.u32 2147483647, %v959
      %v976 = vand.u32 2147483647, %v960
      %v977 = vand.u32 2147483647, %v961
      %v978 = vand.u32 2147483647, %v962
      %v979 = vand.u32 2147483647, %v963
      %v980 = vand.u32 2147483647, %v964
      %v981 = vand.u32 2147483647, %v965
      %v982 = vand.u32 2147483647, %v966
      %v983 = vand.u32 2147483647, %v967
      %v984 = vand.u32 2147483647, %v968
      %v985 = vand.u32 2147483647, %v969
      %v986 = vand.u32 2147483647, %v970
      %v987 = vand.u32 2147483647, %v971
      %v988 = vadd.f32 %v872, %v972
      %v989 = vadd.f32 %v873, %v973
      %v990 = vadd.f32 %v874, %v974
      %v991 = vadd.f32 %v875, %v975
      %v992 = vadd.f32 %v876, %v976
      %v993 = vadd.f32 %v877, %v977
      %v994 = vadd.f32 %v878, %v978
      %v995 = vadd.f32 %v879, %v979
      %v996 = vadd.f32 %v880, %v980
      %v997 = vadd.f32 %v881, %v981
      %v998 = vadd.f32 %v882, %v982
      %v999 = vadd.f32 %v883, %v983
      %v1000 = vadd.f32 %v884, %v984
      %v1001 = vadd.f32 %v885, %v985
      %v1002 = vadd.f32 %v886, %v986
      %v1003 = vadd.f32 %v887, %v987
      %1004 = vset.pattern.permute.xlu0 4
      %1005 = vperm.xlu0 %1004, %v522
      %v1006 = vpop.permute.xlu0 %1005
      %1008 = vset.pattern.permute.xlu0 4
      %1009 = vperm.xlu0 %1008, %v523
      %v1010 = vpop.permute.xlu0 %1009
      %1012 = vset.pattern.permute.xlu0 4
      %1013 = vperm.xlu0 %1012, %v524
      %v1014 = vpop.permute.xlu0 %1013
      %1016 = vset.pattern.permute.xlu0 4
      %1017 = vperm.xlu0 %1016, %v525
      %v1018 = vpop.permute.xlu0 %1017
      %1020 = vset.pattern.permute.xlu0 4
      %1021 = vperm.xlu0 %1020, %v526
      %v1022 = vpop.permute.xlu0 %1021
      %1024 = vset.pattern.permute.xlu0 4
      %1025 = vperm.xlu0 %1024, %v527
      %v1026 = vpop.permute.xlu0 %1025
      %1028 = vset.pattern.permute.xlu0 4
      %1029 = vperm.xlu0 %1028, %v528
      %v1030 = vpop.permute.xlu0 %1029
      %1032 = vset.pattern.permute.xlu0 4
      %1033 = vperm.xlu0 %1032, %v529
      %v1034 = vpop.permute.xlu0 %1033
      %1036 = vset.pattern.permute.xlu0 4
      %1037 = vperm.xlu0 %1036, %v530
      %v1038 = vpop.permute.xlu0 %1037
      %1040 = vset.pattern.permute.xlu0 4
      %1041 = vperm.xlu0 %1040, %v531
      %v1042 = vpop.permute.xlu0 %1041
      %1044 = vset.pattern.permute.xlu0 4
      %1045 = vperm.xlu0 %1044, %v532
      %v1046 = vpop.permute.xlu0 %1045
      %1048 = vset.pattern.permute.xlu0 4
      %1049 = vperm.xlu0 %1048, %v533
      %v1050 = vpop.permute.xlu0 %1049
      %1052 = vset.pattern.permute.xlu0 4
      %1053 = vperm.xlu0 %1052, %v534
      %v1054 = vpop.permute.xlu0 %1053
      %1056 = vset.pattern.permute.xlu0 4
      %1057 = vperm.xlu0 %1056, %v535
      %v1058 = vpop.permute.xlu0 %1057
      %1060 = vset.pattern.permute.xlu0 4
      %1061 = vperm.xlu0 %1060, %v536
      %v1062 = vpop.permute.xlu0 %1061
      %1064 = vset.pattern.permute.xlu0 4
      %1065 = vperm.xlu0 %1064, %v537
      %v1066 = vpop.permute.xlu0 %1065
      %v1068 = vlaneseq
      %v1069 = vshrl.u32 %v1068, 7
      %v1070 = vsub.s32 4, %v1069
      %v1071 = vrot.slane %v538, %v1070
      %v1072 = vsub.f32 %v1006, %v1071
      %v1073 = vsub.f32 %v1010, %v1071
      %v1074 = vsub.f32 %v1014, %v1071
      %v1075 = vsub.f32 %v1018, %v1071
      %v1076 = vsub.f32 %v1022, %v1071
      %v1077 = vsub.f32 %v1026, %v1071
      %v1078 = vsub.f32 %v1030, %v1071
      %v1079 = vsub.f32 %v1034, %v1071
      %v1080 = vsub.f32 %v1038, %v1071
      %v1081 = vsub.f32 %v1042, %v1071
      %v1082 = vsub.f32 %v1046, %v1071
      %v1083 = vsub.f32 %v1050, %v1071
      %v1084 = vsub.f32 %v1054, %v1071
      %v1085 = vsub.f32 %v1058, %v1071
      %v1086 = vsub.f32 %v1062, %v1071
      %v1087 = vsub.f32 %v1066, %v1071
      %v1088 = vand.u32 2147483647, %v1072
      %v1089 = vand.u32 2147483647, %v1073
      %v1090 = vand.u32 2147483647, %v1074
      %v1091 = vand.u32 2147483647, %v1075
      %v1092 = vand.u32 2147483647, %v1076
      %v1093 = vand.u32 2147483647, %v1077
      %v1094 = vand.u32 2147483647, %v1078
      %v1095 = vand.u32 2147483647, %v1079
      %v1096 = vand.u32 2147483647, %v1080
      %v1097 = vand.u32 2147483647, %v1081
      %v1098 = vand.u32 2147483647, %v1082
      %v1099 = vand.u32 2147483647, %v1083
      %v1100 = vand.u32 2147483647, %v1084
      %v1101 = vand.u32 2147483647, %v1085
      %v1102 = vand.u32 2147483647, %v1086
      %v1103 = vand.u32 2147483647, %v1087
      %v1104 = vadd.f32 %v988, %v1088
      %v1105 = vadd.f32 %v989, %v1089
      %v1106 = vadd.f32 %v990, %v1090
      %v1107 = vadd.f32 %v991, %v1091
      %v1108 = vadd.f32 %v992, %v1092
      %v1109 = vadd.f32 %v993, %v1093
      %v1110 = vadd.f32 %v994, %v1094
      %v1111 = vadd.f32 %v995, %v1095
      %v1112 = vadd.f32 %v996, %v1096
      %v1113 = vadd.f32 %v997, %v1097
      %v1114 = vadd.f32 %v998, %v1098
      %v1115 = vadd.f32 %v999, %v1099
      %v1116 = vadd.f32 %v1000, %v1100
      %v1117 = vadd.f32 %v1001, %v1101
      %v1118 = vadd.f32 %v1002, %v1102
      %v1119 = vadd.f32 %v1003, %v1103
      %1120 = vset.pattern.permute.xlu0 5
      %1121 = vperm.xlu0 %1120, %v522
      %v1122 = vpop.permute.xlu0 %1121
      %1124 = vset.pattern.permute.xlu0 5
      %1125 = vperm.xlu0 %1124, %v523
      %v1126 = vpop.permute.xlu0 %1125
      %1128 = vset.pattern.permute.xlu0 5
      %1129 = vperm.xlu0 %1128, %v524
      %v1130 = vpop.permute.xlu0 %1129
      %1132 = vset.pattern.permute.xlu0 5
      %1133 = vperm.xlu0 %1132, %v525
      %v1134 = vpop.permute.xlu0 %1133
      %1136 = vset.pattern.permute.xlu0 5
      %1137 = vperm.xlu0 %1136, %v526
      %v1138 = vpop.permute.xlu0 %1137
      %1140 = vset.pattern.permute.xlu0 5
      %1141 = vperm.xlu0 %1140, %v527
      %v1142 = vpop.permute.xlu0 %1141
      %1144 = vset.pattern.permute.xlu0 5
      %1145 = vperm.xlu0 %1144, %v528
      %v1146 = vpop.permute.xlu0 %1145
      %1148 = vset.pattern.permute.xlu0 5
      %1149 = vperm.xlu0 %1148, %v529
      %v1150 = vpop.permute.xlu0 %1149
      %1152 = vset.pattern.permute.xlu0 5
      %1153 = vperm.xlu0 %1152, %v530
      %v1154 = vpop.permute.xlu0 %1153
      %1156 = vset.pattern.permute.xlu0 5
      %1157 = vperm.xlu0 %1156, %v531
      %v1158 = vpop.permute.xlu0 %1157
      %1160 = vset.pattern.permute.xlu0 5
      %1161 = vperm.xlu0 %1160, %v532
      %v1162 = vpop.permute.xlu0 %1161
      %1164 = vset.pattern.permute.xlu0 5
      %1165 = vperm.xlu0 %1164, %v533
      %v1166 = vpop.permute.xlu0 %1165
      %1168 = vset.pattern.permute.xlu0 5
      %1169 = vperm.xlu0 %1168, %v534
      %v1170 = vpop.permute.xlu0 %1169
      %1172 = vset.pattern.permute.xlu0 5
      %1173 = vperm.xlu0 %1172, %v535
      %v1174 = vpop.permute.xlu0 %1173
      %1176 = vset.pattern.permute.xlu0 5
      %1177 = vperm.xlu0 %1176, %v536
      %v1178 = vpop.permute.xlu0 %1177
      %1180 = vset.pattern.permute.xlu0 5
      %1181 = vperm.xlu0 %1180, %v537
      %v1182 = vpop.permute.xlu0 %1181
      %v1184 = vlaneseq
      %v1185 = vshrl.u32 %v1184, 7
      %v1186 = vsub.s32 5, %v1185
      %v1187 = vrot.slane %v538, %v1186
      %v1188 = vsub.f32 %v1122, %v1187
      %v1189 = vsub.f32 %v1126, %v1187
      %v1190 = vsub.f32 %v1130, %v1187
      %v1191 = vsub.f32 %v1134, %v1187
      %v1192 = vsub.f32 %v1138, %v1187
      %v1193 = vsub.f32 %v1142, %v1187
      %v1194 = vsub.f32 %v1146, %v1187
      %v1195 = vsub.f32 %v1150, %v1187
      %v1196 = vsub.f32 %v1154, %v1187
      %v1197 = vsub.f32 %v1158, %v1187
      %v1198 = vsub.f32 %v1162, %v1187
      %v1199 = vsub.f32 %v1166, %v1187
      %v1200 = vsub.f32 %v1170, %v1187
      %v1201 = vsub.f32 %v1174, %v1187
      %v1202 = vsub.f32 %v1178, %v1187
      %v1203 = vsub.f32 %v1182, %v1187
      %v1204 = vand.u32 2147483647, %v1188
      %v1205 = vand.u32 2147483647, %v1189
      %v1206 = vand.u32 2147483647, %v1190
      %v1207 = vand.u32 2147483647, %v1191
      %v1208 = vand.u32 2147483647, %v1192
      %v1209 = vand.u32 2147483647, %v1193
      %v1210 = vand.u32 2147483647, %v1194
      %v1211 = vand.u32 2147483647, %v1195
      %v1212 = vand.u32 2147483647, %v1196
      %v1213 = vand.u32 2147483647, %v1197
      %v1214 = vand.u32 2147483647, %v1198
      %v1215 = vand.u32 2147483647, %v1199
      %v1216 = vand.u32 2147483647, %v1200
      %v1217 = vand.u32 2147483647, %v1201
      %v1218 = vand.u32 2147483647, %v1202
      %v1219 = vand.u32 2147483647, %v1203
      %v1220 = vadd.f32 %v1104, %v1204
      %v1221 = vadd.f32 %v1105, %v1205
      %v1222 = vadd.f32 %v1106, %v1206
      %v1223 = vadd.f32 %v1107, %v1207
      %v1224 = vadd.f32 %v1108, %v1208
      %v1225 = vadd.f32 %v1109, %v1209
      %v1226 = vadd.f32 %v1110, %v1210
      %v1227 = vadd.f32 %v1111, %v1211
      %v1228 = vadd.f32 %v1112, %v1212
      %v1229 = vadd.f32 %v1113, %v1213
      %v1230 = vadd.f32 %v1114, %v1214
      %v1231 = vadd.f32 %v1115, %v1215
      %v1232 = vadd.f32 %v1116, %v1216
      %v1233 = vadd.f32 %v1117, %v1217
      %v1234 = vadd.f32 %v1118, %v1218
      %v1235 = vadd.f32 %v1119, %v1219
      %1236 = vset.pattern.permute.xlu0 6
      %1237 = vperm.xlu0 %1236, %v522
      %v1238 = vpop.permute.xlu0 %1237
      %1240 = vset.pattern.permute.xlu0 6
      %1241 = vperm.xlu0 %1240, %v523
      %v1242 = vpop.permute.xlu0 %1241
      %1244 = vset.pattern.permute.xlu0 6
      %1245 = vperm.xlu0 %1244, %v524
      %v1246 = vpop.permute.xlu0 %1245
      %1248 = vset.pattern.permute.xlu0 6
      %1249 = vperm.xlu0 %1248, %v525
      %v1250 = vpop.permute.xlu0 %1249
      %1252 = vset.pattern.permute.xlu0 6
      %1253 = vperm.xlu0 %1252, %v526
      %v1254 = vpop.permute.xlu0 %1253
      %1256 = vset.pattern.permute.xlu0 6
      %1257 = vperm.xlu0 %1256, %v527
      %v1258 = vpop.permute.xlu0 %1257
      %1260 = vset.pattern.permute.xlu0 6
      %1261 = vperm.xlu0 %1260, %v528
      %v1262 = vpop.permute.xlu0 %1261
      %1264 = vset.pattern.permute.xlu0 6
      %1265 = vperm.xlu0 %1264, %v529
      %v1266 = vpop.permute.xlu0 %1265
      %1268 = vset.pattern.permute.xlu0 6
      %1269 = vperm.xlu0 %1268, %v530
      %v1270 = vpop.permute.xlu0 %1269
      %1272 = vset.pattern.permute.xlu0 6
      %1273 = vperm.xlu0 %1272, %v531
      %v1274 = vpop.permute.xlu0 %1273
      %1276 = vset.pattern.permute.xlu0 6
      %1277 = vperm.xlu0 %1276, %v532
      %v1278 = vpop.permute.xlu0 %1277
      %1280 = vset.pattern.permute.xlu0 6
      %1281 = vperm.xlu0 %1280, %v533
      %v1282 = vpop.permute.xlu0 %1281
      %1284 = vset.pattern.permute.xlu0 6
      %1285 = vperm.xlu0 %1284, %v534
      %v1286 = vpop.permute.xlu0 %1285
      %1288 = vset.pattern.permute.xlu0 6
      %1289 = vperm.xlu0 %1288, %v535
      %v1290 = vpop.permute.xlu0 %1289
      %1292 = vset.pattern.permute.xlu0 6
      %1293 = vperm.xlu0 %1292, %v536
      %v1294 = vpop.permute.xlu0 %1293
      %1296 = vset.pattern.permute.xlu0 6
      %1297 = vperm.xlu0 %1296, %v537
      %v1298 = vpop.permute.xlu0 %1297
      %v1300 = vlaneseq
      %v1301 = vshrl.u32 %v1300, 7
      %v1302 = vsub.s32 6, %v1301
      %v1303 = vrot.slane %v538, %v1302
      %v1304 = vsub.f32 %v1238, %v1303
      %v1305 = vsub.f32 %v1242, %v1303
      %v1306 = vsub.f32 %v1246, %v1303
      %v1307 = vsub.f32 %v1250, %v1303
      %v1308 = vsub.f32 %v1254, %v1303
      %v1309 = vsub.f32 %v1258, %v1303
      %v1310 = vsub.f32 %v1262, %v1303
      %v1311 = vsub.f32 %v1266, %v1303
      %v1312 = vsub.f32 %v1270, %v1303
      %v1313 = vsub.f32 %v1274, %v1303
      %v1314 = vsub.f32 %v1278, %v1303
      %v1315 = vsub.f32 %v1282, %v1303
      %v1316 = vsub.f32 %v1286, %v1303
      %v1317 = vsub.f32 %v1290, %v1303
      %v1318 = vsub.f32 %v1294, %v1303
      %v1319 = vsub.f32 %v1298, %v1303
      %v1320 = vand.u32 2147483647, %v1304
      %v1321 = vand.u32 2147483647, %v1305
      %v1322 = vand.u32 2147483647, %v1306
      %v1323 = vand.u32 2147483647, %v1307
      %v1324 = vand.u32 2147483647, %v1308
      %v1325 = vand.u32 2147483647, %v1309
      %v1326 = vand.u32 2147483647, %v1310
      %v1327 = vand.u32 2147483647, %v1311
      %v1328 = vand.u32 2147483647, %v1312
      %v1329 = vand.u32 2147483647, %v1313
      %v1330 = vand.u32 2147483647, %v1314
      %v1331 = vand.u32 2147483647, %v1315
      %v1332 = vand.u32 2147483647, %v1316
      %v1333 = vand.u32 2147483647, %v1317
      %v1334 = vand.u32 2147483647, %v1318
      %v1335 = vand.u32 2147483647, %v1319
      %v1336 = vadd.f32 %v1220, %v1320
      %v1337 = vadd.f32 %v1221, %v1321
      %v1338 = vadd.f32 %v1222, %v1322
      %v1339 = vadd.f32 %v1223, %v1323
      %v1340 = vadd.f32 %v1224, %v1324
      %v1341 = vadd.f32 %v1225, %v1325
      %v1342 = vadd.f32 %v1226, %v1326
      %v1343 = vadd.f32 %v1227, %v1327
      %v1344 = vadd.f32 %v1228, %v1328
      %v1345 = vadd.f32 %v1229, %v1329
      %v1346 = vadd.f32 %v1230, %v1330
      %v1347 = vadd.f32 %v1231, %v1331
      %v1348 = vadd.f32 %v1232, %v1332
      %v1349 = vadd.f32 %v1233, %v1333
      %v1350 = vadd.f32 %v1234, %v1334
      %v1351 = vadd.f32 %v1235, %v1335
      %1352 = vset.pattern.permute.xlu0 7
      %1353 = vperm.xlu0 %1352, %v522
      %v1354 = vpop.permute.xlu0 %1353
      %1356 = vset.pattern.permute.xlu0 7
      %1357 = vperm.xlu0 %1356, %v523
      %v1358 = vpop.permute.xlu0 %1357
      %1360 = vset.pattern.permute.xlu0 7
      %1361 = vperm.xlu0 %1360, %v524
      %v1362 = vpop.permute.xlu0 %1361
      %1364 = vset.pattern.permute.xlu0 7
      %1365 = vperm.xlu0 %1364, %v525
      %v1366 = vpop.permute.xlu0 %1365
      %1368 = vset.pattern.permute.xlu0 7
      %1369 = vperm.xlu0 %1368, %v526
      %v1370 = vpop.permute.xlu0 %1369
      %1372 = vset.pattern.permute.xlu0 7
      %1373 = vperm.xlu0 %1372, %v527
      %v1374 = vpop.permute.xlu0 %1373
      %1376 = vset.pattern.permute.xlu0 7
      %1377 = vperm.xlu0 %1376, %v528
      %v1378 = vpop.permute.xlu0 %1377
      %1380 = vset.pattern.permute.xlu0 7
      %1381 = vperm.xlu0 %1380, %v529
      %v1382 = vpop.permute.xlu0 %1381
      %1384 = vset.pattern.permute.xlu0 7
      %1385 = vperm.xlu0 %1384, %v530
      %v1386 = vpop.permute.xlu0 %1385
      %1388 = vset.pattern.permute.xlu0 7
      %1389 = vperm.xlu0 %1388, %v531
      %v1390 = vpop.permute.xlu0 %1389
      %1392 = vset.pattern.permute.xlu0 7
      %1393 = vperm.xlu0 %1392, %v532
      %v1394 = vpop.permute.xlu0 %1393
      %1396 = vset.pattern.permute.xlu0 7
      %1397 = vperm.xlu0 %1396, %v533
      %v1398 = vpop.permute.xlu0 %1397
      %1400 = vset.pattern.permute.xlu0 7
      %1401 = vperm.xlu0 %1400, %v534
      %v1402 = vpop.permute.xlu0 %1401
      %1404 = vset.pattern.permute.xlu0 7
      %1405 = vperm.xlu0 %1404, %v535
      %v1406 = vpop.permute.xlu0 %1405
      %1408 = vset.pattern.permute.xlu0 7
      %1409 = vperm.xlu0 %1408, %v536
      %v1410 = vpop.permute.xlu0 %1409
      %1412 = vset.pattern.permute.xlu0 7
      %1413 = vperm.xlu0 %1412, %v537
      %v1414 = vpop.permute.xlu0 %1413
      %v1416 = vlaneseq
      %v1417 = vshrl.u32 %v1416, 7
      %v1418 = vsub.s32 7, %v1417
      %v1419 = vrot.slane %v538, %v1418
      %v1420 = vsub.f32 %v1354, %v1419
      %v1421 = vsub.f32 %v1358, %v1419
      %v1422 = vsub.f32 %v1362, %v1419
      %v1423 = vsub.f32 %v1366, %v1419
      %v1424 = vsub.f32 %v1370, %v1419
      %v1425 = vsub.f32 %v1374, %v1419
      %v1426 = vsub.f32 %v1378, %v1419
      %v1427 = vsub.f32 %v1382, %v1419
      %v1428 = vsub.f32 %v1386, %v1419
      %v1429 = vsub.f32 %v1390, %v1419
      %v1430 = vsub.f32 %v1394, %v1419
      %v1431 = vsub.f32 %v1398, %v1419
      %v1432 = vsub.f32 %v1402, %v1419
      %v1433 = vsub.f32 %v1406, %v1419
      %v1434 = vsub.f32 %v1410, %v1419
      %v1435 = vsub.f32 %v1414, %v1419
      %v1436 = vand.u32 2147483647, %v1420
      %v1437 = vand.u32 2147483647, %v1421
      %v1438 = vand.u32 2147483647, %v1422
      %v1439 = vand.u32 2147483647, %v1423
      %v1440 = vand.u32 2147483647, %v1424
      %v1441 = vand.u32 2147483647, %v1425
      %v1442 = vand.u32 2147483647, %v1426
      %v1443 = vand.u32 2147483647, %v1427
      %v1444 = vand.u32 2147483647, %v1428
      %v1445 = vand.u32 2147483647, %v1429
      %v1446 = vand.u32 2147483647, %v1430
      %v1447 = vand.u32 2147483647, %v1431
      %v1448 = vand.u32 2147483647, %v1432
      %v1449 = vand.u32 2147483647, %v1433
      %v1450 = vand.u32 2147483647, %v1434
      %v1451 = vand.u32 2147483647, %v1435
      %v1452 = vadd.f32 %v1336, %v1436
      %v1453 = vadd.f32 %v1337, %v1437
      %v1454 = vadd.f32 %v1338, %v1438
      %v1455 = vadd.f32 %v1339, %v1439
      %v1456 = vadd.f32 %v1340, %v1440
      %v1457 = vadd.f32 %v1341, %v1441
      %v1458 = vadd.f32 %v1342, %v1442
      %v1459 = vadd.f32 %v1343, %v1443
      %v1460 = vadd.f32 %v1344, %v1444
      %v1461 = vadd.f32 %v1345, %v1445
      %v1462 = vadd.f32 %v1346, %v1446
      %v1463 = vadd.f32 %v1347, %v1447
      %v1464 = vadd.f32 %v1348, %v1448
      %v1465 = vadd.f32 %v1349, %v1449
      %v1466 = vadd.f32 %v1350, %v1450
      %v1467 = vadd.f32 %v1351, %v1451
      %1468 = vset.pattern.permute.xlu0 8
      %1469 = vperm.xlu0 %1468, %v522
      %v1470 = vpop.permute.xlu0 %1469
      %1472 = vset.pattern.permute.xlu0 8
      %1473 = vperm.xlu0 %1472, %v523
      %v1474 = vpop.permute.xlu0 %1473
      %1476 = vset.pattern.permute.xlu0 8
      %1477 = vperm.xlu0 %1476, %v524
      %v1478 = vpop.permute.xlu0 %1477
      %1480 = vset.pattern.permute.xlu0 8
      %1481 = vperm.xlu0 %1480, %v525
      %v1482 = vpop.permute.xlu0 %1481
      %1484 = vset.pattern.permute.xlu0 8
      %1485 = vperm.xlu0 %1484, %v526
      %v1486 = vpop.permute.xlu0 %1485
      %1488 = vset.pattern.permute.xlu0 8
      %1489 = vperm.xlu0 %1488, %v527
      %v1490 = vpop.permute.xlu0 %1489
      %1492 = vset.pattern.permute.xlu0 8
      %1493 = vperm.xlu0 %1492, %v528
      %v1494 = vpop.permute.xlu0 %1493
      %1496 = vset.pattern.permute.xlu0 8
      %1497 = vperm.xlu0 %1496, %v529
      %v1498 = vpop.permute.xlu0 %1497
      %1500 = vset.pattern.permute.xlu0 8
      %1501 = vperm.xlu0 %1500, %v530
      %v1502 = vpop.permute.xlu0 %1501
      %1504 = vset.pattern.permute.xlu0 8
      %1505 = vperm.xlu0 %1504, %v531
      %v1506 = vpop.permute.xlu0 %1505
      %1508 = vset.pattern.permute.xlu0 8
      %1509 = vperm.xlu0 %1508, %v532
      %v1510 = vpop.permute.xlu0 %1509
      %1512 = vset.pattern.permute.xlu0 8
      %1513 = vperm.xlu0 %1512, %v533
      %v1514 = vpop.permute.xlu0 %1513
      %1516 = vset.pattern.permute.xlu0 8
      %1517 = vperm.xlu0 %1516, %v534
      %v1518 = vpop.permute.xlu0 %1517
      %1520 = vset.pattern.permute.xlu0 8
      %1521 = vperm.xlu0 %1520, %v535
      %v1522 = vpop.permute.xlu0 %1521
      %1524 = vset.pattern.permute.xlu0 8
      %1525 = vperm.xlu0 %1524, %v536
      %v1526 = vpop.permute.xlu0 %1525
      %1528 = vset.pattern.permute.xlu0 8
      %1529 = vperm.xlu0 %1528, %v537
      %v1530 = vpop.permute.xlu0 %1529
      %v1532 = vlaneseq
      %v1533 = vshrl.u32 %v1532, 7
      %v1534 = vsub.s32 0, %v1533
      %v1535 = vrot.slane %v539, %v1534
      %v1536 = vsub.f32 %v1470, %v1535
      %v1537 = vsub.f32 %v1474, %v1535
      %v1538 = vsub.f32 %v1478, %v1535
      %v1539 = vsub.f32 %v1482, %v1535
      %v1540 = vsub.f32 %v1486, %v1535
      %v1541 = vsub.f32 %v1490, %v1535
      %v1542 = vsub.f32 %v1494, %v1535
      %v1543 = vsub.f32 %v1498, %v1535
      %v1544 = vsub.f32 %v1502, %v1535
      %v1545 = vsub.f32 %v1506, %v1535
      %v1546 = vsub.f32 %v1510, %v1535
      %v1547 = vsub.f32 %v1514, %v1535
      %v1548 = vsub.f32 %v1518, %v1535
      %v1549 = vsub.f32 %v1522, %v1535
      %v1550 = vsub.f32 %v1526, %v1535
      %v1551 = vsub.f32 %v1530, %v1535
      %v1552 = vand.u32 2147483647, %v1536
      %v1553 = vand.u32 2147483647, %v1537
      %v1554 = vand.u32 2147483647, %v1538
      %v1555 = vand.u32 2147483647, %v1539
      %v1556 = vand.u32 2147483647, %v1540
      %v1557 = vand.u32 2147483647, %v1541
      %v1558 = vand.u32 2147483647, %v1542
      %v1559 = vand.u32 2147483647, %v1543
      %v1560 = vand.u32 2147483647, %v1544
      %v1561 = vand.u32 2147483647, %v1545
      %v1562 = vand.u32 2147483647, %v1546
      %v1563 = vand.u32 2147483647, %v1547
      %v1564 = vand.u32 2147483647, %v1548
      %v1565 = vand.u32 2147483647, %v1549
      %v1566 = vand.u32 2147483647, %v1550
      %v1567 = vand.u32 2147483647, %v1551
      %v1568 = vadd.f32 %v1452, %v1552
      %v1569 = vadd.f32 %v1453, %v1553
      %v1570 = vadd.f32 %v1454, %v1554
      %v1571 = vadd.f32 %v1455, %v1555
      %v1572 = vadd.f32 %v1456, %v1556
      %v1573 = vadd.f32 %v1457, %v1557
      %v1574 = vadd.f32 %v1458, %v1558
      %v1575 = vadd.f32 %v1459, %v1559
      %v1576 = vadd.f32 %v1460, %v1560
      %v1577 = vadd.f32 %v1461, %v1561
      %v1578 = vadd.f32 %v1462, %v1562
      %v1579 = vadd.f32 %v1463, %v1563
      %v1580 = vadd.f32 %v1464, %v1564
      %v1581 = vadd.f32 %v1465, %v1565
      %v1582 = vadd.f32 %v1466, %v1566
      %v1583 = vadd.f32 %v1467, %v1567
      %1584 = vset.pattern.permute.xlu0 9
      %1585 = vperm.xlu0 %1584, %v522
      %v1586 = vpop.permute.xlu0 %1585
      %1588 = vset.pattern.permute.xlu0 9
      %1589 = vperm.xlu0 %1588, %v523
      %v1590 = vpop.permute.xlu0 %1589
      %1592 = vset.pattern.permute.xlu0 9
      %1593 = vperm.xlu0 %1592, %v524
      %v1594 = vpop.permute.xlu0 %1593
      %1596 = vset.pattern.permute.xlu0 9
      %1597 = vperm.xlu0 %1596, %v525
      %v1598 = vpop.permute.xlu0 %1597
      %1600 = vset.pattern.permute.xlu0 9
      %1601 = vperm.xlu0 %1600, %v526
      %v1602 = vpop.permute.xlu0 %1601
      %1604 = vset.pattern.permute.xlu0 9
      %1605 = vperm.xlu0 %1604, %v527
      %v1606 = vpop.permute.xlu0 %1605
      %1608 = vset.pattern.permute.xlu0 9
      %1609 = vperm.xlu0 %1608, %v528
      %v1610 = vpop.permute.xlu0 %1609
      %1612 = vset.pattern.permute.xlu0 9
      %1613 = vperm.xlu0 %1612, %v529
      %v1614 = vpop.permute.xlu0 %1613
      %1616 = vset.pattern.permute.xlu0 9
      %1617 = vperm.xlu0 %1616, %v530
      %v1618 = vpop.permute.xlu0 %1617
      %1620 = vset.pattern.permute.xlu0 9
      %1621 = vperm.xlu0 %1620, %v531
      %v1622 = vpop.permute.xlu0 %1621
      %1624 = vset.pattern.permute.xlu0 9
      %1625 = vperm.xlu0 %1624, %v532
      %v1626 = vpop.permute.xlu0 %1625
      %1628 = vset.pattern.permute.xlu0 9
      %1629 = vperm.xlu0 %1628, %v533
      %v1630 = vpop.permute.xlu0 %1629
      %1632 = vset.pattern.permute.xlu0 9
      %1633 = vperm.xlu0 %1632, %v534
      %v1634 = vpop.permute.xlu0 %1633
      %1636 = vset.pattern.permute.xlu0 9
      %1637 = vperm.xlu0 %1636, %v535
      %v1638 = vpop.permute.xlu0 %1637
      %1640 = vset.pattern.permute.xlu0 9
      %1641 = vperm.xlu0 %1640, %v536
      %v1642 = vpop.permute.xlu0 %1641
      %1644 = vset.pattern.permute.xlu0 9
      %1645 = vperm.xlu0 %1644, %v537
      %v1646 = vpop.permute.xlu0 %1645
      %v1648 = vlaneseq
      %v1649 = vshrl.u32 %v1648, 7
      %v1650 = vsub.s32 1, %v1649
      %v1651 = vrot.slane %v539, %v1650
      %v1652 = vsub.f32 %v1586, %v1651
      %v1653 = vsub.f32 %v1590, %v1651
      %v1654 = vsub.f32 %v1594, %v1651
      %v1655 = vsub.f32 %v1598, %v1651
      %v1656 = vsub.f32 %v1602, %v1651
      %v1657 = vsub.f32 %v1606, %v1651
      %v1658 = vsub.f32 %v1610, %v1651
      %v1659 = vsub.f32 %v1614, %v1651
      %v1660 = vsub.f32 %v1618, %v1651
      %v1661 = vsub.f32 %v1622, %v1651
      %v1662 = vsub.f32 %v1626, %v1651
      %v1663 = vsub.f32 %v1630, %v1651
      %v1664 = vsub.f32 %v1634, %v1651
      %v1665 = vsub.f32 %v1638, %v1651
      %v1666 = vsub.f32 %v1642, %v1651
      %v1667 = vsub.f32 %v1646, %v1651
      %v1668 = vand.u32 2147483647, %v1652
      %v1669 = vand.u32 2147483647, %v1653
      %v1670 = vand.u32 2147483647, %v1654
      %v1671 = vand.u32 2147483647, %v1655
      %v1672 = vand.u32 2147483647, %v1656
      %v1673 = vand.u32 2147483647, %v1657
      %v1674 = vand.u32 2147483647, %v1658
      %v1675 = vand.u32 2147483647, %v1659
      %v1676 = vand.u32 2147483647, %v1660
      %v1677 = vand.u32 2147483647, %v1661
      %v1678 = vand.u32 2147483647, %v1662
      %v1679 = vand.u32 2147483647, %v1663
      %v1680 = vand.u32 2147483647, %v1664
      %v1681 = vand.u32 2147483647, %v1665
      %v1682 = vand.u32 2147483647, %v1666
      %v1683 = vand.u32 2147483647, %v1667
      %v1684 = vadd.f32 %v1568, %v1668
      %v1685 = vadd.f32 %v1569, %v1669
      %v1686 = vadd.f32 %v1570, %v1670
      %v1687 = vadd.f32 %v1571, %v1671
      %v1688 = vadd.f32 %v1572, %v1672
      %v1689 = vadd.f32 %v1573, %v1673
      %v1690 = vadd.f32 %v1574, %v1674
      %v1691 = vadd.f32 %v1575, %v1675
      %v1692 = vadd.f32 %v1576, %v1676
      %v1693 = vadd.f32 %v1577, %v1677
      %v1694 = vadd.f32 %v1578, %v1678
      %v1695 = vadd.f32 %v1579, %v1679
      %v1696 = vadd.f32 %v1580, %v1680
      %v1697 = vadd.f32 %v1581, %v1681
      %v1698 = vadd.f32 %v1582, %v1682
      %v1699 = vadd.f32 %v1583, %v1683
      %1700 = vset.pattern.permute.xlu0 10
      %1701 = vperm.xlu0 %1700, %v522
      %v1702 = vpop.permute.xlu0 %1701
      %1704 = vset.pattern.permute.xlu0 10
      %1705 = vperm.xlu0 %1704, %v523
      %v1706 = vpop.permute.xlu0 %1705
      %1708 = vset.pattern.permute.xlu0 10
      %1709 = vperm.xlu0 %1708, %v524
      %v1710 = vpop.permute.xlu0 %1709
      %1712 = vset.pattern.permute.xlu0 10
      %1713 = vperm.xlu0 %1712, %v525
      %v1714 = vpop.permute.xlu0 %1713
      %1716 = vset.pattern.permute.xlu0 10
      %1717 = vperm.xlu0 %1716, %v526
      %v1718 = vpop.permute.xlu0 %1717
      %1720 = vset.pattern.permute.xlu0 10
      %1721 = vperm.xlu0 %1720, %v527
      %v1722 = vpop.permute.xlu0 %1721
      %1724 = vset.pattern.permute.xlu0 10
      %1725 = vperm.xlu0 %1724, %v528
      %v1726 = vpop.permute.xlu0 %1725
      %1728 = vset.pattern.permute.xlu0 10
      %1729 = vperm.xlu0 %1728, %v529
      %v1730 = vpop.permute.xlu0 %1729
      %1732 = vset.pattern.permute.xlu0 10
      %1733 = vperm.xlu0 %1732, %v530
      %v1734 = vpop.permute.xlu0 %1733
      %1736 = vset.pattern.permute.xlu0 10
      %1737 = vperm.xlu0 %1736, %v531
      %v1738 = vpop.permute.xlu0 %1737
      %1740 = vset.pattern.permute.xlu0 10
      %1741 = vperm.xlu0 %1740, %v532
      %v1742 = vpop.permute.xlu0 %1741
      %1744 = vset.pattern.permute.xlu0 10
      %1745 = vperm.xlu0 %1744, %v533
      %v1746 = vpop.permute.xlu0 %1745
      %1748 = vset.pattern.permute.xlu0 10
      %1749 = vperm.xlu0 %1748, %v534
      %v1750 = vpop.permute.xlu0 %1749
      %1752 = vset.pattern.permute.xlu0 10
      %1753 = vperm.xlu0 %1752, %v535
      %v1754 = vpop.permute.xlu0 %1753
      %1756 = vset.pattern.permute.xlu0 10
      %1757 = vperm.xlu0 %1756, %v536
      %v1758 = vpop.permute.xlu0 %1757
      %1760 = vset.pattern.permute.xlu0 10
      %1761 = vperm.xlu0 %1760, %v537
      %v1762 = vpop.permute.xlu0 %1761
      %v1764 = vlaneseq
      %v1765 = vshrl.u32 %v1764, 7
      %v1766 = vsub.s32 2, %v1765
      %v1767 = vrot.slane %v539, %v1766
      %v1768 = vsub.f32 %v1702, %v1767
      %v1769 = vsub.f32 %v1706, %v1767
      %v1770 = vsub.f32 %v1710, %v1767
      %v1771 = vsub.f32 %v1714, %v1767
      %v1772 = vsub.f32 %v1718, %v1767
      %v1773 = vsub.f32 %v1722, %v1767
      %v1774 = vsub.f32 %v1726, %v1767
      %v1775 = vsub.f32 %v1730, %v1767
      %v1776 = vsub.f32 %v1734, %v1767
      %v1777 = vsub.f32 %v1738, %v1767
      %v1778 = vsub.f32 %v1742, %v1767
      %v1779 = vsub.f32 %v1746, %v1767
      %v1780 = vsub.f32 %v1750, %v1767
      %v1781 = vsub.f32 %v1754, %v1767
      %v1782 = vsub.f32 %v1758, %v1767
      %v1783 = vsub.f32 %v1762, %v1767
      %v1784 = vand.u32 2147483647, %v1768
      %v1785 = vand.u32 2147483647, %v1769
      %v1786 = vand.u32 2147483647, %v1770
      %v1787 = vand.u32 2147483647, %v1771
      %v1788 = vand.u32 2147483647, %v1772
      %v1789 = vand.u32 2147483647, %v1773
      %v1790 = vand.u32 2147483647, %v1774
      %v1791 = vand.u32 2147483647, %v1775
      %v1792 = vand.u32 2147483647, %v1776
      %v1793 = vand.u32 2147483647, %v1777
      %v1794 = vand.u32 2147483647, %v1778
      %v1795 = vand.u32 2147483647, %v1779
      %v1796 = vand.u32 2147483647, %v1780
      %v1797 = vand.u32 2147483647, %v1781
      %v1798 = vand.u32 2147483647, %v1782
      %v1799 = vand.u32 2147483647, %v1783
      %v1800 = vadd.f32 %v1684, %v1784
      %v1801 = vadd.f32 %v1685, %v1785
      %v1802 = vadd.f32 %v1686, %v1786
      %v1803 = vadd.f32 %v1687, %v1787
      %v1804 = vadd.f32 %v1688, %v1788
      %v1805 = vadd.f32 %v1689, %v1789
      %v1806 = vadd.f32 %v1690, %v1790
      %v1807 = vadd.f32 %v1691, %v1791
      %v1808 = vadd.f32 %v1692, %v1792
      %v1809 = vadd.f32 %v1693, %v1793
      %v1810 = vadd.f32 %v1694, %v1794
      %v1811 = vadd.f32 %v1695, %v1795
      %v1812 = vadd.f32 %v1696, %v1796
      %v1813 = vadd.f32 %v1697, %v1797
      %v1814 = vadd.f32 %v1698, %v1798
      %v1815 = vadd.f32 %v1699, %v1799
      %1816 = vset.pattern.permute.xlu0 11
      %1817 = vperm.xlu0 %1816, %v522
      %v1818 = vpop.permute.xlu0 %1817
      %1820 = vset.pattern.permute.xlu0 11
      %1821 = vperm.xlu0 %1820, %v523
      %v1822 = vpop.permute.xlu0 %1821
      %1824 = vset.pattern.permute.xlu0 11
      %1825 = vperm.xlu0 %1824, %v524
      %v1826 = vpop.permute.xlu0 %1825
      %1828 = vset.pattern.permute.xlu0 11
      %1829 = vperm.xlu0 %1828, %v525
      %v1830 = vpop.permute.xlu0 %1829
      %1832 = vset.pattern.permute.xlu0 11
      %1833 = vperm.xlu0 %1832, %v526
      %v1834 = vpop.permute.xlu0 %1833
      %1836 = vset.pattern.permute.xlu0 11
      %1837 = vperm.xlu0 %1836, %v527
      %v1838 = vpop.permute.xlu0 %1837
      %1840 = vset.pattern.permute.xlu0 11
      %1841 = vperm.xlu0 %1840, %v528
      %v1842 = vpop.permute.xlu0 %1841
      %1844 = vset.pattern.permute.xlu0 11
      %1845 = vperm.xlu0 %1844, %v529
      %v1846 = vpop.permute.xlu0 %1845
      %1848 = vset.pattern.permute.xlu0 11
      %1849 = vperm.xlu0 %1848, %v530
      %v1850 = vpop.permute.xlu0 %1849
      %1852 = vset.pattern.permute.xlu0 11
      %1853 = vperm.xlu0 %1852, %v531
      %v1854 = vpop.permute.xlu0 %1853
      %1856 = vset.pattern.permute.xlu0 11
      %1857 = vperm.xlu0 %1856, %v532
      %v1858 = vpop.permute.xlu0 %1857
      %1860 = vset.pattern.permute.xlu0 11
      %1861 = vperm.xlu0 %1860, %v533
      %v1862 = vpop.permute.xlu0 %1861
      %1864 = vset.pattern.permute.xlu0 11
      %1865 = vperm.xlu0 %1864, %v534
      %v1866 = vpop.permute.xlu0 %1865
      %1868 = vset.pattern.permute.xlu0 11
      %1869 = vperm.xlu0 %1868, %v535
      %v1870 = vpop.permute.xlu0 %1869
      %1872 = vset.pattern.permute.xlu0 11
      %1873 = vperm.xlu0 %1872, %v536
      %v1874 = vpop.permute.xlu0 %1873
      %1876 = vset.pattern.permute.xlu0 11
      %1877 = vperm.xlu0 %1876, %v537
      %v1878 = vpop.permute.xlu0 %1877
      %v1880 = vlaneseq
      %v1881 = vshrl.u32 %v1880, 7
      %v1882 = vsub.s32 3, %v1881
      %v1883 = vrot.slane %v539, %v1882
      %v1884 = vsub.f32 %v1818, %v1883
      %v1885 = vsub.f32 %v1822, %v1883
      %v1886 = vsub.f32 %v1826, %v1883
      %v1887 = vsub.f32 %v1830, %v1883
      %v1888 = vsub.f32 %v1834, %v1883
      %v1889 = vsub.f32 %v1838, %v1883
      %v1890 = vsub.f32 %v1842, %v1883
      %v1891 = vsub.f32 %v1846, %v1883
      %v1892 = vsub.f32 %v1850, %v1883
      %v1893 = vsub.f32 %v1854, %v1883
      %v1894 = vsub.f32 %v1858, %v1883
      %v1895 = vsub.f32 %v1862, %v1883
      %v1896 = vsub.f32 %v1866, %v1883
      %v1897 = vsub.f32 %v1870, %v1883
      %v1898 = vsub.f32 %v1874, %v1883
      %v1899 = vsub.f32 %v1878, %v1883
      %v1900 = vand.u32 2147483647, %v1884
      %v1901 = vand.u32 2147483647, %v1885
      %v1902 = vand.u32 2147483647, %v1886
      %v1903 = vand.u32 2147483647, %v1887
      %v1904 = vand.u32 2147483647, %v1888
      %v1905 = vand.u32 2147483647, %v1889
      %v1906 = vand.u32 2147483647, %v1890
      %v1907 = vand.u32 2147483647, %v1891
      %v1908 = vand.u32 2147483647, %v1892
      %v1909 = vand.u32 2147483647, %v1893
      %v1910 = vand.u32 2147483647, %v1894
      %v1911 = vand.u32 2147483647, %v1895
      %v1912 = vand.u32 2147483647, %v1896
      %v1913 = vand.u32 2147483647, %v1897
      %v1914 = vand.u32 2147483647, %v1898
      %v1915 = vand.u32 2147483647, %v1899
      %v1916 = vadd.f32 %v1800, %v1900
      %v1917 = vadd.f32 %v1801, %v1901
      %v1918 = vadd.f32 %v1802, %v1902
      %v1919 = vadd.f32 %v1803, %v1903
      %v1920 = vadd.f32 %v1804, %v1904
      %v1921 = vadd.f32 %v1805, %v1905
      %v1922 = vadd.f32 %v1806, %v1906
      %v1923 = vadd.f32 %v1807, %v1907
      %v1924 = vadd.f32 %v1808, %v1908
      %v1925 = vadd.f32 %v1809, %v1909
      %v1926 = vadd.f32 %v1810, %v1910
      %v1927 = vadd.f32 %v1811, %v1911
      %v1928 = vadd.f32 %v1812, %v1912
      %v1929 = vadd.f32 %v1813, %v1913
      %v1930 = vadd.f32 %v1814, %v1914
      %v1931 = vadd.f32 %v1815, %v1915
      %1932 = vset.pattern.permute.xlu0 12
      %1933 = vperm.xlu0 %1932, %v522
      %v1934 = vpop.permute.xlu0 %1933
      %1936 = vset.pattern.permute.xlu0 12
      %1937 = vperm.xlu0 %1936, %v523
      %v1938 = vpop.permute.xlu0 %1937
      %1940 = vset.pattern.permute.xlu0 12
      %1941 = vperm.xlu0 %1940, %v524
      %v1942 = vpop.permute.xlu0 %1941
      %1944 = vset.pattern.permute.xlu0 12
      %1945 = vperm.xlu0 %1944, %v525
      %v1946 = vpop.permute.xlu0 %1945
      %1948 = vset.pattern.permute.xlu0 12
      %1949 = vperm.xlu0 %1948, %v526
      %v1950 = vpop.permute.xlu0 %1949
      %1952 = vset.pattern.permute.xlu0 12
      %1953 = vperm.xlu0 %1952, %v527
      %v1954 = vpop.permute.xlu0 %1953
      %1956 = vset.pattern.permute.xlu0 12
      %1957 = vperm.xlu0 %1956, %v528
      %v1958 = vpop.permute.xlu0 %1957
      %1960 = vset.pattern.permute.xlu0 12
      %1961 = vperm.xlu0 %1960, %v529
      %v1962 = vpop.permute.xlu0 %1961
      %1964 = vset.pattern.permute.xlu0 12
      %1965 = vperm.xlu0 %1964, %v530
      %v1966 = vpop.permute.xlu0 %1965
      %1968 = vset.pattern.permute.xlu0 12
      %1969 = vperm.xlu0 %1968, %v531
      %v1970 = vpop.permute.xlu0 %1969
      %1972 = vset.pattern.permute.xlu0 12
      %1973 = vperm.xlu0 %1972, %v532
      %v1974 = vpop.permute.xlu0 %1973
      %1976 = vset.pattern.permute.xlu0 12
      %1977 = vperm.xlu0 %1976, %v533
      %v1978 = vpop.permute.xlu0 %1977
      %1980 = vset.pattern.permute.xlu0 12
      %1981 = vperm.xlu0 %1980, %v534
      %v1982 = vpop.permute.xlu0 %1981
      %1984 = vset.pattern.permute.xlu0 12
      %1985 = vperm.xlu0 %1984, %v535
      %v1986 = vpop.permute.xlu0 %1985
      %1988 = vset.pattern.permute.xlu0 12
      %1989 = vperm.xlu0 %1988, %v536
      %v1990 = vpop.permute.xlu0 %1989
      %1992 = vset.pattern.permute.xlu0 12
      %1993 = vperm.xlu0 %1992, %v537
      %v1994 = vpop.permute.xlu0 %1993
      %v1996 = vlaneseq
      %v1997 = vshrl.u32 %v1996, 7
      %v1998 = vsub.s32 4, %v1997
      %v1999 = vrot.slane %v539, %v1998
      %v2000 = vsub.f32 %v1934, %v1999
      %v2001 = vsub.f32 %v1938, %v1999
      %v2002 = vsub.f32 %v1942, %v1999
      %v2003 = vsub.f32 %v1946, %v1999
      %v2004 = vsub.f32 %v1950, %v1999
      %v2005 = vsub.f32 %v1954, %v1999
      %v2006 = vsub.f32 %v1958, %v1999
      %v2007 = vsub.f32 %v1962, %v1999
      %v2008 = vsub.f32 %v1966, %v1999
      %v2009 = vsub.f32 %v1970, %v1999
      %v2010 = vsub.f32 %v1974, %v1999
      %v2011 = vsub.f32 %v1978, %v1999
      %v2012 = vsub.f32 %v1982, %v1999
      %v2013 = vsub.f32 %v1986, %v1999
      %v2014 = vsub.f32 %v1990, %v1999
      %v2015 = vsub.f32 %v1994, %v1999
      %v2016 = vand.u32 2147483647, %v2000
      %v2017 = vand.u32 2147483647, %v2001
      %v2018 = vand.u32 2147483647, %v2002
      %v2019 = vand.u32 2147483647, %v2003
      %v2020 = vand.u32 2147483647, %v2004
      %v2021 = vand.u32 2147483647, %v2005
      %v2022 = vand.u32 2147483647, %v2006
      %v2023 = vand.u32 2147483647, %v2007
      %v2024 = vand.u32 2147483647, %v2008
      %v2025 = vand.u32 2147483647, %v2009
      %v2026 = vand.u32 2147483647, %v2010
      %v2027 = vand.u32 2147483647, %v2011
      %v2028 = vand.u32 2147483647, %v2012
      %v2029 = vand.u32 2147483647, %v2013
      %v2030 = vand.u32 2147483647, %v2014
      %v2031 = vand.u32 2147483647, %v2015
      %v2032 = vadd.f32 %v1916, %v2016
      %v2033 = vadd.f32 %v1917, %v2017
      %v2034 = vadd.f32 %v1918, %v2018
      %v2035 = vadd.f32 %v1919, %v2019
      %v2036 = vadd.f32 %v1920, %v2020
      %v2037 = vadd.f32 %v1921, %v2021
      %v2038 = vadd.f32 %v1922, %v2022
      %v2039 = vadd.f32 %v1923, %v2023
      %v2040 = vadd.f32 %v1924, %v2024
      %v2041 = vadd.f32 %v1925, %v2025
      %v2042 = vadd.f32 %v1926, %v2026
      %v2043 = vadd.f32 %v1927, %v2027
      %v2044 = vadd.f32 %v1928, %v2028
      %v2045 = vadd.f32 %v1929, %v2029
      %v2046 = vadd.f32 %v1930, %v2030
      %v2047 = vadd.f32 %v1931, %v2031
      %2048 = vset.pattern.permute.xlu0 13
      %2049 = vperm.xlu0 %2048, %v522
      %v2050 = vpop.permute.xlu0 %2049
      %2052 = vset.pattern.permute.xlu0 13
      %2053 = vperm.xlu0 %2052, %v523
      %v2054 = vpop.permute.xlu0 %2053
      %2056 = vset.pattern.permute.xlu0 13
      %2057 = vperm.xlu0 %2056, %v524
      %v2058 = vpop.permute.xlu0 %2057
      %2060 = vset.pattern.permute.xlu0 13
      %2061 = vperm.xlu0 %2060, %v525
      %v2062 = vpop.permute.xlu0 %2061
      %2064 = vset.pattern.permute.xlu0 13
      %2065 = vperm.xlu0 %2064, %v526
      %v2066 = vpop.permute.xlu0 %2065
      %2068 = vset.pattern.permute.xlu0 13
      %2069 = vperm.xlu0 %2068, %v527
      %v2070 = vpop.permute.xlu0 %2069
      %2072 = vset.pattern.permute.xlu0 13
      %2073 = vperm.xlu0 %2072, %v528
      %v2074 = vpop.permute.xlu0 %2073
      %2076 = vset.pattern.permute.xlu0 13
      %2077 = vperm.xlu0 %2076, %v529
      %v2078 = vpop.permute.xlu0 %2077
      %2080 = vset.pattern.permute.xlu0 13
      %2081 = vperm.xlu0 %2080, %v530
      %v2082 = vpop.permute.xlu0 %2081
      %2084 = vset.pattern.permute.xlu0 13
      %2085 = vperm.xlu0 %2084, %v531
      %v2086 = vpop.permute.xlu0 %2085
      %2088 = vset.pattern.permute.xlu0 13
      %2089 = vperm.xlu0 %2088, %v532
      %v2090 = vpop.permute.xlu0 %2089
      %2092 = vset.pattern.permute.xlu0 13
      %2093 = vperm.xlu0 %2092, %v533
      %v2094 = vpop.permute.xlu0 %2093
      %2096 = vset.pattern.permute.xlu0 13
      %2097 = vperm.xlu0 %2096, %v534
      %v2098 = vpop.permute.xlu0 %2097
      %2100 = vset.pattern.permute.xlu0 13
      %2101 = vperm.xlu0 %2100, %v535
      %v2102 = vpop.permute.xlu0 %2101
      %2104 = vset.pattern.permute.xlu0 13
      %2105 = vperm.xlu0 %2104, %v536
      %v2106 = vpop.permute.xlu0 %2105
      %2108 = vset.pattern.permute.xlu0 13
      %2109 = vperm.xlu0 %2108, %v537
      %v2110 = vpop.permute.xlu0 %2109
      %v2112 = vlaneseq
      %v2113 = vshrl.u32 %v2112, 7
      %v2114 = vsub.s32 5, %v2113
      %v2115 = vrot.slane %v539, %v2114
      %v2116 = vsub.f32 %v2050, %v2115
      %v2117 = vsub.f32 %v2054, %v2115
      %v2118 = vsub.f32 %v2058, %v2115
      %v2119 = vsub.f32 %v2062, %v2115
      %v2120 = vsub.f32 %v2066, %v2115
      %v2121 = vsub.f32 %v2070, %v2115
      %v2122 = vsub.f32 %v2074, %v2115
      %v2123 = vsub.f32 %v2078, %v2115
      %v2124 = vsub.f32 %v2082, %v2115
      %v2125 = vsub.f32 %v2086, %v2115
      %v2126 = vsub.f32 %v2090, %v2115
      %v2127 = vsub.f32 %v2094, %v2115
      %v2128 = vsub.f32 %v2098, %v2115
      %v2129 = vsub.f32 %v2102, %v2115
      %v2130 = vsub.f32 %v2106, %v2115
      %v2131 = vsub.f32 %v2110, %v2115
      %v2132 = vand.u32 2147483647, %v2116
      %v2133 = vand.u32 2147483647, %v2117
      %v2134 = vand.u32 2147483647, %v2118
      %v2135 = vand.u32 2147483647, %v2119
      %v2136 = vand.u32 2147483647, %v2120
      %v2137 = vand.u32 2147483647, %v2121
      %v2138 = vand.u32 2147483647, %v2122
      %v2139 = vand.u32 2147483647, %v2123
      %v2140 = vand.u32 2147483647, %v2124
      %v2141 = vand.u32 2147483647, %v2125
      %v2142 = vand.u32 2147483647, %v2126
      %v2143 = vand.u32 2147483647, %v2127
      %v2144 = vand.u32 2147483647, %v2128
      %v2145 = vand.u32 2147483647, %v2129
      %v2146 = vand.u32 2147483647, %v2130
      %v2147 = vand.u32 2147483647, %v2131
      %v2148 = vadd.f32 %v2032, %v2132
      %v2149 = vadd.f32 %v2033, %v2133
      %v2150 = vadd.f32 %v2034, %v2134
      %v2151 = vadd.f32 %v2035, %v2135
      %v2152 = vadd.f32 %v2036, %v2136
      %v2153 = vadd.f32 %v2037, %v2137
      %v2154 = vadd.f32 %v2038, %v2138
      %v2155 = vadd.f32 %v2039, %v2139
      %v2156 = vadd.f32 %v2040, %v2140
      %v2157 = vadd.f32 %v2041, %v2141
      %v2158 = vadd.f32 %v2042, %v2142
      %v2159 = vadd.f32 %v2043, %v2143
      %v2160 = vadd.f32 %v2044, %v2144
      %v2161 = vadd.f32 %v2045, %v2145
      %v2162 = vadd.f32 %v2046, %v2146
      %v2163 = vadd.f32 %v2047, %v2147
      %2164 = vset.pattern.permute.xlu0 14
      %2165 = vperm.xlu0 %2164, %v522
      %v2166 = vpop.permute.xlu0 %2165
      %2168 = vset.pattern.permute.xlu0 14
      %2169 = vperm.xlu0 %2168, %v523
      %v2170 = vpop.permute.xlu0 %2169
      %2172 = vset.pattern.permute.xlu0 14
      %2173 = vperm.xlu0 %2172, %v524
      %v2174 = vpop.permute.xlu0 %2173
      %2176 = vset.pattern.permute.xlu0 14
      %2177 = vperm.xlu0 %2176, %v525
      %v2178 = vpop.permute.xlu0 %2177
      %2180 = vset.pattern.permute.xlu0 14
      %2181 = vperm.xlu0 %2180, %v526
      %v2182 = vpop.permute.xlu0 %2181
      %2184 = vset.pattern.permute.xlu0 14
      %2185 = vperm.xlu0 %2184, %v527
      %v2186 = vpop.permute.xlu0 %2185
      %2188 = vset.pattern.permute.xlu0 14
      %2189 = vperm.xlu0 %2188, %v528
      %v2190 = vpop.permute.xlu0 %2189
      %2192 = vset.pattern.permute.xlu0 14
      %2193 = vperm.xlu0 %2192, %v529
      %v2194 = vpop.permute.xlu0 %2193
      %2196 = vset.pattern.permute.xlu0 14
      %2197 = vperm.xlu0 %2196, %v530
      %v2198 = vpop.permute.xlu0 %2197
      %2200 = vset.pattern.permute.xlu0 14
      %2201 = vperm.xlu0 %2200, %v531
      %v2202 = vpop.permute.xlu0 %2201
      %2204 = vset.pattern.permute.xlu0 14
      %2205 = vperm.xlu0 %2204, %v532
      %v2206 = vpop.permute.xlu0 %2205
      %2208 = vset.pattern.permute.xlu0 14
      %2209 = vperm.xlu0 %2208, %v533
      %v2210 = vpop.permute.xlu0 %2209
      %2212 = vset.pattern.permute.xlu0 14
      %2213 = vperm.xlu0 %2212, %v534
      %v2214 = vpop.permute.xlu0 %2213
      %2216 = vset.pattern.permute.xlu0 14
      %2217 = vperm.xlu0 %2216, %v535
      %v2218 = vpop.permute.xlu0 %2217
      %2220 = vset.pattern.permute.xlu0 14
      %2221 = vperm.xlu0 %2220, %v536
      %v2222 = vpop.permute.xlu0 %2221
      %2224 = vset.pattern.permute.xlu0 14
      %2225 = vperm.xlu0 %2224, %v537
      %v2226 = vpop.permute.xlu0 %2225
      %v2228 = vlaneseq
      %v2229 = vshrl.u32 %v2228, 7
      %v2230 = vsub.s32 6, %v2229
      %v2231 = vrot.slane %v539, %v2230
      %v2232 = vsub.f32 %v2166, %v2231
      %v2233 = vsub.f32 %v2170, %v2231
      %v2234 = vsub.f32 %v2174, %v2231
      %v2235 = vsub.f32 %v2178, %v2231
      %v2236 = vsub.f32 %v2182, %v2231
      %v2237 = vsub.f32 %v2186, %v2231
      %v2238 = vsub.f32 %v2190, %v2231
      %v2239 = vsub.f32 %v2194, %v2231
      %v2240 = vsub.f32 %v2198, %v2231
      %v2241 = vsub.f32 %v2202, %v2231
      %v2242 = vsub.f32 %v2206, %v2231
      %v2243 = vsub.f32 %v2210, %v2231
      %v2244 = vsub.f32 %v2214, %v2231
      %v2245 = vsub.f32 %v2218, %v2231
      %v2246 = vsub.f32 %v2222, %v2231
      %v2247 = vsub.f32 %v2226, %v2231
      %v2248 = vand.u32 2147483647, %v2232
      %v2249 = vand.u32 2147483647, %v2233
      %v2250 = vand.u32 2147483647, %v2234
      %v2251 = vand.u32 2147483647, %v2235
      %v2252 = vand.u32 2147483647, %v2236
      %v2253 = vand.u32 2147483647, %v2237
      %v2254 = vand.u32 2147483647, %v2238
      %v2255 = vand.u32 2147483647, %v2239
      %v2256 = vand.u32 2147483647, %v2240
      %v2257 = vand.u32 2147483647, %v2241
      %v2258 = vand.u32 2147483647, %v2242
      %v2259 = vand.u32 2147483647, %v2243
      %v2260 = vand.u32 2147483647, %v2244
      %v2261 = vand.u32 2147483647, %v2245
      %v2262 = vand.u32 2147483647, %v2246
      %v2263 = vand.u32 2147483647, %v2247
      %v2264 = vadd.f32 %v2148, %v2248
      %v2265 = vadd.f32 %v2149, %v2249
      %v2266 = vadd.f32 %v2150, %v2250
      %v2267 = vadd.f32 %v2151, %v2251
      %v2268 = vadd.f32 %v2152, %v2252
      %v2269 = vadd.f32 %v2153, %v2253
      %v2270 = vadd.f32 %v2154, %v2254
      %v2271 = vadd.f32 %v2155, %v2255
      %v2272 = vadd.f32 %v2156, %v2256
      %v2273 = vadd.f32 %v2157, %v2257
      %v2274 = vadd.f32 %v2158, %v2258
      %v2275 = vadd.f32 %v2159, %v2259
      %v2276 = vadd.f32 %v2160, %v2260
      %v2277 = vadd.f32 %v2161, %v2261
      %v2278 = vadd.f32 %v2162, %v2262
      %v2279 = vadd.f32 %v2163, %v2263
      %2280 = vset.pattern.permute.xlu0 15
      %2281 = vperm.xlu0 %2280, %v522
      %v2282 = vpop.permute.xlu0 %2281
      %2284 = vset.pattern.permute.xlu0 15
      %2285 = vperm.xlu0 %2284, %v523
      %v2286 = vpop.permute.xlu0 %2285
      %2288 = vset.pattern.permute.xlu0 15
      %2289 = vperm.xlu0 %2288, %v524
      %v2290 = vpop.permute.xlu0 %2289
      %2292 = vset.pattern.permute.xlu0 15
      %2293 = vperm.xlu0 %2292, %v525
      %v2294 = vpop.permute.xlu0 %2293
      %2296 = vset.pattern.permute.xlu0 15
      %2297 = vperm.xlu0 %2296, %v526
      %v2298 = vpop.permute.xlu0 %2297
      %2300 = vset.pattern.permute.xlu0 15
      %2301 = vperm.xlu0 %2300, %v527
      %v2302 = vpop.permute.xlu0 %2301
      %2304 = vset.pattern.permute.xlu0 15
      %2305 = vperm.xlu0 %2304, %v528
      %v2306 = vpop.permute.xlu0 %2305
      %2308 = vset.pattern.permute.xlu0 15
      %2309 = vperm.xlu0 %2308, %v529
      %v2310 = vpop.permute.xlu0 %2309
      %2312 = vset.pattern.permute.xlu0 15
      %2313 = vperm.xlu0 %2312, %v530
      %v2314 = vpop.permute.xlu0 %2313
      %2316 = vset.pattern.permute.xlu0 15
      %2317 = vperm.xlu0 %2316, %v531
      %v2318 = vpop.permute.xlu0 %2317
      %2320 = vset.pattern.permute.xlu0 15
      %2321 = vperm.xlu0 %2320, %v532
      %v2322 = vpop.permute.xlu0 %2321
      %2324 = vset.pattern.permute.xlu0 15
      %2325 = vperm.xlu0 %2324, %v533
      %v2326 = vpop.permute.xlu0 %2325
      %2328 = vset.pattern.permute.xlu0 15
      %2329 = vperm.xlu0 %2328, %v534
      %v2330 = vpop.permute.xlu0 %2329
      %2332 = vset.pattern.permute.xlu0 15
      %2333 = vperm.xlu0 %2332, %v535
      %v2334 = vpop.permute.xlu0 %2333
      %2336 = vset.pattern.permute.xlu0 15
      %2337 = vperm.xlu0 %2336, %v536
      %v2338 = vpop.permute.xlu0 %2337
      %2340 = vset.pattern.permute.xlu0 15
      %2341 = vperm.xlu0 %2340, %v537
      %v2342 = vpop.permute.xlu0 %2341
      %v2344 = vlaneseq
      %v2345 = vshrl.u32 %v2344, 7
      %v2346 = vsub.s32 7, %v2345
      %v2347 = vrot.slane %v539, %v2346
      %v2348 = vsub.f32 %v2282, %v2347
      %v2349 = vsub.f32 %v2286, %v2347
      %v2350 = vsub.f32 %v2290, %v2347
      %v2351 = vsub.f32 %v2294, %v2347
      %v2352 = vsub.f32 %v2298, %v2347
      %v2353 = vsub.f32 %v2302, %v2347
      %v2354 = vsub.f32 %v2306, %v2347
      %v2355 = vsub.f32 %v2310, %v2347
      %v2356 = vsub.f32 %v2314, %v2347
      %v2357 = vsub.f32 %v2318, %v2347
      %v2358 = vsub.f32 %v2322, %v2347
      %v2359 = vsub.f32 %v2326, %v2347
      %v2360 = vsub.f32 %v2330, %v2347
      %v2361 = vsub.f32 %v2334, %v2347
      %v2362 = vsub.f32 %v2338, %v2347
      %v2363 = vsub.f32 %v2342, %v2347
      %v2364 = vand.u32 2147483647, %v2348
      %v2365 = vand.u32 2147483647, %v2349
      %v2366 = vand.u32 2147483647, %v2350
      %v2367 = vand.u32 2147483647, %v2351
      %v2368 = vand.u32 2147483647, %v2352
      %v2369 = vand.u32 2147483647, %v2353
      %v2370 = vand.u32 2147483647, %v2354
      %v2371 = vand.u32 2147483647, %v2355
      %v2372 = vand.u32 2147483647, %v2356
      %v2373 = vand.u32 2147483647, %v2357
      %v2374 = vand.u32 2147483647, %v2358
      %v2375 = vand.u32 2147483647, %v2359
      %v2376 = vand.u32 2147483647, %v2360
      %v2377 = vand.u32 2147483647, %v2361
      %v2378 = vand.u32 2147483647, %v2362
      %v2379 = vand.u32 2147483647, %v2363
      %v2380 = vadd.f32 %v2264, %v2364
      %v2381 = vadd.f32 %v2265, %v2365
      %v2382 = vadd.f32 %v2266, %v2366
      %v2383 = vadd.f32 %v2267, %v2367
      %v2384 = vadd.f32 %v2268, %v2368
      %v2385 = vadd.f32 %v2269, %v2369
      %v2386 = vadd.f32 %v2270, %v2370
      %v2387 = vadd.f32 %v2271, %v2371
      %v2388 = vadd.f32 %v2272, %v2372
      %v2389 = vadd.f32 %v2273, %v2373
      %v2390 = vadd.f32 %v2274, %v2374
      %v2391 = vadd.f32 %v2275, %v2375
      %v2392 = vadd.f32 %v2276, %v2376
      %v2393 = vadd.f32 %v2277, %v2377
      %v2394 = vadd.f32 %v2278, %v2378
      %v2395 = vadd.f32 %v2279, %v2379
      %v2396 = vlaneseq
      %v2397 = vand.u32 %v2396, 127
      %vm2398 = vcmask 523264
      %v2399 = vsel %vm2398, %v2380, inf
      %2400 = vmin.xlane.f32.xlu0 %v2399
      %v2401 = vpop.xlane.xlu0 %2400
      %v2402 = vsel %vm2398, %v2381, inf
      %2403 = vmin.xlane.f32.xlu0 %v2402
      %v2404 = vpop.xlane.xlu0 %2403
      %v2405 = vsel %vm2398, %v2382, inf
      %2406 = vmin.xlane.f32.xlu0 %v2405
      %v2407 = vpop.xlane.xlu0 %2406
      %v2408 = vsel %vm2398, %v2383, inf
      %2409 = vmin.xlane.f32.xlu0 %v2408
      %v2410 = vpop.xlane.xlu0 %2409
      %v2411 = vsel %vm2398, %v2384, inf
      %2412 = vmin.xlane.f32.xlu0 %v2411
      %v2413 = vpop.xlane.xlu0 %2412
      %v2414 = vsel %vm2398, %v2385, inf
      %2415 = vmin.xlane.f32.xlu0 %v2414
      %v2416 = vpop.xlane.xlu0 %2415
      %v2417 = vsel %vm2398, %v2386, inf
      %2418 = vmin.xlane.f32.xlu0 %v2417
      %v2419 = vpop.xlane.xlu0 %2418
      %v2420 = vsel %vm2398, %v2387, inf
      %2421 = vmin.xlane.f32.xlu0 %v2420
      %v2422 = vpop.xlane.xlu0 %2421
      %v2423 = vsel %vm2398, %v2388, inf
      %2424 = vmin.xlane.f32.xlu0 %v2423
      %v2425 = vpop.xlane.xlu0 %2424
      %v2426 = vsel %vm2398, %v2389, inf
      %2427 = vmin.xlane.f32.xlu0 %v2426
      %v2428 = vpop.xlane.xlu0 %2427
      %v2429 = vsel %vm2398, %v2390, inf
      %2430 = vmin.xlane.f32.xlu0 %v2429
      %v2431 = vpop.xlane.xlu0 %2430
      %v2432 = vsel %vm2398, %v2391, inf
      %2433 = vmin.xlane.f32.xlu0 %v2432
      %v2434 = vpop.xlane.xlu0 %2433
      %v2435 = vsel %vm2398, %v2392, inf
      %2436 = vmin.xlane.f32.xlu0 %v2435
      %v2437 = vpop.xlane.xlu0 %2436
      %v2438 = vsel %vm2398, %v2393, inf
      %2439 = vmin.xlane.f32.xlu0 %v2438
      %v2440 = vpop.xlane.xlu0 %2439
      %v2441 = vsel %vm2398, %v2394, inf
      %2442 = vmin.xlane.f32.xlu0 %v2441
      %v2443 = vpop.xlane.xlu0 %2442
      %v2444 = vsel %vm2398, %v2395, inf
      %2445 = vmin.xlane.f32.xlu0 %v2444
      %v2446 = vpop.xlane.xlu0 %2445
      %v2447 = vadd.f32 %v2401, 0.0
      %v2448 = vadd.f32 %v2404, 0.0
      %v2449 = vadd.f32 %v2407, 0.0
      %v2450 = vadd.f32 %v2410, 0.0
      %v2451 = vadd.f32 %v2413, 0.0
      %v2452 = vadd.f32 %v2416, 0.0
      %v2453 = vadd.f32 %v2419, 0.0
      %v2454 = vadd.f32 %v2422, 0.0
      %v2455 = vadd.f32 %v2425, 0.0
      %v2456 = vadd.f32 %v2428, 0.0
      %v2457 = vadd.f32 %v2431, 0.0
      %v2458 = vadd.f32 %v2434, 0.0
      %v2459 = vadd.f32 %v2437, 0.0
      %v2460 = vadd.f32 %v2440, 0.0
      %v2461 = vadd.f32 %v2443, 0.0
      %v2462 = vadd.f32 %v2446, 0.0
      %vm2463 = vcmp.eq.f32.partialorder %v2380, %v2401
      %vm2464 = vcmp.eq.f32.partialorder %v2381, %v2404
      %vm2465 = vcmp.eq.f32.partialorder %v2382, %v2407
      %vm2466 = vcmp.eq.f32.partialorder %v2383, %v2410
      %vm2467 = vcmp.eq.f32.partialorder %v2384, %v2413
      %vm2468 = vcmp.eq.f32.partialorder %v2385, %v2416
      %vm2469 = vcmp.eq.f32.partialorder %v2386, %v2419
      %vm2470 = vcmp.eq.f32.partialorder %v2387, %v2422
      %vm2471 = vcmp.eq.f32.partialorder %v2388, %v2425
      %vm2472 = vcmp.eq.f32.partialorder %v2389, %v2428
      %vm2473 = vcmp.eq.f32.partialorder %v2390, %v2431
      %vm2474 = vcmp.eq.f32.partialorder %v2391, %v2434
      %vm2475 = vcmp.eq.f32.partialorder %v2392, %v2437
      %vm2476 = vcmp.eq.f32.partialorder %v2393, %v2440
      %vm2477 = vcmp.eq.f32.partialorder %v2394, %v2443
      %vm2478 = vcmp.eq.f32.partialorder %v2395, %v2446
      %v2479 = vsel %vm2463, %v2397, 64
      %v2480 = vsel %vm2464, %v2397, 64
      %v2481 = vsel %vm2465, %v2397, 64
      %v2482 = vsel %vm2466, %v2397, 64
      %v2483 = vsel %vm2467, %v2397, 64
      %v2484 = vsel %vm2468, %v2397, 64
      %v2485 = vsel %vm2469, %v2397, 64
      %v2486 = vsel %vm2470, %v2397, 64
      %v2487 = vsel %vm2471, %v2397, 64
      %v2488 = vsel %vm2472, %v2397, 64
      %v2489 = vsel %vm2473, %v2397, 64
      %v2490 = vsel %vm2474, %v2397, 64
      %v2491 = vsel %vm2475, %v2397, 64
      %v2492 = vsel %vm2476, %v2397, 64
      %v2493 = vsel %vm2477, %v2397, 64
      %v2494 = vsel %vm2478, %v2397, 64
      %v2495 = vsel %vm2398, %v2479, 2147483647
      %v2496 = vand.u32 %v2495, 65535
      %v2497 = vshra.s32 %v2495, 16
      %v2498 = vcvt.s32.f32 %v2496
      %v2499 = vcvt.s32.f32 %v2497
      %2500 = vmin.xlane.f32.xlu0 %v2499
      %v2501 = vpop.xlane.xlu0 %2500
      %vm2502 = vcmp.eq.f32.partialorder %v2499, %v2501
      %v2503 = vsel %vm2502, %v2498, inf
      %2504 = vmin.xlane.f32.xlu0 %v2503
      %v2505 = vpop.xlane.xlu0 %2504
      %v2506 = vcvt.f32.s32 %v2505
      %v2507 = vcvt.f32.s32 %v2501
      %v2508 = vshll.u32 %v2507, 16
      %v2509 = vadd.s32 %v2508, %v2506
      %v2510 = vsel %vm2398, %v2480, 2147483647
      %v2511 = vand.u32 %v2510, 65535
      %v2512 = vshra.s32 %v2510, 16
      %v2513 = vcvt.s32.f32 %v2511
      %v2514 = vcvt.s32.f32 %v2512
      %2515 = vmin.xlane.f32.xlu0 %v2514
      %v2516 = vpop.xlane.xlu0 %2515
      %vm2517 = vcmp.eq.f32.partialorder %v2514, %v2516
      %v2518 = vsel %vm2517, %v2513, inf
      %2519 = vmin.xlane.f32.xlu0 %v2518
      %v2520 = vpop.xlane.xlu0 %2519
      %v2521 = vcvt.f32.s32 %v2520
      %v2522 = vcvt.f32.s32 %v2516
      %v2523 = vshll.u32 %v2522, 16
      %v2524 = vadd.s32 %v2523, %v2521
      %v2525 = vsel %vm2398, %v2481, 2147483647
      %v2526 = vand.u32 %v2525, 65535
      %v2527 = vshra.s32 %v2525, 16
      %v2528 = vcvt.s32.f32 %v2526
      %v2529 = vcvt.s32.f32 %v2527
      %2530 = vmin.xlane.f32.xlu0 %v2529
      %v2531 = vpop.xlane.xlu0 %2530
      %vm2532 = vcmp.eq.f32.partialorder %v2529, %v2531
      %v2533 = vsel %vm2532, %v2528, inf
      %2534 = vmin.xlane.f32.xlu0 %v2533
      %v2535 = vpop.xlane.xlu0 %2534
      %v2536 = vcvt.f32.s32 %v2535
      %v2537 = vcvt.f32.s32 %v2531
      %v2538 = vshll.u32 %v2537, 16
      %v2539 = vadd.s32 %v2538, %v2536
      %v2540 = vsel %vm2398, %v2482, 2147483647
      %v2541 = vand.u32 %v2540, 65535
      %v2542 = vshra.s32 %v2540, 16
      %v2543 = vcvt.s32.f32 %v2541
      %v2544 = vcvt.s32.f32 %v2542
      %2545 = vmin.xlane.f32.xlu0 %v2544
      %v2546 = vpop.xlane.xlu0 %2545
      %vm2547 = vcmp.eq.f32.partialorder %v2544, %v2546
      %v2548 = vsel %vm2547, %v2543, inf
      %2549 = vmin.xlane.f32.xlu0 %v2548
      %v2550 = vpop.xlane.xlu0 %2549
      %v2551 = vcvt.f32.s32 %v2550
      %v2552 = vcvt.f32.s32 %v2546
      %v2553 = vshll.u32 %v2552, 16
      %v2554 = vadd.s32 %v2553, %v2551
      %v2555 = vsel %vm2398, %v2483, 2147483647
      %v2556 = vand.u32 %v2555, 65535
      %v2557 = vshra.s32 %v2555, 16
      %v2558 = vcvt.s32.f32 %v2556
      %v2559 = vcvt.s32.f32 %v2557
      %2560 = vmin.xlane.f32.xlu0 %v2559
      %v2561 = vpop.xlane.xlu0 %2560
      %vm2562 = vcmp.eq.f32.partialorder %v2559, %v2561
      %v2563 = vsel %vm2562, %v2558, inf
      %2564 = vmin.xlane.f32.xlu0 %v2563
      %v2565 = vpop.xlane.xlu0 %2564
      %v2566 = vcvt.f32.s32 %v2565
      %v2567 = vcvt.f32.s32 %v2561
      %v2568 = vshll.u32 %v2567, 16
      %v2569 = vadd.s32 %v2568, %v2566
      %v2570 = vsel %vm2398, %v2484, 2147483647
      %v2571 = vand.u32 %v2570, 65535
      %v2572 = vshra.s32 %v2570, 16
      %v2573 = vcvt.s32.f32 %v2571
      %v2574 = vcvt.s32.f32 %v2572
      %2575 = vmin.xlane.f32.xlu0 %v2574
      %v2576 = vpop.xlane.xlu0 %2575
      %vm2577 = vcmp.eq.f32.partialorder %v2574, %v2576
      %v2578 = vsel %vm2577, %v2573, inf
      %2579 = vmin.xlane.f32.xlu0 %v2578
      %v2580 = vpop.xlane.xlu0 %2579
      %v2581 = vcvt.f32.s32 %v2580
      %v2582 = vcvt.f32.s32 %v2576
      %v2583 = vshll.u32 %v2582, 16
      %v2584 = vadd.s32 %v2583, %v2581
      %v2585 = vsel %vm2398, %v2485, 2147483647
      %v2586 = vand.u32 %v2585, 65535
      %v2587 = vshra.s32 %v2585, 16
      %v2588 = vcvt.s32.f32 %v2586
      %v2589 = vcvt.s32.f32 %v2587
      %2590 = vmin.xlane.f32.xlu0 %v2589
      %v2591 = vpop.xlane.xlu0 %2590
      %vm2592 = vcmp.eq.f32.partialorder %v2589, %v2591
      %v2593 = vsel %vm2592, %v2588, inf
      %2594 = vmin.xlane.f32.xlu0 %v2593
      %v2595 = vpop.xlane.xlu0 %2594
      %v2596 = vcvt.f32.s32 %v2595
      %v2597 = vcvt.f32.s32 %v2591
      %v2598 = vshll.u32 %v2597, 16
      %v2599 = vadd.s32 %v2598, %v2596
      %v2600 = vsel %vm2398, %v2486, 2147483647
      %v2601 = vand.u32 %v2600, 65535
      %v2602 = vshra.s32 %v2600, 16
      %v2603 = vcvt.s32.f32 %v2601
      %v2604 = vcvt.s32.f32 %v2602
      %2605 = vmin.xlane.f32.xlu0 %v2604
      %v2606 = vpop.xlane.xlu0 %2605
      %vm2607 = vcmp.eq.f32.partialorder %v2604, %v2606
      %v2608 = vsel %vm2607, %v2603, inf
      %2609 = vmin.xlane.f32.xlu0 %v2608
      %v2610 = vpop.xlane.xlu0 %2609
      %v2611 = vcvt.f32.s32 %v2610
      %v2612 = vcvt.f32.s32 %v2606
      %v2613 = vshll.u32 %v2612, 16
      %v2614 = vadd.s32 %v2613, %v2611
      %v2615 = vsel %vm2398, %v2487, 2147483647
      %v2616 = vand.u32 %v2615, 65535
      %v2617 = vshra.s32 %v2615, 16
      %v2618 = vcvt.s32.f32 %v2616
      %v2619 = vcvt.s32.f32 %v2617
      %2620 = vmin.xlane.f32.xlu0 %v2619
      %v2621 = vpop.xlane.xlu0 %2620
      %vm2622 = vcmp.eq.f32.partialorder %v2619, %v2621
      %v2623 = vsel %vm2622, %v2618, inf
      %2624 = vmin.xlane.f32.xlu0 %v2623
      %v2625 = vpop.xlane.xlu0 %2624
      %v2626 = vcvt.f32.s32 %v2625
      %v2627 = vcvt.f32.s32 %v2621
      %v2628 = vshll.u32 %v2627, 16
      %v2629 = vadd.s32 %v2628, %v2626
      %v2630 = vsel %vm2398, %v2488, 2147483647
      %v2631 = vand.u32 %v2630, 65535
      %v2632 = vshra.s32 %v2630, 16
      %v2633 = vcvt.s32.f32 %v2631
      %v2634 = vcvt.s32.f32 %v2632
      %2635 = vmin.xlane.f32.xlu0 %v2634
      %v2636 = vpop.xlane.xlu0 %2635
      %vm2637 = vcmp.eq.f32.partialorder %v2634, %v2636
      %v2638 = vsel %vm2637, %v2633, inf
      %2639 = vmin.xlane.f32.xlu0 %v2638
      %v2640 = vpop.xlane.xlu0 %2639
      %v2641 = vcvt.f32.s32 %v2640
      %v2642 = vcvt.f32.s32 %v2636
      %v2643 = vshll.u32 %v2642, 16
      %v2644 = vadd.s32 %v2643, %v2641
      %v2645 = vsel %vm2398, %v2489, 2147483647
      %v2646 = vand.u32 %v2645, 65535
      %v2647 = vshra.s32 %v2645, 16
      %v2648 = vcvt.s32.f32 %v2646
      %v2649 = vcvt.s32.f32 %v2647
      %2650 = vmin.xlane.f32.xlu0 %v2649
      %v2651 = vpop.xlane.xlu0 %2650
      %vm2652 = vcmp.eq.f32.partialorder %v2649, %v2651
      %v2653 = vsel %vm2652, %v2648, inf
      %2654 = vmin.xlane.f32.xlu0 %v2653
      %v2655 = vpop.xlane.xlu0 %2654
      %v2656 = vcvt.f32.s32 %v2655
      %v2657 = vcvt.f32.s32 %v2651
      %v2658 = vshll.u32 %v2657, 16
      %v2659 = vadd.s32 %v2658, %v2656
      %v2660 = vsel %vm2398, %v2490, 2147483647
      %v2661 = vand.u32 %v2660, 65535
      %v2662 = vshra.s32 %v2660, 16
      %v2663 = vcvt.s32.f32 %v2661
      %v2664 = vcvt.s32.f32 %v2662
      %2665 = vmin.xlane.f32.xlu0 %v2664
      %v2666 = vpop.xlane.xlu0 %2665
      %vm2667 = vcmp.eq.f32.partialorder %v2664, %v2666
      %v2668 = vsel %vm2667, %v2663, inf
      %2669 = vmin.xlane.f32.xlu0 %v2668
      %v2670 = vpop.xlane.xlu0 %2669
      %v2671 = vcvt.f32.s32 %v2670
      %v2672 = vcvt.f32.s32 %v2666
      %v2673 = vshll.u32 %v2672, 16
      %v2674 = vadd.s32 %v2673, %v2671
      %v2675 = vsel %vm2398, %v2491, 2147483647
      %v2676 = vand.u32 %v2675, 65535
      %v2677 = vshra.s32 %v2675, 16
      %v2678 = vcvt.s32.f32 %v2676
      %v2679 = vcvt.s32.f32 %v2677
      %2680 = vmin.xlane.f32.xlu0 %v2679
      %v2681 = vpop.xlane.xlu0 %2680
      %vm2682 = vcmp.eq.f32.partialorder %v2679, %v2681
      %v2683 = vsel %vm2682, %v2678, inf
      %2684 = vmin.xlane.f32.xlu0 %v2683
      %v2685 = vpop.xlane.xlu0 %2684
      %v2686 = vcvt.f32.s32 %v2685
      %v2687 = vcvt.f32.s32 %v2681
      %v2688 = vshll.u32 %v2687, 16
      %v2689 = vadd.s32 %v2688, %v2686
      %v2690 = vsel %vm2398, %v2492, 2147483647
      %v2691 = vand.u32 %v2690, 65535
      %v2692 = vshra.s32 %v2690, 16
      %v2693 = vcvt.s32.f32 %v2691
      %v2694 = vcvt.s32.f32 %v2692
      %2695 = vmin.xlane.f32.xlu0 %v2694
      %v2696 = vpop.xlane.xlu0 %2695
      %vm2697 = vcmp.eq.f32.partialorder %v2694, %v2696
      %v2698 = vsel %vm2697, %v2693, inf
      %2699 = vmin.xlane.f32.xlu0 %v2698
      %v2700 = vpop.xlane.xlu0 %2699
      %v2701 = vcvt.f32.s32 %v2700
      %v2702 = vcvt.f32.s32 %v2696
      %v2703 = vshll.u32 %v2702, 16
      %v2704 = vadd.s32 %v2703, %v2701
      %v2705 = vsel %vm2398, %v2493, 2147483647
      %v2706 = vand.u32 %v2705, 65535
      %v2707 = vshra.s32 %v2705, 16
      %v2708 = vcvt.s32.f32 %v2706
      %v2709 = vcvt.s32.f32 %v2707
      %2710 = vmin.xlane.f32.xlu0 %v2709
      %v2711 = vpop.xlane.xlu0 %2710
      %vm2712 = vcmp.eq.f32.partialorder %v2709, %v2711
      %v2713 = vsel %vm2712, %v2708, inf
      %2714 = vmin.xlane.f32.xlu0 %v2713
      %v2715 = vpop.xlane.xlu0 %2714
      %v2716 = vcvt.f32.s32 %v2715
      %v2717 = vcvt.f32.s32 %v2711
      %v2718 = vshll.u32 %v2717, 16
      %v2719 = vadd.s32 %v2718, %v2716
      %v2720 = vsel %vm2398, %v2494, 2147483647
      %v2721 = vand.u32 %v2720, 65535
      %v2722 = vshra.s32 %v2720, 16
      %v2723 = vcvt.s32.f32 %v2721
      %v2724 = vcvt.s32.f32 %v2722
      %2725 = vmin.xlane.f32.xlu0 %v2724
      %v2726 = vpop.xlane.xlu0 %2725
      %vm2727 = vcmp.eq.f32.partialorder %v2724, %v2726
      %v2728 = vsel %vm2727, %v2723, inf
      %2729 = vmin.xlane.f32.xlu0 %v2728
      %v2730 = vpop.xlane.xlu0 %2729
      %v2731 = vcvt.f32.s32 %v2730
      %v2732 = vcvt.f32.s32 %v2726
      %v2733 = vshll.u32 %v2732, 16
      %v2734 = vadd.s32 %v2733, %v2731
      %vm2735 = vcmp.eq.s32.totalorder %v2397, %v2509
      %vm2736 = vcmp.eq.s32.totalorder %v2397, %v2524
      %vm2737 = vcmp.eq.s32.totalorder %v2397, %v2539
      %vm2738 = vcmp.eq.s32.totalorder %v2397, %v2554
      %vm2739 = vcmp.eq.s32.totalorder %v2397, %v2569
      %vm2740 = vcmp.eq.s32.totalorder %v2397, %v2584
      %vm2741 = vcmp.eq.s32.totalorder %v2397, %v2599
      %vm2742 = vcmp.eq.s32.totalorder %v2397, %v2614
      %vm2743 = vcmp.eq.s32.totalorder %v2397, %v2629
      %vm2744 = vcmp.eq.s32.totalorder %v2397, %v2644
      %vm2745 = vcmp.eq.s32.totalorder %v2397, %v2659
      %vm2746 = vcmp.eq.s32.totalorder %v2397, %v2674
      %vm2747 = vcmp.eq.s32.totalorder %v2397, %v2689
      %vm2748 = vcmp.eq.s32.totalorder %v2397, %v2704
      %vm2749 = vcmp.eq.s32.totalorder %v2397, %v2719
      %vm2750 = vcmp.eq.s32.totalorder %v2397, %v2734
      %v2751 = vsel %vm2735, inf, %v2380
      %v2752 = vsel %vm2736, inf, %v2381
      %v2753 = vsel %vm2737, inf, %v2382
      %v2754 = vsel %vm2738, inf, %v2383
      %v2755 = vsel %vm2739, inf, %v2384
      %v2756 = vsel %vm2740, inf, %v2385
      %v2757 = vsel %vm2741, inf, %v2386
      %v2758 = vsel %vm2742, inf, %v2387
      %v2759 = vsel %vm2743, inf, %v2388
      %v2760 = vsel %vm2744, inf, %v2389
      %v2761 = vsel %vm2745, inf, %v2390
      %v2762 = vsel %vm2746, inf, %v2391
      %v2763 = vsel %vm2747, inf, %v2392
      %v2764 = vsel %vm2748, inf, %v2393
      %v2765 = vsel %vm2749, inf, %v2394
      %v2766 = vsel %vm2750, inf, %v2395
      %v2767 = vsel %vm2398, %v2751, inf
      %2768 = vmin.xlane.f32.xlu0 %v2767
      %v2769 = vpop.xlane.xlu0 %2768
      %v2770 = vsel %vm2398, %v2752, inf
      %2771 = vmin.xlane.f32.xlu0 %v2770
      %v2772 = vpop.xlane.xlu0 %2771
      %v2773 = vsel %vm2398, %v2753, inf
      %2774 = vmin.xlane.f32.xlu0 %v2773
      %v2775 = vpop.xlane.xlu0 %2774
      %v2776 = vsel %vm2398, %v2754, inf
      %2777 = vmin.xlane.f32.xlu0 %v2776
      %v2778 = vpop.xlane.xlu0 %2777
      %v2779 = vsel %vm2398, %v2755, inf
      %2780 = vmin.xlane.f32.xlu0 %v2779
      %v2781 = vpop.xlane.xlu0 %2780
      %v2782 = vsel %vm2398, %v2756, inf
      %2783 = vmin.xlane.f32.xlu0 %v2782
      %v2784 = vpop.xlane.xlu0 %2783
      %v2785 = vsel %vm2398, %v2757, inf
      %2786 = vmin.xlane.f32.xlu0 %v2785
      %v2787 = vpop.xlane.xlu0 %2786
      %v2788 = vsel %vm2398, %v2758, inf
      %2789 = vmin.xlane.f32.xlu0 %v2788
      %v2790 = vpop.xlane.xlu0 %2789
      %v2791 = vsel %vm2398, %v2759, inf
      %2792 = vmin.xlane.f32.xlu0 %v2791
      %v2793 = vpop.xlane.xlu0 %2792
      %v2794 = vsel %vm2398, %v2760, inf
      %2795 = vmin.xlane.f32.xlu0 %v2794
      %v2796 = vpop.xlane.xlu0 %2795
      %v2797 = vsel %vm2398, %v2761, inf
      %2798 = vmin.xlane.f32.xlu0 %v2797
      %v2799 = vpop.xlane.xlu0 %2798
      %v2800 = vsel %vm2398, %v2762, inf
      %2801 = vmin.xlane.f32.xlu0 %v2800
      %v2802 = vpop.xlane.xlu0 %2801
      %v2803 = vsel %vm2398, %v2763, inf
      %2804 = vmin.xlane.f32.xlu0 %v2803
      %v2805 = vpop.xlane.xlu0 %2804
      %v2806 = vsel %vm2398, %v2764, inf
      %2807 = vmin.xlane.f32.xlu0 %v2806
      %v2808 = vpop.xlane.xlu0 %2807
      %v2809 = vsel %vm2398, %v2765, inf
      %2810 = vmin.xlane.f32.xlu0 %v2809
      %v2811 = vpop.xlane.xlu0 %2810
      %v2812 = vsel %vm2398, %v2766, inf
      %2813 = vmin.xlane.f32.xlu0 %v2812
      %v2814 = vpop.xlane.xlu0 %2813
      %v2815 = vmul.f32 %v2769, 0.5
      %v2816 = vmul.f32 %v2772, 0.5
      %v2817 = vmul.f32 %v2775, 0.5
      %v2818 = vmul.f32 %v2778, 0.5
      %v2819 = vmul.f32 %v2781, 0.5
      %v2820 = vmul.f32 %v2784, 0.5
      %v2821 = vmul.f32 %v2787, 0.5
      %v2822 = vmul.f32 %v2790, 0.5
      %v2823 = vmul.f32 %v2793, 0.5
      %v2824 = vmul.f32 %v2796, 0.5
      %v2825 = vmul.f32 %v2799, 0.5
      %v2826 = vmul.f32 %v2802, 0.5
      %v2827 = vmul.f32 %v2805, 0.5
      %v2828 = vmul.f32 %v2808, 0.5
      %v2829 = vmul.f32 %v2811, 0.5
      %v2830 = vmul.f32 %v2814, 0.5
      %v2831 = vadd.f32 %v2447, %v2815
      %v2832 = vadd.f32 %v2448, %v2816
      %v2833 = vadd.f32 %v2449, %v2817
      %v2834 = vadd.f32 %v2450, %v2818
      %v2835 = vadd.f32 %v2451, %v2819
      %v2836 = vadd.f32 %v2452, %v2820
      %v2837 = vadd.f32 %v2453, %v2821
      %v2838 = vadd.f32 %v2454, %v2822
      %v2839 = vadd.f32 %v2455, %v2823
      %v2840 = vadd.f32 %v2456, %v2824
      %v2841 = vadd.f32 %v2457, %v2825
      %v2842 = vadd.f32 %v2458, %v2826
      %v2843 = vadd.f32 %v2459, %v2827
      %v2844 = vadd.f32 %v2460, %v2828
      %v2845 = vadd.f32 %v2461, %v2829
      %v2846 = vadd.f32 %v2462, %v2830
      %vm2847 = vcmp.eq.f32.partialorder %v2751, %v2769
      %vm2848 = vcmp.eq.f32.partialorder %v2752, %v2772
      %vm2849 = vcmp.eq.f32.partialorder %v2753, %v2775
      %vm2850 = vcmp.eq.f32.partialorder %v2754, %v2778
      %vm2851 = vcmp.eq.f32.partialorder %v2755, %v2781
      %vm2852 = vcmp.eq.f32.partialorder %v2756, %v2784
      %vm2853 = vcmp.eq.f32.partialorder %v2757, %v2787
      %vm2854 = vcmp.eq.f32.partialorder %v2758, %v2790
      %vm2855 = vcmp.eq.f32.partialorder %v2759, %v2793
      %vm2856 = vcmp.eq.f32.partialorder %v2760, %v2796
      %vm2857 = vcmp.eq.f32.partialorder %v2761, %v2799
      %vm2858 = vcmp.eq.f32.partialorder %v2762, %v2802
      %vm2859 = vcmp.eq.f32.partialorder %v2763, %v2805
      %vm2860 = vcmp.eq.f32.partialorder %v2764, %v2808
      %vm2861 = vcmp.eq.f32.partialorder %v2765, %v2811
      %vm2862 = vcmp.eq.f32.partialorder %v2766, %v2814
      %v2863 = vsel %vm2847, %v2397, 64
      %v2864 = vsel %vm2848, %v2397, 64
      %v2865 = vsel %vm2849, %v2397, 64
      %v2866 = vsel %vm2850, %v2397, 64
      %v2867 = vsel %vm2851, %v2397, 64
      %v2868 = vsel %vm2852, %v2397, 64
      %v2869 = vsel %vm2853, %v2397, 64
      %v2870 = vsel %vm2854, %v2397, 64
      %v2871 = vsel %vm2855, %v2397, 64
      %v2872 = vsel %vm2856, %v2397, 64
      %v2873 = vsel %vm2857, %v2397, 64
      %v2874 = vsel %vm2858, %v2397, 64
      %v2875 = vsel %vm2859, %v2397, 64
      %v2876 = vsel %vm2860, %v2397, 64
      %v2877 = vsel %vm2861, %v2397, 64
      %v2878 = vsel %vm2862, %v2397, 64
      %v2879 = vsel %vm2398, %v2863, 2147483647
      %v2880 = vand.u32 %v2879, 65535
      %v2881 = vshra.s32 %v2879, 16
      %v2882 = vcvt.s32.f32 %v2880
      %v2883 = vcvt.s32.f32 %v2881
      %2884 = vmin.xlane.f32.xlu0 %v2883
      %v2885 = vpop.xlane.xlu0 %2884
      %vm2886 = vcmp.eq.f32.partialorder %v2883, %v2885
      %v2887 = vsel %vm2886, %v2882, inf
      %2888 = vmin.xlane.f32.xlu0 %v2887
      %v2889 = vpop.xlane.xlu0 %2888
      %v2890 = vcvt.f32.s32 %v2889
      %v2891 = vcvt.f32.s32 %v2885
      %v2892 = vshll.u32 %v2891, 16
      %v2893 = vadd.s32 %v2892, %v2890
      %v2894 = vsel %vm2398, %v2864, 2147483647
      %v2895 = vand.u32 %v2894, 65535
      %v2896 = vshra.s32 %v2894, 16
      %v2897 = vcvt.s32.f32 %v2895
      %v2898 = vcvt.s32.f32 %v2896
      %2899 = vmin.xlane.f32.xlu0 %v2898
      %v2900 = vpop.xlane.xlu0 %2899
      %vm2901 = vcmp.eq.f32.partialorder %v2898, %v2900
      %v2902 = vsel %vm2901, %v2897, inf
      %2903 = vmin.xlane.f32.xlu0 %v2902
      %v2904 = vpop.xlane.xlu0 %2903
      %v2905 = vcvt.f32.s32 %v2904
      %v2906 = vcvt.f32.s32 %v2900
      %v2907 = vshll.u32 %v2906, 16
      %v2908 = vadd.s32 %v2907, %v2905
      %v2909 = vsel %vm2398, %v2865, 2147483647
      %v2910 = vand.u32 %v2909, 65535
      %v2911 = vshra.s32 %v2909, 16
      %v2912 = vcvt.s32.f32 %v2910
      %v2913 = vcvt.s32.f32 %v2911
      %2914 = vmin.xlane.f32.xlu0 %v2913
      %v2915 = vpop.xlane.xlu0 %2914
      %vm2916 = vcmp.eq.f32.partialorder %v2913, %v2915
      %v2917 = vsel %vm2916, %v2912, inf
      %2918 = vmin.xlane.f32.xlu0 %v2917
      %v2919 = vpop.xlane.xlu0 %2918
      %v2920 = vcvt.f32.s32 %v2919
      %v2921 = vcvt.f32.s32 %v2915
      %v2922 = vshll.u32 %v2921, 16
      %v2923 = vadd.s32 %v2922, %v2920
      %v2924 = vsel %vm2398, %v2866, 2147483647
      %v2925 = vand.u32 %v2924, 65535
      %v2926 = vshra.s32 %v2924, 16
      %v2927 = vcvt.s32.f32 %v2925
      %v2928 = vcvt.s32.f32 %v2926
      %2929 = vmin.xlane.f32.xlu0 %v2928
      %v2930 = vpop.xlane.xlu0 %2929
      %vm2931 = vcmp.eq.f32.partialorder %v2928, %v2930
      %v2932 = vsel %vm2931, %v2927, inf
      %2933 = vmin.xlane.f32.xlu0 %v2932
      %v2934 = vpop.xlane.xlu0 %2933
      %v2935 = vcvt.f32.s32 %v2934
      %v2936 = vcvt.f32.s32 %v2930
      %v2937 = vshll.u32 %v2936, 16
      %v2938 = vadd.s32 %v2937, %v2935
      %v2939 = vsel %vm2398, %v2867, 2147483647
      %v2940 = vand.u32 %v2939, 65535
      %v2941 = vshra.s32 %v2939, 16
      %v2942 = vcvt.s32.f32 %v2940
      %v2943 = vcvt.s32.f32 %v2941
      %2944 = vmin.xlane.f32.xlu0 %v2943
      %v2945 = vpop.xlane.xlu0 %2944
      %vm2946 = vcmp.eq.f32.partialorder %v2943, %v2945
      %v2947 = vsel %vm2946, %v2942, inf
      %2948 = vmin.xlane.f32.xlu0 %v2947
      %v2949 = vpop.xlane.xlu0 %2948
      %v2950 = vcvt.f32.s32 %v2949
      %v2951 = vcvt.f32.s32 %v2945
      %v2952 = vshll.u32 %v2951, 16
      %v2953 = vadd.s32 %v2952, %v2950
      %v2954 = vsel %vm2398, %v2868, 2147483647
      %v2955 = vand.u32 %v2954, 65535
      %v2956 = vshra.s32 %v2954, 16
      %v2957 = vcvt.s32.f32 %v2955
      %v2958 = vcvt.s32.f32 %v2956
      %2959 = vmin.xlane.f32.xlu0 %v2958
      %v2960 = vpop.xlane.xlu0 %2959
      %vm2961 = vcmp.eq.f32.partialorder %v2958, %v2960
      %v2962 = vsel %vm2961, %v2957, inf
      %2963 = vmin.xlane.f32.xlu0 %v2962
      %v2964 = vpop.xlane.xlu0 %2963
      %v2965 = vcvt.f32.s32 %v2964
      %v2966 = vcvt.f32.s32 %v2960
      %v2967 = vshll.u32 %v2966, 16
      %v2968 = vadd.s32 %v2967, %v2965
      %v2969 = vsel %vm2398, %v2869, 2147483647
      %v2970 = vand.u32 %v2969, 65535
      %v2971 = vshra.s32 %v2969, 16
      %v2972 = vcvt.s32.f32 %v2970
      %v2973 = vcvt.s32.f32 %v2971
      %2974 = vmin.xlane.f32.xlu0 %v2973
      %v2975 = vpop.xlane.xlu0 %2974
      %vm2976 = vcmp.eq.f32.partialorder %v2973, %v2975
      %v2977 = vsel %vm2976, %v2972, inf
      %2978 = vmin.xlane.f32.xlu0 %v2977
      %v2979 = vpop.xlane.xlu0 %2978
      %v2980 = vcvt.f32.s32 %v2979
      %v2981 = vcvt.f32.s32 %v2975
      %v2982 = vshll.u32 %v2981, 16
      %v2983 = vadd.s32 %v2982, %v2980
      %v2984 = vsel %vm2398, %v2870, 2147483647
      %v2985 = vand.u32 %v2984, 65535
      %v2986 = vshra.s32 %v2984, 16
      %v2987 = vcvt.s32.f32 %v2985
      %v2988 = vcvt.s32.f32 %v2986
      %2989 = vmin.xlane.f32.xlu0 %v2988
      %v2990 = vpop.xlane.xlu0 %2989
      %vm2991 = vcmp.eq.f32.partialorder %v2988, %v2990
      %v2992 = vsel %vm2991, %v2987, inf
      %2993 = vmin.xlane.f32.xlu0 %v2992
      %v2994 = vpop.xlane.xlu0 %2993
      %v2995 = vcvt.f32.s32 %v2994
      %v2996 = vcvt.f32.s32 %v2990
      %v2997 = vshll.u32 %v2996, 16
      %v2998 = vadd.s32 %v2997, %v2995
      %v2999 = vsel %vm2398, %v2871, 2147483647
      %v3000 = vand.u32 %v2999, 65535
      %v3001 = vshra.s32 %v2999, 16
      %v3002 = vcvt.s32.f32 %v3000
      %v3003 = vcvt.s32.f32 %v3001
      %3004 = vmin.xlane.f32.xlu0 %v3003
      %v3005 = vpop.xlane.xlu0 %3004
      %vm3006 = vcmp.eq.f32.partialorder %v3003, %v3005
      %v3007 = vsel %vm3006, %v3002, inf
      %3008 = vmin.xlane.f32.xlu0 %v3007
      %v3009 = vpop.xlane.xlu0 %3008
      %v3010 = vcvt.f32.s32 %v3009
      %v3011 = vcvt.f32.s32 %v3005
      %v3012 = vshll.u32 %v3011, 16
      %v3013 = vadd.s32 %v3012, %v3010
      %v3014 = vsel %vm2398, %v2872, 2147483647
      %v3015 = vand.u32 %v3014, 65535
      %v3016 = vshra.s32 %v3014, 16
      %v3017 = vcvt.s32.f32 %v3015
      %v3018 = vcvt.s32.f32 %v3016
      %3019 = vmin.xlane.f32.xlu0 %v3018
      %v3020 = vpop.xlane.xlu0 %3019
      %vm3021 = vcmp.eq.f32.partialorder %v3018, %v3020
      %v3022 = vsel %vm3021, %v3017, inf
      %3023 = vmin.xlane.f32.xlu0 %v3022
      %v3024 = vpop.xlane.xlu0 %3023
      %v3025 = vcvt.f32.s32 %v3024
      %v3026 = vcvt.f32.s32 %v3020
      %v3027 = vshll.u32 %v3026, 16
      %v3028 = vadd.s32 %v3027, %v3025
      %v3029 = vsel %vm2398, %v2873, 2147483647
      %v3030 = vand.u32 %v3029, 65535
      %v3031 = vshra.s32 %v3029, 16
      %v3032 = vcvt.s32.f32 %v3030
      %v3033 = vcvt.s32.f32 %v3031
      %3034 = vmin.xlane.f32.xlu0 %v3033
      %v3035 = vpop.xlane.xlu0 %3034
      %vm3036 = vcmp.eq.f32.partialorder %v3033, %v3035
      %v3037 = vsel %vm3036, %v3032, inf
      %3038 = vmin.xlane.f32.xlu0 %v3037
      %v3039 = vpop.xlane.xlu0 %3038
      %v3040 = vcvt.f32.s32 %v3039
      %v3041 = vcvt.f32.s32 %v3035
      %v3042 = vshll.u32 %v3041, 16
      %v3043 = vadd.s32 %v3042, %v3040
      %v3044 = vsel %vm2398, %v2874, 2147483647
      %v3045 = vand.u32 %v3044, 65535
      %v3046 = vshra.s32 %v3044, 16
      %v3047 = vcvt.s32.f32 %v3045
      %v3048 = vcvt.s32.f32 %v3046
      %3049 = vmin.xlane.f32.xlu0 %v3048
      %v3050 = vpop.xlane.xlu0 %3049
      %vm3051 = vcmp.eq.f32.partialorder %v3048, %v3050
      %v3052 = vsel %vm3051, %v3047, inf
      %3053 = vmin.xlane.f32.xlu0 %v3052
      %v3054 = vpop.xlane.xlu0 %3053
      %v3055 = vcvt.f32.s32 %v3054
      %v3056 = vcvt.f32.s32 %v3050
      %v3057 = vshll.u32 %v3056, 16
      %v3058 = vadd.s32 %v3057, %v3055
      %v3059 = vsel %vm2398, %v2875, 2147483647
      %v3060 = vand.u32 %v3059, 65535
      %v3061 = vshra.s32 %v3059, 16
      %v3062 = vcvt.s32.f32 %v3060
      %v3063 = vcvt.s32.f32 %v3061
      %3064 = vmin.xlane.f32.xlu0 %v3063
      %v3065 = vpop.xlane.xlu0 %3064
      %vm3066 = vcmp.eq.f32.partialorder %v3063, %v3065
      %v3067 = vsel %vm3066, %v3062, inf
      %3068 = vmin.xlane.f32.xlu0 %v3067
      %v3069 = vpop.xlane.xlu0 %3068
      %v3070 = vcvt.f32.s32 %v3069
      %v3071 = vcvt.f32.s32 %v3065
      %v3072 = vshll.u32 %v3071, 16
      %v3073 = vadd.s32 %v3072, %v3070
      %v3074 = vsel %vm2398, %v2876, 2147483647
      %v3075 = vand.u32 %v3074, 65535
      %v3076 = vshra.s32 %v3074, 16
      %v3077 = vcvt.s32.f32 %v3075
      %v3078 = vcvt.s32.f32 %v3076
      %3079 = vmin.xlane.f32.xlu0 %v3078
      %v3080 = vpop.xlane.xlu0 %3079
      %vm3081 = vcmp.eq.f32.partialorder %v3078, %v3080
      %v3082 = vsel %vm3081, %v3077, inf
      %3083 = vmin.xlane.f32.xlu0 %v3082
      %v3084 = vpop.xlane.xlu0 %3083
      %v3085 = vcvt.f32.s32 %v3084
      %v3086 = vcvt.f32.s32 %v3080
      %v3087 = vshll.u32 %v3086, 16
      %v3088 = vadd.s32 %v3087, %v3085
      %v3089 = vsel %vm2398, %v2877, 2147483647
      %v3090 = vand.u32 %v3089, 65535
      %v3091 = vshra.s32 %v3089, 16
      %v3092 = vcvt.s32.f32 %v3090
      %v3093 = vcvt.s32.f32 %v3091
      %3094 = vmin.xlane.f32.xlu0 %v3093
      %v3095 = vpop.xlane.xlu0 %3094
      %vm3096 = vcmp.eq.f32.partialorder %v3093, %v3095
      %v3097 = vsel %vm3096, %v3092, inf
      %3098 = vmin.xlane.f32.xlu0 %v3097
      %v3099 = vpop.xlane.xlu0 %3098
      %v3100 = vcvt.f32.s32 %v3099
      %v3101 = vcvt.f32.s32 %v3095
      %v3102 = vshll.u32 %v3101, 16
      %v3103 = vadd.s32 %v3102, %v3100
      %v3104 = vsel %vm2398, %v2878, 2147483647
      %v3105 = vand.u32 %v3104, 65535
      %v3106 = vshra.s32 %v3104, 16
      %v3107 = vcvt.s32.f32 %v3105
      %v3108 = vcvt.s32.f32 %v3106
      %3109 = vmin.xlane.f32.xlu0 %v3108
      %v3110 = vpop.xlane.xlu0 %3109
      %vm3111 = vcmp.eq.f32.partialorder %v3108, %v3110
      %v3112 = vsel %vm3111, %v3107, inf
      %3113 = vmin.xlane.f32.xlu0 %v3112
      %v3114 = vpop.xlane.xlu0 %3113
      %v3115 = vcvt.f32.s32 %v3114
      %v3116 = vcvt.f32.s32 %v3110
      %v3117 = vshll.u32 %v3116, 16
      %v3118 = vadd.s32 %v3117, %v3115
      %vm3119 = vcmp.eq.s32.totalorder %v2397, %v2893
      %vm3120 = vcmp.eq.s32.totalorder %v2397, %v2908
      %vm3121 = vcmp.eq.s32.totalorder %v2397, %v2923
      %vm3122 = vcmp.eq.s32.totalorder %v2397, %v2938
      %vm3123 = vcmp.eq.s32.totalorder %v2397, %v2953
      %vm3124 = vcmp.eq.s32.totalorder %v2397, %v2968
      %vm3125 = vcmp.eq.s32.totalorder %v2397, %v2983
      %vm3126 = vcmp.eq.s32.totalorder %v2397, %v2998
      %vm3127 = vcmp.eq.s32.totalorder %v2397, %v3013
      %vm3128 = vcmp.eq.s32.totalorder %v2397, %v3028
      %vm3129 = vcmp.eq.s32.totalorder %v2397, %v3043
      %vm3130 = vcmp.eq.s32.totalorder %v2397, %v3058
      %vm3131 = vcmp.eq.s32.totalorder %v2397, %v3073
      %vm3132 = vcmp.eq.s32.totalorder %v2397, %v3088
      %vm3133 = vcmp.eq.s32.totalorder %v2397, %v3103
      %vm3134 = vcmp.eq.s32.totalorder %v2397, %v3118
      %v3135 = vsel %vm3119, inf, %v2751
      %v3136 = vsel %vm3120, inf, %v2752
      %v3137 = vsel %vm3121, inf, %v2753
      %v3138 = vsel %vm3122, inf, %v2754
      %v3139 = vsel %vm3123, inf, %v2755
      %v3140 = vsel %vm3124, inf, %v2756
      %v3141 = vsel %vm3125, inf, %v2757
      %v3142 = vsel %vm3126, inf, %v2758
      %v3143 = vsel %vm3127, inf, %v2759
      %v3144 = vsel %vm3128, inf, %v2760
      %v3145 = vsel %vm3129, inf, %v2761
      %v3146 = vsel %vm3130, inf, %v2762
      %v3147 = vsel %vm3131, inf, %v2763
      %v3148 = vsel %vm3132, inf, %v2764
      %v3149 = vsel %vm3133, inf, %v2765
      %v3150 = vsel %vm3134, inf, %v2766
      %v3151 = vsel %vm2398, %v3135, inf
      %3152 = vmin.xlane.f32.xlu0 %v3151
      %v3153 = vpop.xlane.xlu0 %3152
      %v3154 = vsel %vm2398, %v3136, inf
      %3155 = vmin.xlane.f32.xlu0 %v3154
      %v3156 = vpop.xlane.xlu0 %3155
      %v3157 = vsel %vm2398, %v3137, inf
      %3158 = vmin.xlane.f32.xlu0 %v3157
      %v3159 = vpop.xlane.xlu0 %3158
      %v3160 = vsel %vm2398, %v3138, inf
      %3161 = vmin.xlane.f32.xlu0 %v3160
      %v3162 = vpop.xlane.xlu0 %3161
      %v3163 = vsel %vm2398, %v3139, inf
      %3164 = vmin.xlane.f32.xlu0 %v3163
      %v3165 = vpop.xlane.xlu0 %3164
      %v3166 = vsel %vm2398, %v3140, inf
      %3167 = vmin.xlane.f32.xlu0 %v3166
      %v3168 = vpop.xlane.xlu0 %3167
      %v3169 = vsel %vm2398, %v3141, inf
      %3170 = vmin.xlane.f32.xlu0 %v3169
      %v3171 = vpop.xlane.xlu0 %3170
      %v3172 = vsel %vm2398, %v3142, inf
      %3173 = vmin.xlane.f32.xlu0 %v3172
      %v3174 = vpop.xlane.xlu0 %3173
      %v3175 = vsel %vm2398, %v3143, inf
      %3176 = vmin.xlane.f32.xlu0 %v3175
      %v3177 = vpop.xlane.xlu0 %3176
      %v3178 = vsel %vm2398, %v3144, inf
      %3179 = vmin.xlane.f32.xlu0 %v3178
      %v3180 = vpop.xlane.xlu0 %3179
      %v3181 = vsel %vm2398, %v3145, inf
      %3182 = vmin.xlane.f32.xlu0 %v3181
      %v3183 = vpop.xlane.xlu0 %3182
      %v3184 = vsel %vm2398, %v3146, inf
      %3185 = vmin.xlane.f32.xlu0 %v3184
      %v3186 = vpop.xlane.xlu0 %3185
      %v3187 = vsel %vm2398, %v3147, inf
      %3188 = vmin.xlane.f32.xlu0 %v3187
      %v3189 = vpop.xlane.xlu0 %3188
      %v3190 = vsel %vm2398, %v3148, inf
      %3191 = vmin.xlane.f32.xlu0 %v3190
      %v3192 = vpop.xlane.xlu0 %3191
      %v3193 = vsel %vm2398, %v3149, inf
      %3194 = vmin.xlane.f32.xlu0 %v3193
      %v3195 = vpop.xlane.xlu0 %3194
      %v3196 = vsel %vm2398, %v3150, inf
      %3197 = vmin.xlane.f32.xlu0 %v3196
      %v3198 = vpop.xlane.xlu0 %3197
      %v3199 = vmul.f32 %v3153, 0.25
      %v3200 = vmul.f32 %v3156, 0.25
      %v3201 = vmul.f32 %v3159, 0.25
      %v3202 = vmul.f32 %v3162, 0.25
      %v3203 = vmul.f32 %v3165, 0.25
      %v3204 = vmul.f32 %v3168, 0.25
      %v3205 = vmul.f32 %v3171, 0.25
      %v3206 = vmul.f32 %v3174, 0.25
      %v3207 = vmul.f32 %v3177, 0.25
      %v3208 = vmul.f32 %v3180, 0.25
      %v3209 = vmul.f32 %v3183, 0.25
      %v3210 = vmul.f32 %v3186, 0.25
      %v3211 = vmul.f32 %v3189, 0.25
      %v3212 = vmul.f32 %v3192, 0.25
      %v3213 = vmul.f32 %v3195, 0.25
      %v3214 = vmul.f32 %v3198, 0.25
      %v3215 = vadd.f32 %v2831, %v3199
      %v3216 = vadd.f32 %v2832, %v3200
      %v3217 = vadd.f32 %v2833, %v3201
      %v3218 = vadd.f32 %v2834, %v3202
      %v3219 = vadd.f32 %v2835, %v3203
      %v3220 = vadd.f32 %v2836, %v3204
      %v3221 = vadd.f32 %v2837, %v3205
      %v3222 = vadd.f32 %v2838, %v3206
      %v3223 = vadd.f32 %v2839, %v3207
      %v3224 = vadd.f32 %v2840, %v3208
      %v3225 = vadd.f32 %v2841, %v3209
      %v3226 = vadd.f32 %v2842, %v3210
      %v3227 = vadd.f32 %v2843, %v3211
      %v3228 = vadd.f32 %v2844, %v3212
      %v3229 = vadd.f32 %v2845, %v3213
      %v3230 = vadd.f32 %v2846, %v3214
      %vm3231 = vcmp.eq.f32.partialorder %v3135, %v3153
      %vm3232 = vcmp.eq.f32.partialorder %v3136, %v3156
      %vm3233 = vcmp.eq.f32.partialorder %v3137, %v3159
      %vm3234 = vcmp.eq.f32.partialorder %v3138, %v3162
      %vm3235 = vcmp.eq.f32.partialorder %v3139, %v3165
      %vm3236 = vcmp.eq.f32.partialorder %v3140, %v3168
      %vm3237 = vcmp.eq.f32.partialorder %v3141, %v3171
      %vm3238 = vcmp.eq.f32.partialorder %v3142, %v3174
      %vm3239 = vcmp.eq.f32.partialorder %v3143, %v3177
      %vm3240 = vcmp.eq.f32.partialorder %v3144, %v3180
      %vm3241 = vcmp.eq.f32.partialorder %v3145, %v3183
      %vm3242 = vcmp.eq.f32.partialorder %v3146, %v3186
      %vm3243 = vcmp.eq.f32.partialorder %v3147, %v3189
      %vm3244 = vcmp.eq.f32.partialorder %v3148, %v3192
      %vm3245 = vcmp.eq.f32.partialorder %v3149, %v3195
      %vm3246 = vcmp.eq.f32.partialorder %v3150, %v3198
      %v3247 = vsel %vm3231, %v2397, 64
      %v3248 = vsel %vm3232, %v2397, 64
      %v3249 = vsel %vm3233, %v2397, 64
      %v3250 = vsel %vm3234, %v2397, 64
      %v3251 = vsel %vm3235, %v2397, 64
      %v3252 = vsel %vm3236, %v2397, 64
      %v3253 = vsel %vm3237, %v2397, 64
      %v3254 = vsel %vm3238, %v2397, 64
      %v3255 = vsel %vm3239, %v2397, 64
      %v3256 = vsel %vm3240, %v2397, 64
      %v3257 = vsel %vm3241, %v2397, 64
      %v3258 = vsel %vm3242, %v2397, 64
      %v3259 = vsel %vm3243, %v2397, 64
      %v3260 = vsel %vm3244, %v2397, 64
      %v3261 = vsel %vm3245, %v2397, 64
      %v3262 = vsel %vm3246, %v2397, 64
      %v3263 = vsel %vm2398, %v3247, 2147483647
      %v3264 = vand.u32 %v3263, 65535
      %v3265 = vshra.s32 %v3263, 16
      %v3266 = vcvt.s32.f32 %v3264
      %v3267 = vcvt.s32.f32 %v3265
      %3268 = vmin.xlane.f32.xlu0 %v3267
      %v3269 = vpop.xlane.xlu0 %3268
      %vm3270 = vcmp.eq.f32.partialorder %v3267, %v3269
      %v3271 = vsel %vm3270, %v3266, inf
      %3272 = vmin.xlane.f32.xlu0 %v3271
      %v3273 = vpop.xlane.xlu0 %3272
      %v3274 = vcvt.f32.s32 %v3273
      %v3275 = vcvt.f32.s32 %v3269
      %v3276 = vshll.u32 %v3275, 16
      %v3277 = vadd.s32 %v3276, %v3274
      %v3278 = vsel %vm2398, %v3248, 2147483647
      %v3279 = vand.u32 %v3278, 65535
      %v3280 = vshra.s32 %v3278, 16
      %v3281 = vcvt.s32.f32 %v3279
      %v3282 = vcvt.s32.f32 %v3280
      %3283 = vmin.xlane.f32.xlu0 %v3282
      %v3284 = vpop.xlane.xlu0 %3283
      %vm3285 = vcmp.eq.f32.partialorder %v3282, %v3284
      %v3286 = vsel %vm3285, %v3281, inf
      %3287 = vmin.xlane.f32.xlu0 %v3286
      %v3288 = vpop.xlane.xlu0 %3287
      %v3289 = vcvt.f32.s32 %v3288
      %v3290 = vcvt.f32.s32 %v3284
      %v3291 = vshll.u32 %v3290, 16
      %v3292 = vadd.s32 %v3291, %v3289
      %v3293 = vsel %vm2398, %v3249, 2147483647
      %v3294 = vand.u32 %v3293, 65535
      %v3295 = vshra.s32 %v3293, 16
      %v3296 = vcvt.s32.f32 %v3294
      %v3297 = vcvt.s32.f32 %v3295
      %3298 = vmin.xlane.f32.xlu0 %v3297
      %v3299 = vpop.xlane.xlu0 %3298
      %vm3300 = vcmp.eq.f32.partialorder %v3297, %v3299
      %v3301 = vsel %vm3300, %v3296, inf
      %3302 = vmin.xlane.f32.xlu0 %v3301
      %v3303 = vpop.xlane.xlu0 %3302
      %v3304 = vcvt.f32.s32 %v3303
      %v3305 = vcvt.f32.s32 %v3299
      %v3306 = vshll.u32 %v3305, 16
      %v3307 = vadd.s32 %v3306, %v3304
      %v3308 = vsel %vm2398, %v3250, 2147483647
      %v3309 = vand.u32 %v3308, 65535
      %v3310 = vshra.s32 %v3308, 16
      %v3311 = vcvt.s32.f32 %v3309
      %v3312 = vcvt.s32.f32 %v3310
      %3313 = vmin.xlane.f32.xlu0 %v3312
      %v3314 = vpop.xlane.xlu0 %3313
      %vm3315 = vcmp.eq.f32.partialorder %v3312, %v3314
      %v3316 = vsel %vm3315, %v3311, inf
      %3317 = vmin.xlane.f32.xlu0 %v3316
      %v3318 = vpop.xlane.xlu0 %3317
      %v3319 = vcvt.f32.s32 %v3318
      %v3320 = vcvt.f32.s32 %v3314
      %v3321 = vshll.u32 %v3320, 16
      %v3322 = vadd.s32 %v3321, %v3319
      %v3323 = vsel %vm2398, %v3251, 2147483647
      %v3324 = vand.u32 %v3323, 65535
      %v3325 = vshra.s32 %v3323, 16
      %v3326 = vcvt.s32.f32 %v3324
      %v3327 = vcvt.s32.f32 %v3325
      %3328 = vmin.xlane.f32.xlu0 %v3327
      %v3329 = vpop.xlane.xlu0 %3328
      %vm3330 = vcmp.eq.f32.partialorder %v3327, %v3329
      %v3331 = vsel %vm3330, %v3326, inf
      %3332 = vmin.xlane.f32.xlu0 %v3331
      %v3333 = vpop.xlane.xlu0 %3332
      %v3334 = vcvt.f32.s32 %v3333
      %v3335 = vcvt.f32.s32 %v3329
      %v3336 = vshll.u32 %v3335, 16
      %v3337 = vadd.s32 %v3336, %v3334
      %v3338 = vsel %vm2398, %v3252, 2147483647
      %v3339 = vand.u32 %v3338, 65535
      %v3340 = vshra.s32 %v3338, 16
      %v3341 = vcvt.s32.f32 %v3339
      %v3342 = vcvt.s32.f32 %v3340
      %3343 = vmin.xlane.f32.xlu0 %v3342
      %v3344 = vpop.xlane.xlu0 %3343
      %vm3345 = vcmp.eq.f32.partialorder %v3342, %v3344
      %v3346 = vsel %vm3345, %v3341, inf
      %3347 = vmin.xlane.f32.xlu0 %v3346
      %v3348 = vpop.xlane.xlu0 %3347
      %v3349 = vcvt.f32.s32 %v3348
      %v3350 = vcvt.f32.s32 %v3344
      %v3351 = vshll.u32 %v3350, 16
      %v3352 = vadd.s32 %v3351, %v3349
      %v3353 = vsel %vm2398, %v3253, 2147483647
      %v3354 = vand.u32 %v3353, 65535
      %v3355 = vshra.s32 %v3353, 16
      %v3356 = vcvt.s32.f32 %v3354
      %v3357 = vcvt.s32.f32 %v3355
      %3358 = vmin.xlane.f32.xlu0 %v3357
      %v3359 = vpop.xlane.xlu0 %3358
      %vm3360 = vcmp.eq.f32.partialorder %v3357, %v3359
      %v3361 = vsel %vm3360, %v3356, inf
      %3362 = vmin.xlane.f32.xlu0 %v3361
      %v3363 = vpop.xlane.xlu0 %3362
      %v3364 = vcvt.f32.s32 %v3363
      %v3365 = vcvt.f32.s32 %v3359
      %v3366 = vshll.u32 %v3365, 16
      %v3367 = vadd.s32 %v3366, %v3364
      %v3368 = vsel %vm2398, %v3254, 2147483647
      %v3369 = vand.u32 %v3368, 65535
      %v3370 = vshra.s32 %v3368, 16
      %v3371 = vcvt.s32.f32 %v3369
      %v3372 = vcvt.s32.f32 %v3370
      %3373 = vmin.xlane.f32.xlu0 %v3372
      %v3374 = vpop.xlane.xlu0 %3373
      %vm3375 = vcmp.eq.f32.partialorder %v3372, %v3374
      %v3376 = vsel %vm3375, %v3371, inf
      %3377 = vmin.xlane.f32.xlu0 %v3376
      %v3378 = vpop.xlane.xlu0 %3377
      %v3379 = vcvt.f32.s32 %v3378
      %v3380 = vcvt.f32.s32 %v3374
      %v3381 = vshll.u32 %v3380, 16
      %v3382 = vadd.s32 %v3381, %v3379
      %v3383 = vsel %vm2398, %v3255, 2147483647
      %v3384 = vand.u32 %v3383, 65535
      %v3385 = vshra.s32 %v3383, 16
      %v3386 = vcvt.s32.f32 %v3384
      %v3387 = vcvt.s32.f32 %v3385
      %3388 = vmin.xlane.f32.xlu0 %v3387
      %v3389 = vpop.xlane.xlu0 %3388
      %vm3390 = vcmp.eq.f32.partialorder %v3387, %v3389
      %v3391 = vsel %vm3390, %v3386, inf
      %3392 = vmin.xlane.f32.xlu0 %v3391
      %v3393 = vpop.xlane.xlu0 %3392
      %v3394 = vcvt.f32.s32 %v3393
      %v3395 = vcvt.f32.s32 %v3389
      %v3396 = vshll.u32 %v3395, 16
      %v3397 = vadd.s32 %v3396, %v3394
      %v3398 = vsel %vm2398, %v3256, 2147483647
      %v3399 = vand.u32 %v3398, 65535
      %v3400 = vshra.s32 %v3398, 16
      %v3401 = vcvt.s32.f32 %v3399
      %v3402 = vcvt.s32.f32 %v3400
      %3403 = vmin.xlane.f32.xlu0 %v3402
      %v3404 = vpop.xlane.xlu0 %3403
      %vm3405 = vcmp.eq.f32.partialorder %v3402, %v3404
      %v3406 = vsel %vm3405, %v3401, inf
      %3407 = vmin.xlane.f32.xlu0 %v3406
      %v3408 = vpop.xlane.xlu0 %3407
      %v3409 = vcvt.f32.s32 %v3408
      %v3410 = vcvt.f32.s32 %v3404
      %v3411 = vshll.u32 %v3410, 16
      %v3412 = vadd.s32 %v3411, %v3409
      %v3413 = vsel %vm2398, %v3257, 2147483647
      %v3414 = vand.u32 %v3413, 65535
      %v3415 = vshra.s32 %v3413, 16
      %v3416 = vcvt.s32.f32 %v3414
      %v3417 = vcvt.s32.f32 %v3415
      %3418 = vmin.xlane.f32.xlu0 %v3417
      %v3419 = vpop.xlane.xlu0 %3418
      %vm3420 = vcmp.eq.f32.partialorder %v3417, %v3419
      %v3421 = vsel %vm3420, %v3416, inf
      %3422 = vmin.xlane.f32.xlu0 %v3421
      %v3423 = vpop.xlane.xlu0 %3422
      %v3424 = vcvt.f32.s32 %v3423
      %v3425 = vcvt.f32.s32 %v3419
      %v3426 = vshll.u32 %v3425, 16
      %v3427 = vadd.s32 %v3426, %v3424
      %v3428 = vsel %vm2398, %v3258, 2147483647
      %v3429 = vand.u32 %v3428, 65535
      %v3430 = vshra.s32 %v3428, 16
      %v3431 = vcvt.s32.f32 %v3429
      %v3432 = vcvt.s32.f32 %v3430
      %3433 = vmin.xlane.f32.xlu0 %v3432
      %v3434 = vpop.xlane.xlu0 %3433
      %vm3435 = vcmp.eq.f32.partialorder %v3432, %v3434
      %v3436 = vsel %vm3435, %v3431, inf
      %3437 = vmin.xlane.f32.xlu0 %v3436
      %v3438 = vpop.xlane.xlu0 %3437
      %v3439 = vcvt.f32.s32 %v3438
      %v3440 = vcvt.f32.s32 %v3434
      %v3441 = vshll.u32 %v3440, 16
      %v3442 = vadd.s32 %v3441, %v3439
      %v3443 = vsel %vm2398, %v3259, 2147483647
      %v3444 = vand.u32 %v3443, 65535
      %v3445 = vshra.s32 %v3443, 16
      %v3446 = vcvt.s32.f32 %v3444
      %v3447 = vcvt.s32.f32 %v3445
      %3448 = vmin.xlane.f32.xlu0 %v3447
      %v3449 = vpop.xlane.xlu0 %3448
      %vm3450 = vcmp.eq.f32.partialorder %v3447, %v3449
      %v3451 = vsel %vm3450, %v3446, inf
      %3452 = vmin.xlane.f32.xlu0 %v3451
      %v3453 = vpop.xlane.xlu0 %3452
      %v3454 = vcvt.f32.s32 %v3453
      %v3455 = vcvt.f32.s32 %v3449
      %v3456 = vshll.u32 %v3455, 16
      %v3457 = vadd.s32 %v3456, %v3454
      %v3458 = vsel %vm2398, %v3260, 2147483647
      %v3459 = vand.u32 %v3458, 65535
      %v3460 = vshra.s32 %v3458, 16
      %v3461 = vcvt.s32.f32 %v3459
      %v3462 = vcvt.s32.f32 %v3460
      %3463 = vmin.xlane.f32.xlu0 %v3462
      %v3464 = vpop.xlane.xlu0 %3463
      %vm3465 = vcmp.eq.f32.partialorder %v3462, %v3464
      %v3466 = vsel %vm3465, %v3461, inf
      %3467 = vmin.xlane.f32.xlu0 %v3466
      %v3468 = vpop.xlane.xlu0 %3467
      %v3469 = vcvt.f32.s32 %v3468
      %v3470 = vcvt.f32.s32 %v3464
      %v3471 = vshll.u32 %v3470, 16
      %v3472 = vadd.s32 %v3471, %v3469
      %v3473 = vsel %vm2398, %v3261, 2147483647
      %v3474 = vand.u32 %v3473, 65535
      %v3475 = vshra.s32 %v3473, 16
      %v3476 = vcvt.s32.f32 %v3474
      %v3477 = vcvt.s32.f32 %v3475
      %3478 = vmin.xlane.f32.xlu0 %v3477
      %v3479 = vpop.xlane.xlu0 %3478
      %vm3480 = vcmp.eq.f32.partialorder %v3477, %v3479
      %v3481 = vsel %vm3480, %v3476, inf
      %3482 = vmin.xlane.f32.xlu0 %v3481
      %v3483 = vpop.xlane.xlu0 %3482
      %v3484 = vcvt.f32.s32 %v3483
      %v3485 = vcvt.f32.s32 %v3479
      %v3486 = vshll.u32 %v3485, 16
      %v3487 = vadd.s32 %v3486, %v3484
      %v3488 = vsel %vm2398, %v3262, 2147483647
      %v3489 = vand.u32 %v3488, 65535
      %v3490 = vshra.s32 %v3488, 16
      %v3491 = vcvt.s32.f32 %v3489
      %v3492 = vcvt.s32.f32 %v3490
      %3493 = vmin.xlane.f32.xlu0 %v3492
      %v3494 = vpop.xlane.xlu0 %3493
      %vm3495 = vcmp.eq.f32.partialorder %v3492, %v3494
      %v3496 = vsel %vm3495, %v3491, inf
      %3497 = vmin.xlane.f32.xlu0 %v3496
      %v3498 = vpop.xlane.xlu0 %3497
      %v3499 = vcvt.f32.s32 %v3498
      %v3500 = vcvt.f32.s32 %v3494
      %v3501 = vshll.u32 %v3500, 16
      %v3502 = vadd.s32 %v3501, %v3499
      %vm3503 = vcmp.eq.s32.totalorder %v2397, %v3277
      %vm3504 = vcmp.eq.s32.totalorder %v2397, %v3292
      %vm3505 = vcmp.eq.s32.totalorder %v2397, %v3307
      %vm3506 = vcmp.eq.s32.totalorder %v2397, %v3322
      %vm3507 = vcmp.eq.s32.totalorder %v2397, %v3337
      %vm3508 = vcmp.eq.s32.totalorder %v2397, %v3352
      %vm3509 = vcmp.eq.s32.totalorder %v2397, %v3367
      %vm3510 = vcmp.eq.s32.totalorder %v2397, %v3382
      %vm3511 = vcmp.eq.s32.totalorder %v2397, %v3397
      %vm3512 = vcmp.eq.s32.totalorder %v2397, %v3412
      %vm3513 = vcmp.eq.s32.totalorder %v2397, %v3427
      %vm3514 = vcmp.eq.s32.totalorder %v2397, %v3442
      %vm3515 = vcmp.eq.s32.totalorder %v2397, %v3457
      %vm3516 = vcmp.eq.s32.totalorder %v2397, %v3472
      %vm3517 = vcmp.eq.s32.totalorder %v2397, %v3487
      %vm3518 = vcmp.eq.s32.totalorder %v2397, %v3502
      %v3519 = vsel %vm3503, inf, %v3135
      %v3520 = vsel %vm3504, inf, %v3136
      %v3521 = vsel %vm3505, inf, %v3137
      %v3522 = vsel %vm3506, inf, %v3138
      %v3523 = vsel %vm3507, inf, %v3139
      %v3524 = vsel %vm3508, inf, %v3140
      %v3525 = vsel %vm3509, inf, %v3141
      %v3526 = vsel %vm3510, inf, %v3142
      %v3527 = vsel %vm3511, inf, %v3143
      %v3528 = vsel %vm3512, inf, %v3144
      %v3529 = vsel %vm3513, inf, %v3145
      %v3530 = vsel %vm3514, inf, %v3146
      %v3531 = vsel %vm3515, inf, %v3147
      %v3532 = vsel %vm3516, inf, %v3148
      %v3533 = vsel %vm3517, inf, %v3149
      %v3534 = vsel %vm3518, inf, %v3150
      %v3535 = vsel %vm2398, %v3519, inf
      %3536 = vmin.xlane.f32.xlu0 %v3535
      %v3537 = vpop.xlane.xlu0 %3536
      %v3538 = vsel %vm2398, %v3520, inf
      %3539 = vmin.xlane.f32.xlu0 %v3538
      %v3540 = vpop.xlane.xlu0 %3539
      %v3541 = vsel %vm2398, %v3521, inf
      %3542 = vmin.xlane.f32.xlu0 %v3541
      %v3543 = vpop.xlane.xlu0 %3542
      %v3544 = vsel %vm2398, %v3522, inf
      %3545 = vmin.xlane.f32.xlu0 %v3544
      %v3546 = vpop.xlane.xlu0 %3545
      %v3547 = vsel %vm2398, %v3523, inf
      %3548 = vmin.xlane.f32.xlu0 %v3547
      %v3549 = vpop.xlane.xlu0 %3548
      %v3550 = vsel %vm2398, %v3524, inf
      %3551 = vmin.xlane.f32.xlu0 %v3550
      %v3552 = vpop.xlane.xlu0 %3551
      %v3553 = vsel %vm2398, %v3525, inf
      %3554 = vmin.xlane.f32.xlu0 %v3553
      %v3555 = vpop.xlane.xlu0 %3554
      %v3556 = vsel %vm2398, %v3526, inf
      %3557 = vmin.xlane.f32.xlu0 %v3556
      %v3558 = vpop.xlane.xlu0 %3557
      %v3559 = vsel %vm2398, %v3527, inf
      %3560 = vmin.xlane.f32.xlu0 %v3559
      %v3561 = vpop.xlane.xlu0 %3560
      %v3562 = vsel %vm2398, %v3528, inf
      %3563 = vmin.xlane.f32.xlu0 %v3562
      %v3564 = vpop.xlane.xlu0 %3563
      %v3565 = vsel %vm2398, %v3529, inf
      %3566 = vmin.xlane.f32.xlu0 %v3565
      %v3567 = vpop.xlane.xlu0 %3566
      %v3568 = vsel %vm2398, %v3530, inf
      %3569 = vmin.xlane.f32.xlu0 %v3568
      %v3570 = vpop.xlane.xlu0 %3569
      %v3571 = vsel %vm2398, %v3531, inf
      %3572 = vmin.xlane.f32.xlu0 %v3571
      %v3573 = vpop.xlane.xlu0 %3572
      %v3574 = vsel %vm2398, %v3532, inf
      %3575 = vmin.xlane.f32.xlu0 %v3574
      %v3576 = vpop.xlane.xlu0 %3575
      %v3577 = vsel %vm2398, %v3533, inf
      %3578 = vmin.xlane.f32.xlu0 %v3577
      %v3579 = vpop.xlane.xlu0 %3578
      %v3580 = vsel %vm2398, %v3534, inf
      %3581 = vmin.xlane.f32.xlu0 %v3580
      %v3582 = vpop.xlane.xlu0 %3581
      %v3583 = vmul.f32 %v3537, 0.125
      %v3584 = vmul.f32 %v3540, 0.125
      %v3585 = vmul.f32 %v3543, 0.125
      %v3586 = vmul.f32 %v3546, 0.125
      %v3587 = vmul.f32 %v3549, 0.125
      %v3588 = vmul.f32 %v3552, 0.125
      %v3589 = vmul.f32 %v3555, 0.125
      %v3590 = vmul.f32 %v3558, 0.125
      %v3591 = vmul.f32 %v3561, 0.125
      %v3592 = vmul.f32 %v3564, 0.125
      %v3593 = vmul.f32 %v3567, 0.125
      %v3594 = vmul.f32 %v3570, 0.125
      %v3595 = vmul.f32 %v3573, 0.125
      %v3596 = vmul.f32 %v3576, 0.125
      %v3597 = vmul.f32 %v3579, 0.125
      %v3598 = vmul.f32 %v3582, 0.125
      %v3599 = vadd.f32 %v3215, %v3583
      %v3600 = vadd.f32 %v3216, %v3584
      %v3601 = vadd.f32 %v3217, %v3585
      %v3602 = vadd.f32 %v3218, %v3586
      %v3603 = vadd.f32 %v3219, %v3587
      %v3604 = vadd.f32 %v3220, %v3588
      %v3605 = vadd.f32 %v3221, %v3589
      %v3606 = vadd.f32 %v3222, %v3590
      %v3607 = vadd.f32 %v3223, %v3591
      %v3608 = vadd.f32 %v3224, %v3592
      %v3609 = vadd.f32 %v3225, %v3593
      %v3610 = vadd.f32 %v3226, %v3594
      %v3611 = vadd.f32 %v3227, %v3595
      %v3612 = vadd.f32 %v3228, %v3596
      %v3613 = vadd.f32 %v3229, %v3597
      %v3614 = vadd.f32 %v3230, %v3598
      %v3615 = vmul.f32 %v3599, 0.53333336
      %v3616 = vmul.f32 %v3600, 0.53333336
      %v3617 = vmul.f32 %v3601, 0.53333336
      %v3618 = vmul.f32 %v3602, 0.53333336
      %v3619 = vmul.f32 %v3603, 0.53333336
      %v3620 = vmul.f32 %v3604, 0.53333336
      %v3621 = vmul.f32 %v3605, 0.53333336
      %v3622 = vmul.f32 %v3606, 0.53333336
      %v3623 = vmul.f32 %v3607, 0.53333336
      %v3624 = vmul.f32 %v3608, 0.53333336
      %v3625 = vmul.f32 %v3609, 0.53333336
      %v3626 = vmul.f32 %v3610, 0.53333336
      %v3627 = vmul.f32 %v3611, 0.53333336
      %v3628 = vmul.f32 %v3612, 0.53333336
      %v3629 = vmul.f32 %v3613, 0.53333336
      %v3630 = vmul.f32 %v3614, 0.53333336
      %3631 = vst [vmem:[%s253] sm:$0xff] %v3615
      %3632 = vst [vmem:[%s253 + $0x8] sm:$0xff] %v3616
      %3633 = vst [vmem:[%s253 + $0x10] sm:$0xff] %v3617
      %3634 = vst [vmem:[%s253 + $0x18] sm:$0xff] %v3618
      %3635 = vst [vmem:[%s253 + $0x20] sm:$0xff] %v3619
      %3636 = vst [vmem:[%s253 + $0x28] sm:$0xff] %v3620
      %3637 = vst [vmem:[%s253 + $0x30] sm:$0xff] %v3621
      %3638 = vst [vmem:[%s253 + $0x38] sm:$0xff] %v3622
      %3639 = vst [vmem:[%s253 + $0x40] sm:$0xff] %v3623
      %3640 = vst [vmem:[%s253 + $0x48] sm:$0xff] %v3624
      %3641 = vst [vmem:[%s253 + $0x50] sm:$0xff] %v3625
      %3642 = vst [vmem:[%s253 + $0x58] sm:$0xff] %v3626
      %3643 = vst [vmem:[%s253 + $0x60] sm:$0xff] %v3627
      %3644 = vst [vmem:[%s253 + $0x68] sm:$0xff] %v3628
      %3645 = vst [vmem:[%s253 + $0x70] sm:$0xff] %v3629
      %3646 = vst [vmem:[%s253 + $0x78] sm:$0xff] %v3630
      %s3647 = smul.u32 16, %s17
      %p3648 = scmp.lt.s32.totalorder %s3647, 31
      %s3649 = scalar_select %p3648, %s3647, 31
      %s3650 = smul.addr %s3649, 8
      %s3651 = scalar_lea.vmem %s6, %s3650
      // Predicated region
      $region45: #{memstream_forward.1} parent=43 // pred_check
        %p3652 = pneg %p166
      $region46: #{memstream_forward.1} parent=43 // pred_check_branch
        %3654 = sbr.rel (%p3652) target = $region48
      $region47: #{memstream_forward.1} parent=43 // pred_region
        %s3655 = smul.u32 16, %s17
      $region48: #{memstream_forward.1} parent=43 // pred_fallthru
        _
    $region44: #{memstream_forward.1} parent=5 // pred_fallthru
      _
    %p3656 = scmp.le.s32.totalorder 2, %s12
    // Predicated region
    $region49: #{memstream_forward.1} parent=5 // pred_check
      %p3657 = pneg %p3656
    $region50: #{memstream_forward.1} parent=5 // pred_check_branch
      %3659 = sbr.rel (%p3657) target = $region52
    $region51: #{memstream_forward.1} parent=5 // pred_region
      %s3660 = ssub.s32 %s12, 2
      // Predicated region
      $region53: #{memstream_forward.1} parent=51 // pred_check
        %p3661 = pneg %p172
      $region54: #{memstream_forward.1} parent=51 // pred_check_branch
        %3663 = sbr.rel (%p3661) target = $region56
      $region55: #{memstream_forward.1} parent=51 // pred_region
        %s3664 = smul.u32 16, %s18
        %p3665 = scmp.lt.s32.totalorder %s3664, 31
        %s3666 = scalar_select %p3665, %s3664, 31
        %s3667 = smul.addr %s3666, 8
        %s3668 = scalar_lea.vmem %s6, %s3667
      $region56: #{memstream_forward.1} parent=51 // pred_fallthru
        _
    $region52: #{memstream_forward.1} parent=5 // pred_fallthru
      _
  $region6: #{memstream_forward.1} parent=0 // loop_footer
    %s16 = sadd.s32 1, %s12
  $region7: #{memstream_forward.1} parent=0 // loop_footer_branch
    %11 = sbr.rel target = $region3
  $region8: #{memstream_forward.1} parent=0 // loop_exit
    _

</llo_original>
